<compile_context>
chip_gen: v7x
topology: tpu7x:2x2x1
jax: 0.10.0
libtpu: 0.0.40
codegen_flags: <defaults>
</compile_context>

<pallas_src>
import functools
import math

import jax
import jax.numpy as jnp
from jax import lax
from jax.experimental import pallas as pl
from jax.experimental.pallas import tpu as pltpu

_VMEM_LIMIT = 40 * 1024 * 1024  # safe on v5e/v6e (128 MiB) and v7x (64 MiB/TC)


# ------------------------------- tiling helpers -------------------------------

def _pick_tile(dim, target):
    """Largest divisor of `dim` <= target, preferring 256-multiples (fills the
    2x256x256 MXU on v6e/v7x, still 128-aligned for v5e), then 128, then 8
    (sublane); otherwise fall back to the full dim (always a legal block)."""
    if dim <= target:
        return dim
    for step in (256, 128, 8):
        t = (target // step) * step
        while t >= step:
            if dim % t == 0:
                return t
            t -= step
    return dim


def _pad_rows(x, mult=8):
    """Pad the leading (row) dim up to a multiple of `mult` (sublane align)."""
    pad = (-x.shape[0]) % mult
    if pad:
        x = jnp.pad(x, ((0, pad), (0, 0)))
    return x


def _apply_act(y, act):
    if act == "tanh":
        return jnp.tanh(y)
    if act == "gelu":
        # exact (erf) GELU, as in RoBERTa's "gelu" activation (f32 epilogue)
        return 0.5 * y * (1.0 + lax.erf(y * (1.0 / math.sqrt(2.0))))
    return y


# ----------------------------- tiled linear kernels ----------------------------

def _linear_kernel(act, x_ref, w_ref, b_ref, o_ref):
    # K fully resident: one MXU pass, f32 epilogue, no accumulator revisit.
    y = jnp.dot(x_ref[...], w_ref[...], preferred_element_type=jnp.float32)
    y = y + b_ref[...].astype(jnp.float32)
    o_ref[...] = _apply_act(y, act).astype(o_ref.dtype)


def _linear_kernel_splitk(act, x_ref, w_ref, b_ref, o_ref, acc_ref):
    k = pl.program_id(2)

    @pl.when(k == 0)
    def _():
        acc_ref[...] = jnp.zeros_like(acc_ref)

    acc_ref[...] += jnp.dot(x_ref[...], w_ref[...],
                            preferred_element_type=jnp.float32)

    @pl.when(k == pl.num_programs(2) - 1)
    def _():
        y = acc_ref[...] + b_ref[...].astype(jnp.float32)
        o_ref[...] = _apply_act(y, act).astype(o_ref.dtype)


def linear(x, w, b, act="none", out_dtype=jnp.bfloat16,
           tm_target=512, tn_target=1024, tk_target=3072):
    """y = act(x @ w + b).  x:(M,K) bf16, w:(K,N) bf16, b:(N,) f32.
    With RoBERTa shapes K <= 3072 so the K axis is never split."""
    m0 = x.shape[0]
    x = _pad_rows(x)
    M, K = x.shape
    N = w.shape[1]
    tm = _pick_tile(M, tm_target)
    tn = _pick_tile(N, tn_target)
    tk = _pick_tile(K, tk_target)
    b2 = b.reshape(1, N)

    if tk == K:
        out = pl.pallas_call(
            functools.partial(_linear_kernel, act),
            grid=(M // tm, N // tn),
            in_specs=[pl.BlockSpec((tm, K), lambda i, j: (i, 0)),
                      pl.BlockSpec((K, tn), lambda i, j: (0, j)),
                      pl.BlockSpec((1, tn), lambda i, j: (0, j))],
            out_specs=pl.BlockSpec((tm, tn), lambda i, j: (i, j)),
            out_shape=jax.ShapeDtypeStruct((M, N), out_dtype),
            compiler_params=pltpu.CompilerParams(
                dimension_semantics=("parallel", "parallel"),
                vmem_limit_bytes=_VMEM_LIMIT),
        )(x, w, b2)
    else:  # generic fallback for very large K (unused at RoBERTa shapes)
        out = pl.pallas_call(
            functools.partial(_linear_kernel_splitk, act),
            grid_spec=pltpu.PrefetchScalarGridSpec(
                num_scalar_prefetch=0,
                grid=(M // tm, N // tn, K // tk),
                in_specs=[pl.BlockSpec((tm, tk), lambda i, j, k: (i, k)),
                          pl.BlockSpec((tk, tn), lambda i, j, k: (k, j)),
                          pl.BlockSpec((1, tn), lambda i, j, k: (0, j))],
                out_specs=pl.BlockSpec((tm, tn), lambda i, j, k: (i, j)),
                scratch_shapes=[pltpu.VMEM((tm, tn), jnp.float32)]),
            out_shape=jax.ShapeDtypeStruct((M, N), out_dtype),
            compiler_params=pltpu.CompilerParams(
                dimension_semantics=("parallel", "parallel", "arbitrary"),
                vmem_limit_bytes=_VMEM_LIMIT),
        )(x, w, b2)
    return out[:m0] if m0 != M else out


# ----------------------- row-tiled (residual +) LayerNorm ----------------------

def _layernorm_kernel(eps, has_residual, *refs):
    if has_residual:
        x_ref, r_ref, g_ref, b_ref, o_ref = refs
        x = x_ref[...].astype(jnp.float32) + r_ref[...].astype(jnp.float32)
    else:
        x_ref, g_ref, b_ref, o_ref = refs
        x = x_ref[...].astype(jnp.float32)
    mu = jnp.mean(x, axis=-1, keepdims=True)
    xc = x - mu
    var = jnp.mean(xc * xc, axis=-1, keepdims=True)
    inv = lax.rsqrt(var + eps)
    y = (xc * inv) * g_ref[...].astype(jnp.float32) + b_ref[...].astype(jnp.float32)
    o_ref[...] = y.astype(o_ref.dtype)


def layernorm(x, g, b, residual=None, eps=1e-5, out_dtype=jnp.bfloat16,
              bm_target=512):
    """LayerNorm over last dim (optionally fused with a residual add)."""
    m0 = x.shape[0]
    x = _pad_rows(x)
    inputs = [x] if residual is None else [x, _pad_rows(residual)]
    M, H = x.shape
    bm = _pick_tile(M, bm_target)
    row_spec = pl.BlockSpec((bm, H), lambda i: (i, 0))
    vec_spec = pl.BlockSpec((1, H), lambda i: (0, 0))
    out = pl.pallas_call(
        functools.partial(_layernorm_kernel, eps, residual is not None),
        grid=(M // bm,),
        in_specs=[row_spec] * len(inputs) + [vec_spec, vec_spec],
        out_specs=row_spec,
        out_shape=jax.ShapeDtypeStruct((M, H), out_dtype),
        compiler_params=pltpu.CompilerParams(dimension_semantics=("parallel",)),
    )(*inputs, g.reshape(1, H), b.reshape(1, H))
    return out[:m0] if m0 != M else out


# ---------------- fused linear + bias + residual + LayerNorm -------------------

def _linear_res_ln_kernel(eps, x_ref, w_ref, b_ref, r_ref, g_ref, beta_ref, o_ref):
    y = jnp.dot(x_ref[...], w_ref[...], preferred_element_type=jnp.float32)
    y = y + b_ref[...].astype(jnp.float32) + r_ref[...].astype(jnp.float32)
    mu = jnp.mean(y, axis=-1, keepdims=True)
    yc = y - mu
    var = jnp.mean(yc * yc, axis=-1, keepdims=True)
    inv = lax.rsqrt(var + eps)
    out = yc * inv * g_ref[...].astype(jnp.float32) + beta_ref[...].astype(jnp.float32)
    o_ref[...] = out.astype(o_ref.dtype)


def linear_res_ln(x, w, b, residual, g, beta, eps=1e-5, out_dtype=jnp.bfloat16,
                  tm_target=512, tk_limit=4096, tn_limit=2048):
    """LayerNorm(residual + x @ w + b), fused.  Keeps the full output row and
    the whole (K, N) weight resident per step (K=768/3072, N=768 for RoBERTa).
    Falls back to linear()+layernorm() for shapes that do not fit."""
    M0, K = x.shape
    N = w.shape[1]
    if K > tk_limit or N > tn_limit:
        return layernorm(linear(x, w, b, out_dtype=out_dtype), g, beta,
                         residual=residual, eps=eps, out_dtype=out_dtype)
    x = _pad_rows(x)
    residual = _pad_rows(residual)
    M = x.shape[0]
    tm = _pick_tile(M, tm_target)
    out = pl.pallas_call(
        functools.partial(_linear_res_ln_kernel, eps),
        grid=(M // tm,),
        in_specs=[pl.BlockSpec((tm, K), lambda i: (i, 0)),
                  pl.BlockSpec((K, N), lambda i: (0, 0)),
                  pl.BlockSpec((1, N), lambda i: (0, 0)),
                  pl.BlockSpec((tm, N), lambda i: (i, 0)),
                  pl.BlockSpec((1, N), lambda i: (0, 0)),
                  pl.BlockSpec((1, N), lambda i: (0, 0))],
        out_specs=pl.BlockSpec((tm, N), lambda i: (i, 0)),
        out_shape=jax.ShapeDtypeStruct((M, N), out_dtype),
        compiler_params=pltpu.CompilerParams(
            dimension_semantics=("parallel",),
            vmem_limit_bytes=_VMEM_LIMIT),
    )(x, w, b.reshape(1, N), residual, g.reshape(1, N), beta.reshape(1, N))
    return out[:M0] if M0 != M else out


# ------------------------------ attention kernels ------------------------------

def _sdpa_heads(q, k, v, bias, dh, scale, n_heads):
    """softmax(q_h k_h^T * scale + bias) v_h per head.  q/k/v: (S, n_heads*dh)
    bf16, bias: (1, S) f32 additive mask.  Returns (S, n_heads*dh) f32."""
    outs = []
    for h in range(n_heads):
        sl = slice(h * dh, (h + 1) * dh)
        # contract on last dims of both operands -> no XLU transpose of K
        s = lax.dot_general(q[:, sl], k[:, sl],
                            dimension_numbers=(((1,), (1,)), ((), ())),
                            preferred_element_type=jnp.float32) * scale
        s = s + bias
        m = jnp.max(s, axis=-1, keepdims=True)
        p = jnp.exp(s - m)  # TODO(synk): bf16 exp on v6e/v7x would halve EUP load
        inv = pl.reciprocal(jnp.sum(p, axis=-1, keepdims=True), approx=True)
        p = (p * inv).astype(v.dtype)
        outs.append(jnp.dot(p, v[:, sl], preferred_element_type=jnp.float32))
    return outs[0] if len(outs) == 1 else jnp.concatenate(outs, axis=-1)


def _attn_group_kernel(hpg, dh, scale, q_ref, k_ref, v_ref, bias_ref, o_ref):
    # q/k/v refs are (S, hpg*dh) 128-lane-aligned slabs of the fused QKV tensor.
    o_ref[...] = _sdpa_heads(q_ref[...], k_ref[...], v_ref[...],
                             bias_ref[...].astype(jnp.float32),
                             dh, scale, hpg).astype(o_ref.dtype)


def _attn_fused_kernel(nh, dh, scale, qkv_ref, bias_ref, o_ref):
    H = nh * dh
    qkv = qkv_ref[...]
    o_ref[...] = _sdpa_heads(qkv[:, :H], qkv[:, H:2 * H], qkv[:, 2 * H:],
                             bias_ref[...].astype(jnp.float32),
                             dh, scale, nh).astype(o_ref.dtype)


def attention(qkv, bias, nh):
    """Scaled dot-product attention from the fused QKV tensor.
    qkv: (B, S, 3H) bf16, bias: (B, 1, S) f32 additive mask -> (B, S, H)."""
    B, S, H3 = qkv.shape
    H = H3 // 3
    dh = H // nh
    scale = 1.0 / math.sqrt(dh)

    # pack heads into groups whose lane width is a 128-multiple (2 heads @ dh=64)
    if dh % 128 == 0:
        hpg = 1
    elif 128 % dh == 0 and nh % (128 // dh) == 0:
        hpg = 128 // dh
    else:
        hpg = nh
    gd = hpg * dh
    ngroups = nh // hpg

    out_shape = jax.ShapeDtypeStruct((B, S, H), jnp.bfloat16)

    if gd % 128 == 0:
        # (batch, head-group) grid; Q/K/V group blocks are three lane-dense
        # views of the same fused array (no 64-lane-offset slices / relayouts),
        # per-step working set stays small (v7x 64 MiB VMEM), and the 2-D
        # parallel grid gives the v7x megacore enough extent.
        return pl.pallas_call(
            functools.partial(_attn_group_kernel, hpg, dh, scale),
            grid=(B, ngroups),
            in_specs=[
                pl.BlockSpec((None, S, gd), lambda b, g: (b, 0, g)),
                pl.BlockSpec((None, S, gd), lambda b, g: (b, 0, ngroups + g)),
                pl.BlockSpec((None, S, gd), lambda b, g: (b, 0, 2 * ngroups + g)),
                pl.BlockSpec((None, 1, S), lambda b, g: (b, 0, 0)),
            ],
            out_specs=pl.BlockSpec((None, S, gd), lambda b, g: (b, 0, g)),
            out_shape=out_shape,
            compiler_params=pltpu.CompilerParams(
                dimension_semantics=("parallel", "parallel")),
        )(qkv, qkv, qkv, bias)

    # fallback for head dims that cannot be packed into 128-lane groups
    return pl.pallas_call(
        functools.partial(_attn_fused_kernel, nh, dh, scale),
        grid=(B,),
        in_specs=[pl.BlockSpec((None, S, H3), lambda b: (b, 0, 0)),
                  pl.BlockSpec((None, 1, S), lambda b: (b, 0, 0))],
        out_specs=pl.BlockSpec((None, S, H), lambda b: (b, 0, 0)),
        out_shape=out_shape,
        compiler_params=pltpu.CompilerParams(dimension_semantics=("parallel",)),
    )(qkv, bias)


# ------------------------ fused pooler + classifier head ----------------------

def _head_kernel(x_ref, wp_ref, bp_ref, wc_ref, bc_ref, o_ref):
    x = x_ref[...]                                               # (B, H) bf16
    pooled = jnp.tanh(
        jnp.dot(x, wp_ref[...], preferred_element_type=jnp.float32)
        + bp_ref[...].astype(jnp.float32))
    logits = (jnp.dot(pooled.astype(wc_ref.dtype), wc_ref[...],
                      preferred_element_type=jnp.float32)
              + bc_ref[...].astype(jnp.float32))
    o_ref[...] = logits


def pooler_classifier(x, wp, bp, wc, bc):
    B, H = x.shape
    n_labels = wc.shape[1]
    return pl.pallas_call(
        _head_kernel,
        out_shape=jax.ShapeDtypeStruct((B, n_labels), jnp.float32),
    )(x, wp, bp.reshape(1, H), wc, bc.reshape(1, n_labels))


# -------------------------------- model glue ----------------------------------

def init_params(key, *, vocab, max_pos, hidden, n_layers, inter, n_labels):
    def nrm(k, shape, dtype=jnp.bfloat16):
        return (jax.random.normal(k, shape, jnp.float32) * 0.02).astype(dtype)

    keys = iter(jax.random.split(key, 8 * n_layers + 16))
    p = {
        "word_emb": nrm(next(keys), (vocab, hidden), jnp.float32),
        "pos_emb": nrm(next(keys), (max_pos, hidden), jnp.float32),
        "type_emb": nrm(next(keys), (1, hidden), jnp.float32),
        "emb_ln_g": jnp.ones((hidden,), jnp.float32),
        "emb_ln_b": jnp.zeros((hidden,), jnp.float32),
    }
    layers = []
    for _ in range(n_layers):
        wq = nrm(next(keys), (hidden, hidden))
        wk = nrm(next(keys), (hidden, hidden))
        wv = nrm(next(keys), (hidden, hidden))
        layers.append({
            "wqkv": jnp.concatenate([wq, wk, wv], axis=1),   # fused (H, 3H) bf16
            "bqkv": jnp.zeros((3 * hidden,), jnp.float32),
            "wo": nrm(next(keys), (hidden, hidden)),
            "bo": jnp.zeros((hidden,), jnp.float32),
            "wi": nrm(next(keys), (hidden, inter)),
            "bi": jnp.zeros((inter,), jnp.float32),
            "wout": nrm(next(keys), (inter, hidden)),
            "bout": jnp.zeros((hidden,), jnp.float32),
            "ln1_g": jnp.ones((hidden,), jnp.float32),
            "ln1_b": jnp.zeros((hidden,), jnp.float32),
            "ln2_g": jnp.ones((hidden,), jnp.float32),
            "ln2_b": jnp.zeros((hidden,), jnp.float32),
        })
    p["layers"] = layers
    p["pooler_w"] = nrm(next(keys), (hidden, hidden))
    p["pooler_b"] = jnp.zeros((hidden,), jnp.float32)
    p["cls_w"] = nrm(next(keys), (hidden, n_labels))
    p["cls_b"] = jnp.zeros((n_labels,), jnp.float32)
    return p


def encoder_layer(h, L, bias, B, S, H, nh):
    # fused Q|K|V projection: one matmul reads h once
    qkv = linear(h, L["wqkv"], L["bqkv"])                     # (B*S, 3H) bf16
    ctx = attention(qkv.reshape(B, S, 3 * H), bias, nh)       # (B, S, H) bf16

    # Wo projection fused with residual-add + LayerNorm (no HBM round-trip)
    h = linear_res_ln(ctx.reshape(B * S, H), L["wo"], L["bo"],
                      h, L["ln1_g"], L["ln1_b"])

    ffn = linear(h, L["wi"], L["bi"], act="gelu")
    # Wout projection fused with residual-add + LayerNorm
    h = linear_res_ln(ffn, L["wout"], L["bout"], h, L["ln2_g"], L["ln2_b"])
    return h


def roberta_multilabel_forward(params, input_ids, att_mask, *, n_heads):
    B, S = input_ids.shape
    H = params["word_emb"].shape[1]
    pad_id = 1

    # RoBERTa-style position ids (cumsum over non-pad tokens, offset by pad_id).
    not_pad = (input_ids != pad_id).astype(jnp.int32)
    pos_ids = jnp.cumsum(not_pad, axis=1) * not_pad + pad_id

    emb = (params["word_emb"][input_ids]
           + params["pos_emb"][pos_ids]
           + params["type_emb"][0][None, None, :])
    h = layernorm(emb.reshape(B * S, H).astype(jnp.float32),
                  params["emb_ln_g"], params["emb_ln_b"])      # bf16 out

    if att_mask is None:
        att_mask = jnp.ones((B, S), jnp.float32)
    bias = (1.0 - att_mask.astype(jnp.float32)) * -10000.0     # (B, S), f32
    bias = bias[:, None, :]                                    # (B, 1, S), per head

    for L in params["layers"]:
        h = encoder_layer(h, L, bias, B, S, H, n_heads)

    h = h.reshape(B, S, H)
    # pooler (dense + tanh on CLS token) fused with the classification head
    logits = pooler_classifier(h[:, 0, :], params["pooler_w"], params["pooler_b"],
                               params["cls_w"], params["cls_b"])
    return logits
    # TODO(synk): dropout layers are omitted (eval-mode forward, identity).


if __name__ == "__main__":
    # Small shapes chosen so head_dim=64 exercises the 128-lane head-group path.
    B, S, H = 2, 16, 256
    N_HEADS, INTER, N_LAYERS = 4, 512, 2
    VOCAB, N_LABELS = 100, 5

    key = jax.random.PRNGKey(0)
    pkey, ikey = jax.random.split(key)

    params = init_params(pkey, vocab=VOCAB, max_pos=S + 4, hidden=H,
                         n_layers=N_LAYERS, inter=INTER, n_labels=N_LABELS)

    input_ids = jax.random.randint(ikey, (B, S), 3, VOCAB, dtype=jnp.int32)
    att_mask = jnp.array([[1] * S, [1] * (S - 2) + [0] * 2], dtype=jnp.float32)

    fwd = jax.jit(functools.partial(roberta_multilabel_forward, n_heads=N_HEADS))
    logits = fwd(params, input_ids, att_mask)
    jax.block_until_ready(logits)

    assert logits.shape == (B, N_LABELS), logits.shape
    assert bool(jnp.all(jnp.isfinite(logits)))
    print("KERNEL_OK")
</pallas_src>

<mosaic_0001>
module attributes {stable_mosaic.version = 11 : i64} {
  func.func @_layernorm_kernel(%arg0: i32, %arg1: memref<32x256xf32, #tpu.memory_space<vmem>>, %arg2: memref<1x256xf32, #tpu.memory_space<vmem>>, %arg3: memref<1x256xf32, #tpu.memory_space<vmem>>, %arg4: memref<32x256xbf16, #tpu.memory_space<vmem>>) attributes {dimension_semantics = [#tpu.dimension_semantics<parallel>], iteration_bounds = array<i64: 1>, scalar_prefetch = 0 : i64, scratch_operands = 0 : i64, tpu.core_type = #tpu.core_type<tc>, window_params = [{transform_indices = @transform_0, window_bounds = array<i64: 32, 256>}, {pipeline_mode = #tpu.pipeline_mode<synchronous>, transform_indices = @transform_1, window_bounds = array<i64: 1, 256>}, {pipeline_mode = #tpu.pipeline_mode<synchronous>, transform_indices = @transform_2, window_bounds = array<i64: 1, 256>}, {transform_indices = @transform_3, window_bounds = array<i64: 32, 256>}]} {
    %c0 = arith.constant 0 : index
    %c0_0 = arith.constant 0 : index
    %0 = vector.load %arg1[%c0, %c0_0] : memref<32x256xf32, #tpu.memory_space<vmem>>, vector<32x256xf32>
    %cst = arith.constant dense<0.000000e+00> : vector<32xf32>
    %1 = vector.multi_reduction <add>, %0, %cst [1] : vector<32x256xf32> to vector<32xf32>
    %2 = vector.shape_cast %1 : vector<32xf32> to vector<32x1xf32>
    %cst_1 = arith.constant 2.560000e+02 : f32
    %3 = vector.broadcast %cst_1 : f32 to vector<32x1xf32>
    %4 = arith.divf %2, %3 : vector<32x1xf32>
    %5 = vector.broadcast %4 : vector<32x1xf32> to vector<32x256xf32>
    %6 = arith.subf %0, %5 : vector<32x256xf32>
    %7 = arith.mulf %6, %6 : vector<32x256xf32>
    %cst_2 = arith.constant dense<0.000000e+00> : vector<32xf32>
    %8 = vector.multi_reduction <add>, %7, %cst_2 [1] : vector<32x256xf32> to vector<32xf32>
    %9 = vector.shape_cast %8 : vector<32xf32> to vector<32x1xf32>
    %cst_3 = arith.constant 2.560000e+02 : f32
    %10 = vector.broadcast %cst_3 : f32 to vector<32x1xf32>
    %11 = arith.divf %9, %10 : vector<32x1xf32>
    %cst_4 = arith.constant 9.99999974E-6 : f32
    %12 = vector.broadcast %cst_4 : f32 to vector<32x1xf32>
    %13 = arith.addf %11, %12 : vector<32x1xf32>
    %14 = math.rsqrt %13 : vector<32x1xf32>
    %15 = vector.broadcast %14 : vector<32x1xf32> to vector<32x256xf32>
    %16 = arith.mulf %6, %15 : vector<32x256xf32>
    %c0_5 = arith.constant 0 : index
    %c0_6 = arith.constant 0 : index
    %17 = vector.load %arg2[%c0_5, %c0_6] : memref<1x256xf32, #tpu.memory_space<vmem>>, vector<1x256xf32>
    %18 = vector.broadcast %17 : vector<1x256xf32> to vector<32x256xf32>
    %19 = arith.mulf %16, %18 : vector<32x256xf32>
    %c0_7 = arith.constant 0 : index
    %c0_8 = arith.constant 0 : index
    %20 = vector.load %arg3[%c0_7, %c0_8] : memref<1x256xf32, #tpu.memory_space<vmem>>, vector<1x256xf32>
    %21 = vector.broadcast %20 : vector<1x256xf32> to vector<32x256xf32>
    %22 = arith.addf %19, %21 : vector<32x256xf32>
    %23 = arith.truncf %22 : vector<32x256xf32> to vector<32x256xbf16>
    %c0_9 = arith.constant 0 : index
    %c0_10 = arith.constant 0 : index
    %24 = vector.load %arg4[%c0_9, %c0_10] : memref<32x256xbf16, #tpu.memory_space<vmem>>, vector<32x256xbf16>
    tpu.vector_store %arg4[%c0_9, %c0_10], %23 {strides = array<i32>} : memref<32x256xbf16, #tpu.memory_space<vmem>>, vector<32x256xbf16>,
    return
  }
  func.func @transform_0(%arg0: i32) -> (i32, i32) {
    %c0_i32 = arith.constant 0 : i32
    %c0_i32_0 = arith.constant 0 : i32
    return %arg0, %c0_i32 : i32, i32
  }
  func.func @transform_1(%arg0: i32) -> (i32, i32) {
    %c0_i32 = arith.constant 0 : i32
    %c0_i32_0 = arith.constant 0 : i32
    %c0_i32_1 = arith.constant 0 : i32
    return %c0_i32, %c0_i32_0 : i32, i32
  }
  func.func @transform_2(%arg0: i32) -> (i32, i32) {
    %c0_i32 = arith.constant 0 : i32
    %c0_i32_0 = arith.constant 0 : i32
    %c0_i32_1 = arith.constant 0 : i32
    return %c0_i32, %c0_i32_0 : i32, i32
  }
  func.func @transform_3(%arg0: i32) -> (i32, i32) {
    %c0_i32 = arith.constant 0 : i32
    %c0_i32_0 = arith.constant 0 : i32
    return %arg0, %c0_i32 : i32, i32
  }
}

module attributes {stable_mosaic.version = 11 : i64} {
  func.func @_linear_kernel(%arg0: i32, %arg1: i32, %arg2: memref<32x256xbf16, #tpu.memory_space<vmem>>, %arg3: memref<256x768xbf16, #tpu.memory_space<vmem>>, %arg4: memref<1x768xf32, #tpu.memory_space<vmem>>, %arg5: memref<32x768xbf16, #tpu.memory_space<vmem>>) attributes {dimension_semantics = [#tpu.dimension_semantics<parallel>, #tpu.dimension_semantics<parallel>], iteration_bounds = array<i64: 1, 1>, scalar_prefetch = 0 : i64, scratch_operands = 0 : i64, tpu.core_type = #tpu.core_type<tc>, window_params = [{transform_indices = @transform_0, window_bounds = array<i64: 32, 256>}, {transform_indices = @transform_1, window_bounds = array<i64: 256, 768>}, {transform_indices = @transform_2, window_bounds = array<i64: 1, 768>}, {transform_indices = @transform_3, window_bounds = array<i64: 32, 768>}]} {
    %c0 = arith.constant 0 : index
    %c0_0 = arith.constant 0 : index
    %0 = vector.load %arg2[%c0, %c0_0] : memref<32x256xbf16, #tpu.memory_space<vmem>>, vector<32x256xbf16>
    %c0_1 = arith.constant 0 : index
    %c0_2 = arith.constant 0 : index
    %1 = vector.load %arg3[%c0_1, %c0_2] : memref<256x768xbf16, #tpu.memory_space<vmem>>, vector<256x768xbf16>
    %cst = arith.constant dense<0.000000e+00> : vector<32x768xf32>
    %2 = tpu.matmul %0, %1, %cst {dimension_numbers = #tpu.dot_dimension_numbers<[1], [0], [0], [1], [0, 0, 1, 1], [], []>} : vector<32x256xbf16>, vector<256x768xbf16>, vector<32x768xf32> -> vector<32x768xf32>
    %c0_3 = arith.constant 0 : index
    %c0_4 = arith.constant 0 : index
    %3 = vector.load %arg4[%c0_3, %c0_4] : memref<1x768xf32, #tpu.memory_space<vmem>>, vector<1x768xf32>
    %4 = vector.broadcast %3 : vector<1x768xf32> to vector<32x768xf32>
    %5 = arith.addf %2, %4 : vector<32x768xf32>
    %6 = arith.truncf %5 : vector<32x768xf32> to vector<32x768xbf16>
    %c0_5 = arith.constant 0 : index
    %c0_6 = arith.constant 0 : index
    %7 = vector.load %arg5[%c0_5, %c0_6] : memref<32x768xbf16, #tpu.memory_space<vmem>>, vector<32x768xbf16>
    tpu.vector_store %arg5[%c0_5, %c0_6], %6 {strides = array<i32>} : memref<32x768xbf16, #tpu.memory_space<vmem>>, vector<32x768xbf16>,
    return
  }
  func.func @transform_0(%arg0: i32, %arg1: i32) -> (i32, i32) {
    %c0_i32 = arith.constant 0 : i32
    %c0_i32_0 = arith.constant 0 : i32
    return %arg0, %c0_i32 : i32, i32
  }
  func.func @transform_1(%arg0: i32, %arg1: i32) -> (i32, i32) {
    %c0_i32 = arith.constant 0 : i32
    %c0_i32_0 = arith.constant 0 : i32
    return %c0_i32, %arg1 : i32, i32
  }
  func.func @transform_2(%arg0: i32, %arg1: i32) -> (i32, i32) {
    %c0_i32 = arith.constant 0 : i32
    %c0_i32_0 = arith.constant 0 : i32
    return %c0_i32, %arg1 : i32, i32
  }
  func.func @transform_3(%arg0: i32, %arg1: i32) -> (i32, i32) {
    %c0_i32 = arith.constant 0 : i32
    return %arg0, %arg1 : i32, i32
  }
}

module attributes {stable_mosaic.version = 11 : i64} {
  func.func @_attn_group_kernel(%arg0: i32, %arg1: i32, %arg2: memref<1x16x128xbf16, #tpu.memory_space<vmem>>, %arg3: memref<1x16x128xbf16, #tpu.memory_space<vmem>>, %arg4: memref<1x16x128xbf16, #tpu.memory_space<vmem>>, %arg5: memref<1x1x16xf32, #tpu.memory_space<vmem>>, %arg6: memref<1x16x128xbf16, #tpu.memory_space<vmem>>) attributes {dimension_semantics = [#tpu.dimension_semantics<parallel>, #tpu.dimension_semantics<parallel>], iteration_bounds = array<i64: 2, 2>, scalar_prefetch = 0 : i64, scratch_operands = 0 : i64, tpu.core_type = #tpu.core_type<tc>, window_params = [{transform_indices = @transform_0, window_bounds = array<i64: 1, 16, 128>}, {transform_indices = @transform_1, window_bounds = array<i64: 1, 16, 128>}, {transform_indices = @transform_2, window_bounds = array<i64: 1, 16, 128>}, {transform_indices = @transform_3, window_bounds = array<i64: 1, 1, 16>}, {transform_indices = @transform_4, window_bounds = array<i64: 1, 16, 128>}]} {
    %c0 = arith.constant 0 : index
    %c0_0 = arith.constant 0 : index
    %c0_1 = arith.constant 0 : index
    %0 = vector.load %arg2[%c0, %c0_0, %c0_1] : memref<1x16x128xbf16, #tpu.memory_space<vmem>>, vector<1x16x128xbf16>
    %1 = vector.shape_cast %0 : vector<1x16x128xbf16> to vector<16x128xbf16>
    %c0_2 = arith.constant 0 : index
    %c0_3 = arith.constant 0 : index
    %c0_4 = arith.constant 0 : index
    %2 = vector.load %arg3[%c0_2, %c0_3, %c0_4] : memref<1x16x128xbf16, #tpu.memory_space<vmem>>, vector<1x16x128xbf16>
    %3 = vector.shape_cast %2 : vector<1x16x128xbf16> to vector<16x128xbf16>
    %c0_5 = arith.constant 0 : index
    %c0_6 = arith.constant 0 : index
    %c0_7 = arith.constant 0 : index
    %4 = vector.load %arg4[%c0_5, %c0_6, %c0_7] : memref<1x16x128xbf16, #tpu.memory_space<vmem>>, vector<1x16x128xbf16>
    %5 = vector.shape_cast %4 : vector<1x16x128xbf16> to vector<16x128xbf16>
    %c0_8 = arith.constant 0 : index
    %c0_9 = arith.constant 0 : index
    %c0_10 = arith.constant 0 : index
    %6 = vector.load %arg5[%c0_8, %c0_9, %c0_10] : memref<1x1x16xf32, #tpu.memory_space<vmem>>, vector<1x1x16xf32>
    %7 = vector.shape_cast %6 : vector<1x1x16xf32> to vector<1x16xf32>
    %8 = vector.extract_strided_slice %1 {offsets = [0, 0], sizes = [16, 64], strides = [1, 1]} : vector<16x128xbf16> to vector<16x64xbf16>
    %9 = vector.extract_strided_slice %3 {offsets = [0, 0], sizes = [16, 64], strides = [1, 1]} : vector<16x128xbf16> to vector<16x64xbf16>
    %cst = arith.constant dense<0.000000e+00> : vector<16x16xf32>
    %10 = tpu.matmul %8, %9, %cst {dimension_numbers = #tpu.dot_dimension_numbers<[1], [1], [0], [0], [0, 0, 1, 0], [], []>} : vector<16x64xbf16>, vector<16x64xbf16>, vector<16x16xf32> -> vector<16x16xf32>
    %cst_11 = arith.constant 1.250000e-01 : f32
    %11 = vector.broadcast %cst_11 : f32 to vector<16x16xf32>
    %12 = arith.mulf %10, %11 : vector<16x16xf32>
    %13 = vector.broadcast %7 : vector<1x16xf32> to vector<16x16xf32>
    %14 = arith.addf %12, %13 : vector<16x16xf32>
    %cst_12 = arith.constant dense<0xFF800000> : vector<16xf32>
    %15 = vector.multi_reduction <maximumf>, %14, %cst_12 [1] : vector<16x16xf32> to vector<16xf32>
    %16 = vector.shape_cast %15 : vector<16xf32> to vector<16x1xf32>
    %17 = vector.broadcast %16 : vector<16x1xf32> to vector<16x16xf32>
    %18 = arith.subf %14, %17 : vector<16x16xf32>
    %19 = math.exp %18 : vector<16x16xf32>
    %cst_13 = arith.constant dense<0.000000e+00> : vector<16xf32>
    %20 = vector.multi_reduction <add>, %19, %cst_13 [1] : vector<16x16xf32> to vector<16xf32>
    %21 = vector.shape_cast %20 : vector<16xf32> to vector<16x1xf32>
    %22 = tpu.reciprocal %21 {approx = true} : vector<16x1xf32> -> vector<16x1xf32>
    %23 = vector.broadcast %22 : vector<16x1xf32> to vector<16x16xf32>
    %24 = arith.mulf %19, %23 : vector<16x16xf32>
    %25 = arith.truncf %24 : vector<16x16xf32> to vector<16x16xbf16>
    %26 = vector.extract_strided_slice %5 {offsets = [0, 0], sizes = [16, 64], strides = [1, 1]} : vector<16x128xbf16> to vector<16x64xbf16>
    %cst_14 = arith.constant dense<0.000000e+00> : vector<16x64xf32>
    %27 = tpu.matmul %25, %26, %cst_14 {dimension_numbers = #tpu.dot_dimension_numbers<[1], [0], [0], [1], [0, 0, 1, 1], [], []>} : vector<16x16xbf16>, vector<16x64xbf16>, vector<16x64xf32> -> vector<16x64xf32>
    %28 = vector.extract_strided_slice %1 {offsets = [0, 64], sizes = [16, 64], strides = [1, 1]} : vector<16x128xbf16> to vector<16x64xbf16>
    %29 = vector.extract_strided_slice %3 {offsets = [0, 64], sizes = [16, 64], strides = [1, 1]} : vector<16x128xbf16> to vector<16x64xbf16>
    %cst_15 = arith.constant dense<0.000000e+00> : vector<16x16xf32>
    %30 = tpu.matmul %28, %29, %cst_15 {dimension_numbers = #tpu.dot_dimension_numbers<[1], [1], [0], [0], [0, 0, 1, 0], [], []>} : vector<16x64xbf16>, vector<16x64xbf16>, vector<16x16xf32> -> vector<16x16xf32>
    %cst_16 = arith.constant 1.250000e-01 : f32
    %31 = vector.broadcast %cst_16 : f32 to vector<16x16xf32>
    %32 = arith.mulf %30, %31 : vector<16x16xf32>
    %33 = vector.broadcast %7 : vector<1x16xf32> to vector<16x16xf32>
    %34 = arith.addf %32, %33 : vector<16x16xf32>
    %cst_17 = arith.constant dense<0xFF800000> : vector<16xf32>
    %35 = vector.multi_reduction <maximumf>, %34, %cst_17 [1] : vector<16x16xf32> to vector<16xf32>
    %36 = vector.shape_cast %35 : vector<16xf32> to vector<16x1xf32>
    %37 = vector.broadcast %36 : vector<16x1xf32> to vector<16x16xf32>
    %38 = arith.subf %34, %37 : vector<16x16xf32>
    %39 = math.exp %38 : vector<16x16xf32>
    %cst_18 = arith.constant dense<0.000000e+00> : vector<16xf32>
    %40 = vector.multi_reduction <add>, %39, %cst_18 [1] : vector<16x16xf32> to vector<16xf32>
    %41 = vector.shape_cast %40 : vector<16xf32> to vector<16x1xf32>
    %42 = tpu.reciprocal %41 {approx = true} : vector<16x1xf32> -> vector<16x1xf32>
    %43 = vector.broadcast %42 : vector<16x1xf32> to vector<16x16xf32>
    %44 = arith.mulf %39, %43 : vector<16x16xf32>
    %45 = arith.truncf %44 : vector<16x16xf32> to vector<16x16xbf16>
    %46 = vector.extract_strided_slice %5 {offsets = [0, 64], sizes = [16, 64], strides = [1, 1]} : vector<16x128xbf16> to vector<16x64xbf16>
    %cst_19 = arith.constant dense<0.000000e+00> : vector<16x64xf32>
    %47 = tpu.matmul %45, %46, %cst_19 {dimension_numbers = #tpu.dot_dimension_numbers<[1], [0], [0], [1], [0, 0, 1, 1], [], []>} : vector<16x16xbf16>, vector<16x64xbf16>, vector<16x64xf32> -> vector<16x64xf32>
    %48 = tpu.concatenate %27, %47 in 1 : vector<16x64xf32>, vector<16x64xf32> -> vector<16x128xf32>
    %49 = arith.truncf %48 : vector<16x128xf32> to vector<16x128xbf16>
    %c0_20 = arith.constant 0 : index
    %c0_21 = arith.constant 0 : index
    %c0_22 = arith.constant 0 : index
    %50 = vector.load %arg6[%c0_20, %c0_21, %c0_22] : memref<1x16x128xbf16, #tpu.memory_space<vmem>>, vector<1x16x128xbf16>
    %51 = vector.shape_cast %50 : vector<1x16x128xbf16> to vector<16x128xbf16>
    %52 = vector.shape_cast %49 : vector<16x128xbf16> to vector<1x16x128xbf16>
    tpu.vector_store %arg6[%c0_20, %c0_21, %c0_22], %52 {strides = array<i32>} : memref<1x16x128xbf16, #tpu.memory_space<vmem>>, vector<1x16x128xbf16>,
    return
  }
  func.func @transform_0(%arg0: i32, %arg1: i32) -> (i32, i32, i32) {
    %c0_i32 = arith.constant 0 : i32
    %c0_i32_0 = arith.constant 0 : i32
    return %arg0, %c0_i32, %arg1 : i32, i32, i32
  }
  func.func @transform_1(%arg0: i32, %arg1: i32) -> (i32, i32, i32) {
    %c2_i32 = arith.constant 2 : i32
    %0 = arith.addi %c2_i32, %arg1 : i32
    %c0_i32 = arith.constant 0 : i32
    %c0_i32_0 = arith.constant 0 : i32
    return %arg0, %c0_i32, %0 : i32, i32, i32
  }
  func.func @transform_2(%arg0: i32, %arg1: i32) -> (i32, i32, i32) {
    %c4_i32 = arith.constant 4 : i32
    %0 = arith.addi %c4_i32, %arg1 : i32
    %c0_i32 = arith.constant 0 : i32
    %c0_i32_0 = arith.constant 0 : i32
    return %arg0, %c0_i32, %0 : i32, i32, i32
  }
  func.func @transform_3(%arg0: i32, %arg1: i32) -> (i32, i32, i32) {
    %c0_i32 = arith.constant 0 : i32
    %c0_i32_0 = arith.constant 0 : i32
    %c0_i32_1 = arith.constant 0 : i32
    return %arg0, %c0_i32, %c0_i32_0 : i32, i32, i32
  }
  func.func @transform_4(%arg0: i32, %arg1: i32) -> (i32, i32, i32) {
    %c0_i32 = arith.constant 0 : i32
    %c0_i32_0 = arith.constant 0 : i32
    return %arg0, %c0_i32, %arg1 : i32, i32, i32
  }
}

module attributes {stable_mosaic.version = 11 : i64} {
  func.func @_linear_res_ln_kernel(%arg0: i32, %arg1: memref<32x256xbf16, #tpu.memory_space<vmem>>, %arg2: memref<256x256xbf16, #tpu.memory_space<vmem>>, %arg3: memref<1x256xf32, #tpu.memory_space<vmem>>, %arg4: memref<32x256xbf16, #tpu.memory_space<vmem>>, %arg5: memref<1x256xf32, #tpu.memory_space<vmem>>, %arg6: memref<1x256xf32, #tpu.memory_space<vmem>>, %arg7: memref<32x256xbf16, #tpu.memory_space<vmem>>) attributes {dimension_semantics = [#tpu.dimension_semantics<parallel>], iteration_bounds = array<i64: 1>, scalar_prefetch = 0 : i64, scratch_operands = 0 : i64, tpu.core_type = #tpu.core_type<tc>, window_params = [{transform_indices = @transform_0, window_bounds = array<i64: 32, 256>}, {pipeline_mode = #tpu.pipeline_mode<synchronous>, transform_indices = @transform_1, window_bounds = array<i64: 256, 256>}, {pipeline_mode = #tpu.pipeline_mode<synchronous>, transform_indices = @transform_2, window_bounds = array<i64: 1, 256>}, {transform_indices = @transform_3, window_bounds = array<i64: 32, 256>}, {pipeline_mode = #tpu.pipeline_mode<synchronous>, transform_indices = @transform_4, window_bounds = array<i64: 1, 256>}, {pipeline_mode = #tpu.pipeline_mode<synchronous>, transform_indices = @transform_5, window_bounds = array<i64: 1, 256>}, {transform_indices = @transform_6, window_bounds = array<i64: 32, 256>}]} {
    %c0 = arith.constant 0 : index
    %c0_0 = arith.constant 0 : index
    %0 = vector.load %arg1[%c0, %c0_0] : memref<32x256xbf16, #tpu.memory_space<vmem>>, vector<32x256xbf16>
    %c0_1 = arith.constant 0 : index
    %c0_2 = arith.constant 0 : index
    %1 = vector.load %arg2[%c0_1, %c0_2] : memref<256x256xbf16, #tpu.memory_space<vmem>>, vector<256x256xbf16>
    %cst = arith.constant dense<0.000000e+00> : vector<32x256xf32>
    %2 = tpu.matmul %0, %1, %cst {dimension_numbers = #tpu.dot_dimension_numbers<[1], [0], [0], [1], [0, 0, 1, 1], [], []>} : vector<32x256xbf16>, vector<256x256xbf16>, vector<32x256xf32> -> vector<32x256xf32>
    %c0_3 = arith.constant 0 : index
    %c0_4 = arith.constant 0 : index
    %3 = vector.load %arg3[%c0_3, %c0_4] : memref<1x256xf32, #tpu.memory_space<vmem>>, vector<1x256xf32>
    %4 = vector.broadcast %3 : vector<1x256xf32> to vector<32x256xf32>
    %5 = arith.addf %2, %4 : vector<32x256xf32>
    %c0_5 = arith.constant 0 : index
    %c0_6 = arith.constant 0 : index
    %6 = vector.load %arg4[%c0_5, %c0_6] : memref<32x256xbf16, #tpu.memory_space<vmem>>, vector<32x256xbf16>
    %7 = arith.extf %6 : vector<32x256xbf16> to vector<32x256xf32>
    %8 = arith.addf %5, %7 : vector<32x256xf32>
    %cst_7 = arith.constant dense<0.000000e+00> : vector<32xf32>
    %9 = vector.multi_reduction <add>, %8, %cst_7 [1] : vector<32x256xf32> to vector<32xf32>
    %10 = vector.shape_cast %9 : vector<32xf32> to vector<32x1xf32>
    %cst_8 = arith.constant 2.560000e+02 : f32
    %11 = vector.broadcast %cst_8 : f32 to vector<32x1xf32>
    %12 = arith.divf %10, %11 : vector<32x1xf32>
    %13 = vector.broadcast %12 : vector<32x1xf32> to vector<32x256xf32>
    %14 = arith.subf %8, %13 : vector<32x256xf32>
    %15 = arith.mulf %14, %14 : vector<32x256xf32>
    %cst_9 = arith.constant dense<0.000000e+00> : vector<32xf32>
    %16 = vector.multi_reduction <add>, %15, %cst_9 [1] : vector<32x256xf32> to vector<32xf32>
    %17 = vector.shape_cast %16 : vector<32xf32> to vector<32x1xf32>
    %cst_10 = arith.constant 2.560000e+02 : f32
    %18 = vector.broadcast %cst_10 : f32 to vector<32x1xf32>
    %19 = arith.divf %17, %18 : vector<32x1xf32>
    %cst_11 = arith.constant 9.99999974E-6 : f32
    %20 = vector.broadcast %cst_11 : f32 to vector<32x1xf32>
    %21 = arith.addf %19, %20 : vector<32x1xf32>
    %22 = math.rsqrt %21 : vector<32x1xf32>
    %23 = vector.broadcast %22 : vector<32x1xf32> to vector<32x256xf32>
    %24 = arith.mulf %14, %23 : vector<32x256xf32>
    %c0_12 = arith.constant 0 : index
    %c0_13 = arith.constant 0 : index
    %25 = vector.load %arg5[%c0_12, %c0_13] : memref<1x256xf32, #tpu.memory_space<vmem>>, vector<1x256xf32>
    %26 = vector.broadcast %25 : vector<1x256xf32> to vector<32x256xf32>
    %27 = arith.mulf %24, %26 : vector<32x256xf32>
    %c0_14 = arith.constant 0 : index
    %c0_15 = arith.constant 0 : index
    %28 = vector.load %arg6[%c0_14, %c0_15] : memref<1x256xf32, #tpu.memory_space<vmem>>, vector<1x256xf32>
    %29 = vector.broadcast %28 : vector<1x256xf32> to vector<32x256xf32>
    %30 = arith.addf %27, %29 : vector<32x256xf32>
    %31 = arith.truncf %30 : vector<32x256xf32> to vector<32x256xbf16>
    %c0_16 = arith.constant 0 : index
    %c0_17 = arith.constant 0 : index
    %32 = vector.load %arg7[%c0_16, %c0_17] : memref<32x256xbf16, #tpu.memory_space<vmem>>, vector<32x256xbf16>
    tpu.vector_store %arg7[%c0_16, %c0_17], %31 {strides = array<i32>} : memref<32x256xbf16, #tpu.memory_space<vmem>>, vector<32x256xbf16>,
    return
  }
  func.func @transform_0(%arg0: i32) -> (i32, i32) {
    %c0_i32 = arith.constant 0 : i32
    %c0_i32_0 = arith.constant 0 : i32
    return %arg0, %c0_i32 : i32, i32
  }
  func.func @transform_1(%arg0: i32) -> (i32, i32) {
    %c0_i32 = arith.constant 0 : i32
    %c0_i32_0 = arith.constant 0 : i32
    %c0_i32_1 = arith.constant 0 : i32
    return %c0_i32, %c0_i32_0 : i32, i32
  }
  func.func @transform_2(%arg0: i32) -> (i32, i32) {
    %c0_i32 = arith.constant 0 : i32
    %c0_i32_0 = arith.constant 0 : i32
    %c0_i32_1 = arith.constant 0 : i32
    return %c0_i32, %c0_i32_0 : i32, i32
  }
  func.func @transform_3(%arg0: i32) -> (i32, i32) {
    %c0_i32 = arith.constant 0 : i32
    %c0_i32_0 = arith.constant 0 : i32
    return %arg0, %c0_i32 : i32, i32
  }
  func.func @transform_4(%arg0: i32) -> (i32, i32) {
    %c0_i32 = arith.constant 0 : i32
    %c0_i32_0 = arith.constant 0 : i32
    %c0_i32_1 = arith.constant 0 : i32
    return %c0_i32, %c0_i32_0 : i32, i32
  }
  func.func @transform_5(%arg0: i32) -> (i32, i32) {
    %c0_i32 = arith.constant 0 : i32
    %c0_i32_0 = arith.constant 0 : i32
    %c0_i32_1 = arith.constant 0 : i32
    return %c0_i32, %c0_i32_0 : i32, i32
  }
  func.func @transform_6(%arg0: i32) -> (i32, i32) {
    %c0_i32 = arith.constant 0 : i32
    %c0_i32_0 = arith.constant 0 : i32
    return %arg0, %c0_i32 : i32, i32
  }
}

module attributes {stable_mosaic.version = 11 : i64} {
  func.func @_linear_kernel(%arg0: i32, %arg1: i32, %arg2: memref<32x256xbf16, #tpu.memory_space<vmem>>, %arg3: memref<256x512xbf16, #tpu.memory_space<vmem>>, %arg4: memref<1x512xf32, #tpu.memory_space<vmem>>, %arg5: memref<32x512xbf16, #tpu.memory_space<vmem>>) attributes {dimension_semantics = [#tpu.dimension_semantics<parallel>, #tpu.dimension_semantics<parallel>], iteration_bounds = array<i64: 1, 1>, scalar_prefetch = 0 : i64, scratch_operands = 0 : i64, tpu.core_type = #tpu.core_type<tc>, window_params = [{transform_indices = @transform_0, window_bounds = array<i64: 32, 256>}, {transform_indices = @transform_1, window_bounds = array<i64: 256, 512>}, {transform_indices = @transform_2, window_bounds = array<i64: 1, 512>}, {transform_indices = @transform_3, window_bounds = array<i64: 32, 512>}]} {
    %c0 = arith.constant 0 : index
    %c0_0 = arith.constant 0 : index
    %0 = vector.load %arg2[%c0, %c0_0] : memref<32x256xbf16, #tpu.memory_space<vmem>>, vector<32x256xbf16>
    %c0_1 = arith.constant 0 : index
    %c0_2 = arith.constant 0 : index
    %1 = vector.load %arg3[%c0_1, %c0_2] : memref<256x512xbf16, #tpu.memory_space<vmem>>, vector<256x512xbf16>
    %cst = arith.constant dense<0.000000e+00> : vector<32x512xf32>
    %2 = tpu.matmul %0, %1, %cst {dimension_numbers = #tpu.dot_dimension_numbers<[1], [0], [0], [1], [0, 0, 1, 1], [], []>} : vector<32x256xbf16>, vector<256x512xbf16>, vector<32x512xf32> -> vector<32x512xf32>
    %c0_3 = arith.constant 0 : index
    %c0_4 = arith.constant 0 : index
    %3 = vector.load %arg4[%c0_3, %c0_4] : memref<1x512xf32, #tpu.memory_space<vmem>>, vector<1x512xf32>
    %4 = vector.broadcast %3 : vector<1x512xf32> to vector<32x512xf32>
    %5 = arith.addf %2, %4 : vector<32x512xf32>
    %cst_5 = arith.constant 5.000000e-01 : f32
    %6 = vector.broadcast %cst_5 : f32 to vector<32x512xf32>
    %7 = arith.mulf %6, %5 : vector<32x512xf32>
    %cst_6 = arith.constant 0.707106769 : f32
    %8 = vector.broadcast %cst_6 : f32 to vector<32x512xf32>
    %9 = arith.mulf %5, %8 : vector<32x512xf32>
    %10 = math.erf %9 : vector<32x512xf32>
    %cst_7 = arith.constant 1.000000e+00 : f32
    %11 = vector.broadcast %cst_7 : f32 to vector<32x512xf32>
    %12 = arith.addf %11, %10 : vector<32x512xf32>
    %13 = arith.mulf %7, %12 : vector<32x512xf32>
    %14 = arith.truncf %13 : vector<32x512xf32> to vector<32x512xbf16>
    %c0_8 = arith.constant 0 : index
    %c0_9 = arith.constant 0 : index
    %15 = vector.load %arg5[%c0_8, %c0_9] : memref<32x512xbf16, #tpu.memory_space<vmem>>, vector<32x512xbf16>
    tpu.vector_store %arg5[%c0_8, %c0_9], %14 {strides = array<i32>} : memref<32x512xbf16, #tpu.memory_space<vmem>>, vector<32x512xbf16>,
    return
  }
  func.func @transform_0(%arg0: i32, %arg1: i32) -> (i32, i32) {
    %c0_i32 = arith.constant 0 : i32
    %c0_i32_0 = arith.constant 0 : i32
    return %arg0, %c0_i32 : i32, i32
  }
  func.func @transform_1(%arg0: i32, %arg1: i32) -> (i32, i32) {
    %c0_i32 = arith.constant 0 : i32
    %c0_i32_0 = arith.constant 0 : i32
    return %c0_i32, %arg1 : i32, i32
  }
  func.func @transform_2(%arg0: i32, %arg1: i32) -> (i32, i32) {
    %c0_i32 = arith.constant 0 : i32
    %c0_i32_0 = arith.constant 0 : i32
    return %c0_i32, %arg1 : i32, i32
  }
  func.func @transform_3(%arg0: i32, %arg1: i32) -> (i32, i32) {
    %c0_i32 = arith.constant 0 : i32
    return %arg0, %arg1 : i32, i32
  }
}

module attributes {stable_mosaic.version = 11 : i64} {
  func.func @_linear_res_ln_kernel(%arg0: i32, %arg1: memref<32x512xbf16, #tpu.memory_space<vmem>>, %arg2: memref<512x256xbf16, #tpu.memory_space<vmem>>, %arg3: memref<1x256xf32, #tpu.memory_space<vmem>>, %arg4: memref<32x256xbf16, #tpu.memory_space<vmem>>, %arg5: memref<1x256xf32, #tpu.memory_space<vmem>>, %arg6: memref<1x256xf32, #tpu.memory_space<vmem>>, %arg7: memref<32x256xbf16, #tpu.memory_space<vmem>>) attributes {dimension_semantics = [#tpu.dimension_semantics<parallel>], iteration_bounds = array<i64: 1>, scalar_prefetch = 0 : i64, scratch_operands = 0 : i64, tpu.core_type = #tpu.core_type<tc>, window_params = [{transform_indices = @transform_0, window_bounds = array<i64: 32, 512>}, {pipeline_mode = #tpu.pipeline_mode<synchronous>, transform_indices = @transform_1, window_bounds = array<i64: 512, 256>}, {pipeline_mode = #tpu.pipeline_mode<synchronous>, transform_indices = @transform_2, window_bounds = array<i64: 1, 256>}, {transform_indices = @transform_3, window_bounds = array<i64: 32, 256>}, {pipeline_mode = #tpu.pipeline_mode<synchronous>, transform_indices = @transform_4, window_bounds = array<i64: 1, 256>}, {pipeline_mode = #tpu.pipeline_mode<synchronous>, transform_indices = @transform_5, window_bounds = array<i64: 1, 256>}, {transform_indices = @transform_6, window_bounds = array<i64: 32, 256>}]} {
    %c0 = arith.constant 0 : index
    %c0_0 = arith.constant 0 : index
    %0 = vector.load %arg1[%c0, %c0_0] : memref<32x512xbf16, #tpu.memory_space<vmem>>, vector<32x512xbf16>
    %c0_1 = arith.constant 0 : index
    %c0_2 = arith.constant 0 : index
    %1 = vector.load %arg2[%c0_1, %c0_2] : memref<512x256xbf16, #tpu.memory_space<vmem>>, vector<512x256xbf16>
    %cst = arith.constant dense<0.000000e+00> : vector<32x256xf32>
    %2 = tpu.matmul %0, %1, %cst {dimension_numbers = #tpu.dot_dimension_numbers<[1], [0], [0], [1], [0, 0, 1, 1], [], []>} : vector<32x512xbf16>, vector<512x256xbf16>, vector<32x256xf32> -> vector<32x256xf32>
    %c0_3 = arith.constant 0 : index
    %c0_4 = arith.constant 0 : index
    %3 = vector.load %arg3[%c0_3, %c0_4] : memref<1x256xf32, #tpu.memory_space<vmem>>, vector<1x256xf32>
    %4 = vector.broadcast %3 : vector<1x256xf32> to vector<32x256xf32>
    %5 = arith.addf %2, %4 : vector<32x256xf32>
    %c0_5 = arith.constant 0 : index
    %c0_6 = arith.constant 0 : index
    %6 = vector.load %arg4[%c0_5, %c0_6] : memref<32x256xbf16, #tpu.memory_space<vmem>>, vector<32x256xbf16>
    %7 = arith.extf %6 : vector<32x256xbf16> to vector<32x256xf32>
    %8 = arith.addf %5, %7 : vector<32x256xf32>
    %cst_7 = arith.constant dense<0.000000e+00> : vector<32xf32>
    %9 = vector.multi_reduction <add>, %8, %cst_7 [1] : vector<32x256xf32> to vector<32xf32>
    %10 = vector.shape_cast %9 : vector<32xf32> to vector<32x1xf32>
    %cst_8 = arith.constant 2.560000e+02 : f32
    %11 = vector.broadcast %cst_8 : f32 to vector<32x1xf32>
    %12 = arith.divf %10, %11 : vector<32x1xf32>
    %13 = vector.broadcast %12 : vector<32x1xf32> to vector<32x256xf32>
    %14 = arith.subf %8, %13 : vector<32x256xf32>
    %15 = arith.mulf %14, %14 : vector<32x256xf32>
    %cst_9 = arith.constant dense<0.000000e+00> : vector<32xf32>
    %16 = vector.multi_reduction <add>, %15, %cst_9 [1] : vector<32x256xf32> to vector<32xf32>
    %17 = vector.shape_cast %16 : vector<32xf32> to vector<32x1xf32>
    %cst_10 = arith.constant 2.560000e+02 : f32
    %18 = vector.broadcast %cst_10 : f32 to vector<32x1xf32>
    %19 = arith.divf %17, %18 : vector<32x1xf32>
    %cst_11 = arith.constant 9.99999974E-6 : f32
    %20 = vector.broadcast %cst_11 : f32 to vector<32x1xf32>
    %21 = arith.addf %19, %20 : vector<32x1xf32>
    %22 = math.rsqrt %21 : vector<32x1xf32>
    %23 = vector.broadcast %22 : vector<32x1xf32> to vector<32x256xf32>
    %24 = arith.mulf %14, %23 : vector<32x256xf32>
    %c0_12 = arith.constant 0 : index
    %c0_13 = arith.constant 0 : index
    %25 = vector.load %arg5[%c0_12, %c0_13] : memref<1x256xf32, #tpu.memory_space<vmem>>, vector<1x256xf32>
    %26 = vector.broadcast %25 : vector<1x256xf32> to vector<32x256xf32>
    %27 = arith.mulf %24, %26 : vector<32x256xf32>
    %c0_14 = arith.constant 0 : index
    %c0_15 = arith.constant 0 : index
    %28 = vector.load %arg6[%c0_14, %c0_15] : memref<1x256xf32, #tpu.memory_space<vmem>>, vector<1x256xf32>
    %29 = vector.broadcast %28 : vector<1x256xf32> to vector<32x256xf32>
    %30 = arith.addf %27, %29 : vector<32x256xf32>
    %31 = arith.truncf %30 : vector<32x256xf32> to vector<32x256xbf16>
    %c0_16 = arith.constant 0 : index
    %c0_17 = arith.constant 0 : index
    %32 = vector.load %arg7[%c0_16, %c0_17] : memref<32x256xbf16, #tpu.memory_space<vmem>>, vector<32x256xbf16>
    tpu.vector_store %arg7[%c0_16, %c0_17], %31 {strides = array<i32>} : memref<32x256xbf16, #tpu.memory_space<vmem>>, vector<32x256xbf16>,
    return
  }
  func.func @transform_0(%arg0: i32) -> (i32, i32) {
    %c0_i32 = arith.constant 0 : i32
    %c0_i32_0 = arith.constant 0 : i32
    return %arg0, %c0_i32 : i32, i32
  }
  func.func @transform_1(%arg0: i32) -> (i32, i32) {
    %c0_i32 = arith.constant 0 : i32
    %c0_i32_0 = arith.constant 0 : i32
    %c0_i32_1 = arith.constant 0 : i32
    return %c0_i32, %c0_i32_0 : i32, i32
  }
  func.func @transform_2(%arg0: i32) -> (i32, i32) {
    %c0_i32 = arith.constant 0 : i32
    %c0_i32_0 = arith.constant 0 : i32
    %c0_i32_1 = arith.constant 0 : i32
    return %c0_i32, %c0_i32_0 : i32, i32
  }
  func.func @transform_3(%arg0: i32) -> (i32, i32) {
    %c0_i32 = arith.constant 0 : i32
    %c0_i32_0 = arith.constant 0 : i32
    return %arg0, %c0_i32 : i32, i32
  }
  func.func @transform_4(%arg0: i32) -> (i32, i32) {
    %c0_i32 = arith.constant 0 : i32
    %c0_i32_0 = arith.constant 0 : i32
    %c0_i32_1 = arith.constant 0 : i32
    return %c0_i32, %c0_i32_0 : i32, i32
  }
  func.func @transform_5(%arg0: i32) -> (i32, i32) {
    %c0_i32 = arith.constant 0 : i32
    %c0_i32_0 = arith.constant 0 : i32
    %c0_i32_1 = arith.constant 0 : i32
    return %c0_i32, %c0_i32_0 : i32, i32
  }
  func.func @transform_6(%arg0: i32) -> (i32, i32) {
    %c0_i32 = arith.constant 0 : i32
    %c0_i32_0 = arith.constant 0 : i32
    return %arg0, %c0_i32 : i32, i32
  }
}

module attributes {stable_mosaic.version = 11 : i64} {
  func.func @_head_kernel(%arg0: memref<2x256xbf16, #tpu.memory_space<vmem>>, %arg1: memref<256x256xbf16, #tpu.memory_space<vmem>>, %arg2: memref<1x256xf32, #tpu.memory_space<vmem>>, %arg3: memref<256x5xbf16, #tpu.memory_space<vmem>>, %arg4: memref<1x5xf32, #tpu.memory_space<vmem>>, %arg5: memref<2x5xf32, #tpu.memory_space<vmem>>) attributes {dimension_semantics = [], scalar_prefetch = 0 : i64, scratch_operands = 0 : i64, tpu.core_type = #tpu.core_type<tc>} {
    %c0 = arith.constant 0 : index
    %c0_0 = arith.constant 0 : index
    %0 = vector.load %arg0[%c0, %c0_0] : memref<2x256xbf16, #tpu.memory_space<vmem>>, vector<2x256xbf16>
    %c0_1 = arith.constant 0 : index
    %c0_2 = arith.constant 0 : index
    %1 = vector.load %arg1[%c0_1, %c0_2] : memref<256x256xbf16, #tpu.memory_space<vmem>>, vector<256x256xbf16>
    %cst = arith.constant dense<0.000000e+00> : vector<2x256xf32>
    %2 = tpu.matmul %0, %1, %cst {dimension_numbers = #tpu.dot_dimension_numbers<[1], [0], [0], [1], [0, 0, 1, 1], [], []>} : vector<2x256xbf16>, vector<256x256xbf16>, vector<2x256xf32> -> vector<2x256xf32>
    %c0_3 = arith.constant 0 : index
    %c0_4 = arith.constant 0 : index
    %3 = vector.load %arg2[%c0_3, %c0_4] : memref<1x256xf32, #tpu.memory_space<vmem>>, vector<1x256xf32>
    %4 = vector.broadcast %3 : vector<1x256xf32> to vector<2x256xf32>
    %5 = arith.addf %2, %4 : vector<2x256xf32>
    %6 = math.tanh %5 : vector<2x256xf32>
    %7 = arith.truncf %6 : vector<2x256xf32> to vector<2x256xbf16>
    %c0_5 = arith.constant 0 : index
    %c0_6 = arith.constant 0 : index
    %8 = vector.load %arg3[%c0_5, %c0_6] : memref<256x5xbf16, #tpu.memory_space<vmem>>, vector<256x5xbf16>
    %cst_7 = arith.constant dense<0.000000e+00> : vector<2x5xf32>
    %9 = tpu.matmul %7, %8, %cst_7 {dimension_numbers = #tpu.dot_dimension_numbers<[1], [0], [0], [1], [0, 0, 1, 1], [], []>} : vector<2x256xbf16>, vector<256x5xbf16>, vector<2x5xf32> -> vector<2x5xf32>
    %c0_8 = arith.constant 0 : index
    %c0_9 = arith.constant 0 : index
    %10 = vector.load %arg4[%c0_8, %c0_9] : memref<1x5xf32, #tpu.memory_space<vmem>>, vector<1x5xf32>
    %11 = vector.broadcast %10 : vector<1x5xf32> to vector<2x5xf32>
    %12 = arith.addf %9, %11 : vector<2x5xf32>
    %c0_10 = arith.constant 0 : index
    %c0_11 = arith.constant 0 : index
    %13 = vector.load %arg5[%c0_10, %c0_11] : memref<2x5xf32, #tpu.memory_space<vmem>>, vector<2x5xf32>
    tpu.vector_store %arg5[%c0_10, %c0_11], %12 {strides = array<i32>} : memref<2x5xf32, #tpu.memory_space<vmem>>, vector<2x5xf32>,
    return
  }
}

</mosaic_0001>

<llo_original>
// kernel: roberta_multilabel_forward.12
$region0: #{roberta_multilabel_forward.12}
  #allocation0 [shape = 'u32[]', space=smem, size = 0x4, offset = 0x4, fixed_abs, tag = 'smem constant byte address 0x4 - core index']
  #allocation1 [shape = 'u32[144,128]{1,0:T(1,128)}', space=vmem, size = 0x12000, scoped, tag = 'internal scratch']
  %s0 = inlined_call_operand.vmem [shape: f32[32,256], index: 0, kind: input, shape index: {}]
  %s1 = inlined_call_operand.vmem [shape: f32[1,256], index: 1, kind: input, shape index: {}]
  %s2 = inlined_call_operand.vmem [shape: f32[1,256], index: 2, kind: input, shape index: {}]
  %s3 = inlined_call_operand.vmem [shape: bf16[32,256], index: 3, kind: output, shape index: {}]
  %s4 = sld [smem:[#allocation0]]
  $region22: #{roberta_multilabel_forward.12} parent=0
    _
  %s6 = ssub.s32 1, %s4
  %s7 = scalar_select 0, %s6, %s4
  // Predicated region
  $region2: #{roberta_multilabel_forward.12} parent=0 // pred_check
    _
  $region3: #{roberta_multilabel_forward.12} parent=0 // pred_check_branch
    %9 = sbr.rel (0) target = $region5
  $region4: #{roberta_multilabel_forward.12} parent=0 // pred_region
    _
  $region5: #{roberta_multilabel_forward.12} parent=0 // pred_fallthru
    _
  // Predicated region
  $region6: #{roberta_multilabel_forward.12} parent=0 // pred_check
    _
  $region7: #{roberta_multilabel_forward.12} parent=0 // pred_check_branch
    %11 = sbr.rel (0) target = $region9
  $region8: #{roberta_multilabel_forward.12} parent=0 // pred_region
    _
  $region9: #{roberta_multilabel_forward.12} parent=0 // pred_fallthru
    _
  // Predicated region
  $region10: #{roberta_multilabel_forward.12} parent=0 // pred_check
    _
  $region11: #{roberta_multilabel_forward.12} parent=0 // pred_check_branch
    %13 = sbr.rel (0) target = $region13
  $region12: #{roberta_multilabel_forward.12} parent=0 // pred_region
    _
  $region13: #{roberta_multilabel_forward.12} parent=0 // pred_fallthru
    _
  %v14 = vld [vmem:[%s0] sm:$0xff]
  %v15 = vld [vmem:[%s0 + $0x8] sm:$0xff]
  %v16 = vld [vmem:[%s0 + $0x10] sm:$0xff]
  %v17 = vld [vmem:[%s0 + $0x18] sm:$0xff]
  %v18 = vld [vmem:[%s0 + $0x20] sm:$0xff]
  %v19 = vld [vmem:[%s0 + $0x28] sm:$0xff]
  %v20 = vld [vmem:[%s0 + $0x30] sm:$0xff]
  %v21 = vld [vmem:[%s0 + $0x38] sm:$0xff]
  %v22 = vadd.f32 %v14, %v15
  %23 = vadd.xlane.f32.xlu0 %v22
  %v24 = vpop.xlane.xlu0 %23
  %v25 = vadd.f32 %v16, %v17
  %26 = vadd.xlane.f32.xlu0 %v25
  %v27 = vpop.xlane.xlu0 %26
  %v28 = vadd.f32 %v18, %v19
  %29 = vadd.xlane.f32.xlu0 %v28
  %v30 = vpop.xlane.xlu0 %29
  %v31 = vadd.f32 %v20, %v21
  %32 = vadd.xlane.f32.xlu0 %v31
  %v33 = vpop.xlane.xlu0 %32
  %v34 = vrcp.pop 256.0
  %v35 = vmul.f32 %v24, %v34
  %v36 = vmul.f32 %v27, %v34
  %v37 = vmul.f32 %v30, %v34
  %v38 = vmul.f32 %v33, %v34
  %v39 = vsub.f32 %v14, %v35
  %v40 = vsub.f32 %v15, %v35
  %v41 = vsub.f32 %v16, %v36
  %v42 = vsub.f32 %v17, %v36
  %v43 = vsub.f32 %v18, %v37
  %v44 = vsub.f32 %v19, %v37
  %v45 = vsub.f32 %v20, %v38
  %v46 = vsub.f32 %v21, %v38
  %v47 = vmul.f32 %v39, %v39
  %v48 = vmul.f32 %v40, %v40
  %v49 = vmul.f32 %v41, %v41
  %v50 = vmul.f32 %v42, %v42
  %v51 = vmul.f32 %v43, %v43
  %v52 = vmul.f32 %v44, %v44
  %v53 = vmul.f32 %v45, %v45
  %v54 = vmul.f32 %v46, %v46
  %v55 = vadd.f32 %v47, %v48
  %56 = vadd.xlane.f32.xlu0 %v55
  %v57 = vpop.xlane.xlu0 %56
  %v58 = vadd.f32 %v49, %v50
  %59 = vadd.xlane.f32.xlu0 %v58
  %v60 = vpop.xlane.xlu0 %59
  %v61 = vadd.f32 %v51, %v52
  %62 = vadd.xlane.f32.xlu0 %v61
  %v63 = vpop.xlane.xlu0 %62
  %v64 = vadd.f32 %v53, %v54
  %65 = vadd.xlane.f32.xlu0 %v64
  %v66 = vpop.xlane.xlu0 %65
  %v67 = vmul.f32 %v57, %v34
  %v68 = vmul.f32 %v60, %v34
  %v69 = vmul.f32 %v63, %v34
  %v70 = vmul.f32 %v66, %v34
  %v71 = vadd.f32 %v67, 1e-05
  %v72 = vadd.f32 %v68, 1e-05
  %v73 = vadd.f32 %v69, 1e-05
  %v74 = vadd.f32 %v70, 1e-05
  %v75 = vrsqrt.pop %v71
  %v76 = vrsqrt.pop %v72
  %v77 = vrsqrt.pop %v73
  %v78 = vrsqrt.pop %v74
  %v79 = vmul.f32 %v39, %v75
  %v80 = vmul.f32 %v40, %v75
  %v81 = vmul.f32 %v41, %v76
  %v82 = vmul.f32 %v42, %v76
  %v83 = vmul.f32 %v43, %v77
  %v84 = vmul.f32 %v44, %v77
  %v85 = vmul.f32 %v45, %v78
  %v86 = vmul.f32 %v46, %v78
  %v87 = vld [vmem:[%s1] sm:$0x3]
  %v89 = vlaneseq
  %v90 = vshrl.u32 %v89, 7
  %v91 = vsub.s32 0, %v90
  %v92 = vrot.slane %v87, %v91
  %v93 = vlaneseq
  %v94 = vshrl.u32 %v93, 7
  %v95 = vsub.s32 1, %v94
  %v96 = vrot.slane %v87, %v95
  %v99 = vmul.f32 %v79, %v92
  %v100 = vmul.f32 %v80, %v96
  %v101 = vmul.f32 %v81, %v92
  %v102 = vmul.f32 %v82, %v96
  %v103 = vmul.f32 %v83, %v92
  %v104 = vmul.f32 %v84, %v96
  %v105 = vmul.f32 %v85, %v92
  %v106 = vmul.f32 %v86, %v96
  %v107 = vld [vmem:[%s2] sm:$0x3]
  %v109 = vlaneseq
  %v110 = vshrl.u32 %v109, 7
  %v111 = vsub.s32 0, %v110
  %v112 = vrot.slane %v107, %v111
  %v113 = vlaneseq
  %v114 = vshrl.u32 %v113, 7
  %v115 = vsub.s32 1, %v114
  %v116 = vrot.slane %v107, %v115
  %v119 = vadd.f32 %v99, %v112
  %v120 = vadd.f32 %v100, %v116
  %v121 = vadd.f32 %v101, %v112
  %v122 = vadd.f32 %v102, %v116
  %v123 = vadd.f32 %v103, %v112
  %v124 = vadd.f32 %v104, %v116
  %v125 = vadd.f32 %v105, %v112
  %v126 = vadd.f32 %v106, %v116
  %v127 = vpack.c.bf16 %v121, %v119
  %v128 = vpack.c.bf16 %v122, %v120
  %v129 = vpack.c.bf16 %v125, %v123
  %v130 = vpack.c.bf16 %v126, %v124
  %v135 = vunpack.c.l.b16 %v127
  %v136 = vunpack.c.l.b16 %v128
  %v137 = vunpack.c.h.b16 %v127
  %v138 = vunpack.c.h.b16 %v128
  %v139 = vunpack.c.l.b16 %v129
  %v140 = vunpack.c.l.b16 %v130
  %v141 = vunpack.c.h.b16 %v129
  %v142 = vunpack.c.h.b16 %v130
  %v143 = vpack.c.b16 %v136, %v135
  %v144 = vpack.c.b16 %v138, %v137
  %v145 = vpack.c.b16 %v140, %v139
  %v146 = vpack.c.b16 %v142, %v141
  %151 = vst [vmem:[%s3] sm:$0xff] %v143
  %152 = vst [vmem:[%s3 + $0x8] sm:$0xff] %v144
  %153 = vst [vmem:[%s3 + $0x10] sm:$0xff] %v145
  %154 = vst [vmem:[%s3 + $0x18] sm:$0xff] %v146
  // Predicated region
  $region14: #{roberta_multilabel_forward.12} parent=0 // pred_check
    _
  $region15: #{roberta_multilabel_forward.12} parent=0 // pred_check_branch
    %156 = sbr.rel (0) target = $region17
  $region16: #{roberta_multilabel_forward.12} parent=0 // pred_region
    _
  $region17: #{roberta_multilabel_forward.12} parent=0 // pred_fallthru
    _
  // Predicated region
  $region18: #{roberta_multilabel_forward.12} parent=0 // pred_check
    _
  $region19: #{roberta_multilabel_forward.12} parent=0 // pred_check_branch
    %158 = sbr.rel (0) target = $region21
  $region20: #{roberta_multilabel_forward.12} parent=0 // pred_region
    _
  $region21: #{roberta_multilabel_forward.12} parent=0 // pred_fallthru
    _

// kernel: roberta_multilabel_forward.14
$region0: #{roberta_multilabel_forward.14}
  #allocation0 [shape = 'u32[]', space=smem, size = 0x4, offset = 0x4, fixed_abs, tag = 'smem constant byte address 0x4 - core index']
  #allocation1 [shape = 'u32[144,128]{1,0:T(1,128)}', space=vmem, size = 0x12000, scoped, tag = 'internal scratch']
  %s0 = inlined_call_operand.vmem [shape: bf16[2,16,768], index: 0, kind: input, shape index: {}, may-alias: {0,1,2}]
  %s1 = inlined_call_operand.vmem [shape: bf16[2,16,768], index: 1, kind: input, shape index: {}, may-alias: {0,1,2}]
  %s2 = inlined_call_operand.vmem [shape: bf16[2,16,768], index: 2, kind: input, shape index: {}, may-alias: {0,1,2}]
  %s3 = inlined_call_operand.vmem [shape: f32[2,1,16], index: 3, kind: input, shape index: {}]
  %s4 = inlined_call_operand.vmem [shape: bf16[2,16,256], index: 4, kind: output, shape index: {}]
  %s5 = sld [smem:[#allocation0]]
  $region209: #{roberta_multilabel_forward.14} parent=0
    _
  %s7 = ssub.s32 1, %s5
  %s8 = scalar_select 0, %s7, %s5
  $region1: #{roberta_multilabel_forward.14} parent=0
    #allocation2 [shape = 'u8[8192]{0}', space=vmem, size = 0x2000, scoped, tag = 'input window, operand 0']
    #allocation3 [shape = 'u8[8192]{0}', space=vmem, size = 0x2000, scoped, tag = 'input window, operand 1']
    #allocation4 [shape = 'u8[8192]{0}', space=vmem, size = 0x2000, scoped, tag = 'input window, operand 2']
    #allocation5 [shape = 'u8[8192]{0}', space=vmem, size = 0x2000, scoped, tag = 'output window, operand 0']
    loop: start=0, step=1, limit=6
    $region2: #{roberta_multilabel_forward.14} parent=1 // loop_pre_header
      _
    $region3: #{roberta_multilabel_forward.14} parent=1 // loop_header
      %s10 = sphi 0, %s14
      %p11 = scmp.ge.s32.totalorder %s10, 6
      %s17 = sphi 0, %s29
      %s18 = sphi 0, %s25
      %s19 = sphi 0, %s17
      %s20 = sphi 0, %s18
      %s21 = sphi 0, %s19
      %s22 = sphi 0, %s20
      %s34 = sphi 0, %s36
      %s37 = sphi 0, %s34
      %s38 = sphi 0, %s37
      %s54 = sphi 0, %s38
      %s64 = sphi 0, %s66
      %s67 = sphi 0, %s64
      %s68 = sphi 0, %s67
      %s84 = sphi 0, %s68
      %s94 = sphi 0, %s96
      %s97 = sphi 0, %s94
      %s98 = sphi 0, %s97
      %s114 = sphi 0, %s98
      %s120 = sphi 0, %s122
      %s123 = sphi 0, %s120
      %s124 = sphi 0, %s123
      %s140 = sphi 0, %s124
      %s148 = sphi 0, %s150
      %s151 = sphi 0, %s148
      %s152 = sphi 0, %s151
      %s168 = sphi 0, %s152
    $region4: #{roberta_multilabel_forward.14} parent=1 // loop_header_branch
      %13 = sbr.rel (%p11) target = $region8
    $region5: #{roberta_multilabel_forward.14} parent=1 // loop_body
      %s15 = ssub.s32 %s10, 1
      %s16 = ssub.s32 %s10, 2
      %s23 = sadd.s32 1, %s18
      %p24 = scmp.ge.s32.totalorder %s23, 2
      %s25 = scalar_select %p24, 0, %s23
      %s26 = sadd.s32 1, %s17
      %s27 = scalar_select %p24, %s26, %s17
      %p28 = scmp.ge.s32.totalorder %s27, 2
      %s29 = scalar_select %p28, 0, %s27
      %s30 = ssub.s32 %s17, %s29
      %s31 = ssub.s32 %s18, %s25
      %s32 = sor.u32 %s30, %s31
      %p33 = scmp.eq.s32.totalorder %s32, 0
      %s35 = sadd.s32 %s34, 1
      %s36 = scalar_select %p33, %s34, %s35
      %p39 = pneg %p33
      %p40 = scmp.eq.s32.totalorder %s10, 3
      %p41 = por %p39, %p40
      %p42 = scmp.ne.s32.totalorder %s34, %s37
      %p43 = scmp.eq.s32.totalorder %s10, 0
      %p44 = por %p42, %p43
      %p45 = scmp.ne.s32.totalorder %s34, %s37
      %p46 = scmp.eq.s32.totalorder %s15, 3
      %p47 = por %p45, %p46
      %p48 = scmp.ne.s32.totalorder %s37, %s38
      %p49 = scmp.eq.s32.totalorder %s15, 0
      %p50 = por %p48, %p49
      %p51 = scmp.ne.s32.totalorder %s37, %s38
      %p52 = scmp.eq.s32.totalorder %s16, 3
      %p53 = por %p51, %p52
      %p55 = scmp.ne.s32.totalorder %s38, %s54
      %p56 = scmp.eq.s32.totalorder %s16, 0
      %p57 = por %p55, %p56
      %s58 = sadd.s32 %s18, 2
      %s59 = sadd.s32 %s25, 2
      %s60 = ssub.s32 %s17, %s29
      %s61 = ssub.s32 %s58, %s59
      %s62 = sor.u32 %s60, %s61
      %p63 = scmp.eq.s32.totalorder %s62, 0
      %s65 = sadd.s32 %s64, 1
      %s66 = scalar_select %p63, %s64, %s65
      %p69 = pneg %p63
      %p70 = scmp.eq.s32.totalorder %s10, 3
      %p71 = por %p69, %p70
      %p72 = scmp.ne.s32.totalorder %s64, %s67
      %p73 = scmp.eq.s32.totalorder %s10, 0
      %p74 = por %p72, %p73
      %p75 = scmp.ne.s32.totalorder %s64, %s67
      %p76 = scmp.eq.s32.totalorder %s15, 3
      %p77 = por %p75, %p76
      %p78 = scmp.ne.s32.totalorder %s67, %s68
      %p79 = scmp.eq.s32.totalorder %s15, 0
      %p80 = por %p78, %p79
      %p81 = scmp.ne.s32.totalorder %s67, %s68
      %p82 = scmp.eq.s32.totalorder %s16, 3
      %p83 = por %p81, %p82
      %p85 = scmp.ne.s32.totalorder %s68, %s84
      %p86 = scmp.eq.s32.totalorder %s16, 0
      %p87 = por %p85, %p86
      %s88 = sadd.s32 %s18, 4
      %s89 = sadd.s32 %s25, 4
      %s90 = ssub.s32 %s17, %s29
      %s91 = ssub.s32 %s88, %s89
      %s92 = sor.u32 %s90, %s91
      %p93 = scmp.eq.s32.totalorder %s92, 0
      %s95 = sadd.s32 %s94, 1
      %s96 = scalar_select %p93, %s94, %s95
      %p99 = pneg %p93
      %p100 = scmp.eq.s32.totalorder %s10, 3
      %p101 = por %p99, %p100
      %p102 = scmp.ne.s32.totalorder %s94, %s97
      %p103 = scmp.eq.s32.totalorder %s10, 0
      %p104 = por %p102, %p103
      %p105 = scmp.ne.s32.totalorder %s94, %s97
      %p106 = scmp.eq.s32.totalorder %s15, 3
      %p107 = por %p105, %p106
      %p108 = scmp.ne.s32.totalorder %s97, %s98
      %p109 = scmp.eq.s32.totalorder %s15, 0
      %p110 = por %p108, %p109
      %p111 = scmp.ne.s32.totalorder %s97, %s98
      %p112 = scmp.eq.s32.totalorder %s16, 3
      %p113 = por %p111, %p112
      %p115 = scmp.ne.s32.totalorder %s98, %s114
      %p116 = scmp.eq.s32.totalorder %s16, 0
      %p117 = por %p115, %p116
      %s118 = ssub.s32 %s17, %s29
      %p119 = scmp.eq.s32.totalorder %s118, 0
      %s121 = sadd.s32 %s120, 1
      %s122 = scalar_select %p119, %s120, %s121
      %p125 = pneg %p119
      %p126 = scmp.eq.s32.totalorder %s10, 3
      %p127 = por %p125, %p126
      %p128 = scmp.ne.s32.totalorder %s120, %s123
      %p129 = scmp.eq.s32.totalorder %s10, 0
      %p130 = por %p128, %p129
      %p131 = scmp.ne.s32.totalorder %s120, %s123
      %p132 = scmp.eq.s32.totalorder %s15, 3
      %p133 = por %p131, %p132
      %p134 = scmp.ne.s32.totalorder %s123, %s124
      %p135 = scmp.eq.s32.totalorder %s15, 0
      %p136 = por %p134, %p135
      %p137 = scmp.ne.s32.totalorder %s123, %s124
      %p138 = scmp.eq.s32.totalorder %s16, 3
      %p139 = por %p137, %p138
      %p141 = scmp.ne.s32.totalorder %s124, %s140
      %p142 = scmp.eq.s32.totalorder %s16, 0
      %p143 = por %p141, %p142
      %s144 = ssub.s32 %s17, %s29
      %s145 = ssub.s32 %s18, %s25
      %s146 = sor.u32 %s144, %s145
      %p147 = scmp.eq.s32.totalorder %s146, 0
      %s149 = sadd.s32 %s148, 1
      %s150 = scalar_select %p147, %s148, %s149
      %p153 = pneg %p147
      %p154 = scmp.eq.s32.totalorder %s10, 3
      %p155 = por %p153, %p154
      %p156 = scmp.ne.s32.totalorder %s148, %s151
      %p157 = scmp.eq.s32.totalorder %s10, 0
      %p158 = por %p156, %p157
      %p159 = scmp.ne.s32.totalorder %s148, %s151
      %p160 = scmp.eq.s32.totalorder %s15, 3
      %p161 = por %p159, %p160
      %p162 = scmp.ne.s32.totalorder %s151, %s152
      %p163 = scmp.eq.s32.totalorder %s15, 0
      %p164 = por %p162, %p163
      %p165 = scmp.ne.s32.totalorder %s151, %s152
      %p166 = scmp.eq.s32.totalorder %s16, 3
      %p167 = por %p165, %p166
      %p169 = scmp.ne.s32.totalorder %s152, %s168
      %p170 = scmp.eq.s32.totalorder %s16, 0
      %p171 = por %p169, %p170
      %p172 = scmp.le.s32.totalorder 1, %s10
      %p173 = scmp.lt.s32.totalorder %s10, 5
      %p174 = pnand %p172, %p173
      %p175 = pneg %p174
      // Predicated region
      $region9: #{roberta_multilabel_forward.14} parent=5 // pred_check
        _
      $region10: #{roberta_multilabel_forward.14} parent=5 // pred_check_branch
        %177 = sbr.rel (%p174) target = $region12
      $region11: #{roberta_multilabel_forward.14} parent=5 // pred_region
        %s178 = ssub.s32 %s10, 1
      $region12: #{roberta_multilabel_forward.14} parent=5 // pred_fallthru
        _
      %p179 = scmp.lt.s32.totalorder %s10, 4
      // Predicated region
      $region13: #{roberta_multilabel_forward.14} parent=5 // pred_check
        %p180 = pneg %p179
      $region14: #{roberta_multilabel_forward.14} parent=5 // pred_check_branch
        %182 = sbr.rel (%p180) target = $region16
      $region15: #{roberta_multilabel_forward.14} parent=5 // pred_region
        // Predicated region
        $region17: #{roberta_multilabel_forward.14} parent=15 // pred_check
          %p183 = pneg %p44
        $region18: #{roberta_multilabel_forward.14} parent=15 // pred_check_branch
          %185 = sbr.rel (%p183) target = $region20
        $region19: #{roberta_multilabel_forward.14} parent=15 // pred_region
          %s186 = sand.u32 %s34, 1
          %s187 = sand.u32 %s34, 1
          %s188 = smul.addr %s187, 8
          %s189 = scalar_lea.vmem [#allocation2], %s188
          %s190 = smul.addr %s17, 12
          %s191 = sadd.s32 %s18, %s190
          %s192 = smul.addr %s191, 4
          %s193 = scalar_lea.vmem %s0, %s192
          // Predicated region
          $region21: #{roberta_multilabel_forward.14} parent=19 // pred_check
            _
          $region22: #{roberta_multilabel_forward.14} parent=19 // pred_check_branch
            %195 = sbr.rel (0) target = $region24
          $region23: #{roberta_multilabel_forward.14} parent=19 // pred_region
            // Predicated region
            $region25: #{roberta_multilabel_forward.14} parent=23 // pred_check
              _
            $region26: #{roberta_multilabel_forward.14} parent=23 // pred_check_branch
              %197 = sbr.rel target = $region28
            $region27: #{roberta_multilabel_forward.14} parent=23 // pred_region
              // Predicated region
              $region40: #{roberta_multilabel_forward.14} parent=27 // pred_check
                _
              $region41: #{roberta_multilabel_forward.14} parent=27 // pred_check_branch
                %214 = sbr.rel (0) target = $region43
              $region42: #{roberta_multilabel_forward.14} parent=27 // pred_region
                loop: start=0, step=1, limit=1
                $region44: #{roberta_multilabel_forward.14} parent=42 // loop_pre_header
                  _
                $region45: #{roberta_multilabel_forward.14} parent=42 // loop_header
                  %s216 = sphi 0, %s220
                  %p217 = scmp.ge.s32.totalorder %s216, 1
                  %s221 = sphi %s193, %s193
                  %s222 = sphi %s189, %s189
                $region46: #{roberta_multilabel_forward.14} parent=42 // loop_header_branch
                  %219 = sbr.rel (%p217) target = $region50
                $region47: #{roberta_multilabel_forward.14} parent=42 // loop_body
                  _
                $region48: #{roberta_multilabel_forward.14} parent=42 // loop_footer
                  %s220 = sadd.s32 1, %s216
                $region49: #{roberta_multilabel_forward.14} parent=42 // loop_footer_branch
                  %215 = sbr.rel target = $region45
                $region50: #{roberta_multilabel_forward.14} parent=42 // loop_exit
                  _
                loop: start=0, step=1, limit=1
                $region51: #{roberta_multilabel_forward.14} parent=42 // loop_pre_header
                  _
                $region52: #{roberta_multilabel_forward.14} parent=42 // loop_header
                  %s225 = sphi 0, %s229
                  %p226 = scmp.ge.s32.totalorder %s225, 1
                  %s230 = sphi %s193, %s193
                  %s231 = sphi %s189, %s189
                $region53: #{roberta_multilabel_forward.14} parent=42 // loop_header_branch
                  %228 = sbr.rel (%p226) target = $region57
                $region54: #{roberta_multilabel_forward.14} parent=42 // loop_body
                  %v232 = vld [vmem:[%s230] sm:$0xf]
                  %233 = vst [vmem:[%s231] sm:$0xf] %v232
                  %v234 = vld [vmem:[%s230 + $0x18] sm:$0xf]
                  %235 = vst [vmem:[%s231 + $0x4] sm:$0xf] %v234
                $region55: #{roberta_multilabel_forward.14} parent=42 // loop_footer
                  %s229 = sadd.s32 1, %s225
                $region56: #{roberta_multilabel_forward.14} parent=42 // loop_footer_branch
                  %224 = sbr.rel target = $region52
                $region57: #{roberta_multilabel_forward.14} parent=42 // loop_exit
                  _
              $region43: #{roberta_multilabel_forward.14} parent=27 // pred_fallthru
                _
            $region28: #{roberta_multilabel_forward.14} parent=23 // pred_fallthru
              _
            // Predicated region
            $region29: #{roberta_multilabel_forward.14} parent=23 // pred_check
              _
            $region30: #{roberta_multilabel_forward.14} parent=23 // pred_check_branch
              %199 = sbr.rel (0) target = $region32
            $region31: #{roberta_multilabel_forward.14} parent=23 // pred_region
              loop: start=0, step=1, limit=1
              $region33: #{roberta_multilabel_forward.14} parent=31 // loop_pre_header
                _
              $region34: #{roberta_multilabel_forward.14} parent=31 // loop_header
                %s202 = sphi 0, %s206
                %p203 = scmp.ge.s32.totalorder %s202, 1
                %s207 = sphi %s193, %s193
                %s208 = sphi %s189, %s189
              $region35: #{roberta_multilabel_forward.14} parent=31 // loop_header_branch
                %205 = sbr.rel (%p203) target = $region39
              $region36: #{roberta_multilabel_forward.14} parent=31 // loop_body
                %v209 = vld [vmem:[%s207] sm:$0xf]
                %210 = vst [vmem:[%s208] sm:$0xf] %v209
                %v211 = vld [vmem:[%s207 + $0x18] sm:$0xf]
                %212 = vst [vmem:[%s208 + $0x4] sm:$0xf] %v211
              $region37: #{roberta_multilabel_forward.14} parent=31 // loop_footer
                %s206 = sadd.s32 1, %s202
              $region38: #{roberta_multilabel_forward.14} parent=31 // loop_footer_branch
                %201 = sbr.rel target = $region34
              $region39: #{roberta_multilabel_forward.14} parent=31 // loop_exit
                _
            $region32: #{roberta_multilabel_forward.14} parent=23 // pred_fallthru
              _
          $region24: #{roberta_multilabel_forward.14} parent=19 // pred_fallthru
            _
          %236 = vnop
        $region20: #{roberta_multilabel_forward.14} parent=15 // pred_fallthru
          _
        // Predicated region
        $region58: #{roberta_multilabel_forward.14} parent=15 // pred_check
          %p237 = pneg %p74
        $region59: #{roberta_multilabel_forward.14} parent=15 // pred_check_branch
          %239 = sbr.rel (%p237) target = $region61
        $region60: #{roberta_multilabel_forward.14} parent=15 // pred_region
          %s240 = sand.u32 %s64, 1
          %s241 = sand.u32 %s64, 1
          %s242 = smul.addr %s241, 8
          %s243 = scalar_lea.vmem [#allocation3], %s242
          %s244 = sadd.s32 %s18, 2
          %s245 = smul.addr %s17, 12
          %s246 = sadd.s32 %s244, %s245
          %s247 = smul.addr %s246, 4
          %s248 = scalar_lea.vmem %s1, %s247
          // Predicated region
          $region62: #{roberta_multilabel_forward.14} parent=60 // pred_check
            _
          $region63: #{roberta_multilabel_forward.14} parent=60 // pred_check_branch
            %250 = sbr.rel (0) target = $region65
          $region64: #{roberta_multilabel_forward.14} parent=60 // pred_region
            // Predicated region
            $region66: #{roberta_multilabel_forward.14} parent=64 // pred_check
              _
            $region67: #{roberta_multilabel_forward.14} parent=64 // pred_check_branch
              %252 = sbr.rel target = $region69
            $region68: #{roberta_multilabel_forward.14} parent=64 // pred_region
              // Predicated region
              $region81: #{roberta_multilabel_forward.14} parent=68 // pred_check
                _
              $region82: #{roberta_multilabel_forward.14} parent=68 // pred_check_branch
                %269 = sbr.rel (0) target = $region84
              $region83: #{roberta_multilabel_forward.14} parent=68 // pred_region
                loop: start=0, step=1, limit=1
                $region85: #{roberta_multilabel_forward.14} parent=83 // loop_pre_header
                  _
                $region86: #{roberta_multilabel_forward.14} parent=83 // loop_header
                  %s271 = sphi 0, %s275
                  %p272 = scmp.ge.s32.totalorder %s271, 1
                  %s276 = sphi %s248, %s248
                  %s277 = sphi %s243, %s243
                $region87: #{roberta_multilabel_forward.14} parent=83 // loop_header_branch
                  %274 = sbr.rel (%p272) target = $region91
                $region88: #{roberta_multilabel_forward.14} parent=83 // loop_body
                  _
                $region89: #{roberta_multilabel_forward.14} parent=83 // loop_footer
                  %s275 = sadd.s32 1, %s271
                $region90: #{roberta_multilabel_forward.14} parent=83 // loop_footer_branch
                  %270 = sbr.rel target = $region86
                $region91: #{roberta_multilabel_forward.14} parent=83 // loop_exit
                  _
                loop: start=0, step=1, limit=1
                $region92: #{roberta_multilabel_forward.14} parent=83 // loop_pre_header
                  _
                $region93: #{roberta_multilabel_forward.14} parent=83 // loop_header
                  %s280 = sphi 0, %s284
                  %p281 = scmp.ge.s32.totalorder %s280, 1
                  %s285 = sphi %s248, %s248
                  %s286 = sphi %s243, %s243
                $region94: #{roberta_multilabel_forward.14} parent=83 // loop_header_branch
                  %283 = sbr.rel (%p281) target = $region98
                $region95: #{roberta_multilabel_forward.14} parent=83 // loop_body
                  %v287 = vld [vmem:[%s285] sm:$0xf]
                  %288 = vst [vmem:[%s286] sm:$0xf] %v287
                  %v289 = vld [vmem:[%s285 + $0x18] sm:$0xf]
                  %290 = vst [vmem:[%s286 + $0x4] sm:$0xf] %v289
                $region96: #{roberta_multilabel_forward.14} parent=83 // loop_footer
                  %s284 = sadd.s32 1, %s280
                $region97: #{roberta_multilabel_forward.14} parent=83 // loop_footer_branch
                  %279 = sbr.rel target = $region93
                $region98: #{roberta_multilabel_forward.14} parent=83 // loop_exit
                  _
              $region84: #{roberta_multilabel_forward.14} parent=68 // pred_fallthru
                _
            $region69: #{roberta_multilabel_forward.14} parent=64 // pred_fallthru
              _
            // Predicated region
            $region70: #{roberta_multilabel_forward.14} parent=64 // pred_check
              _
            $region71: #{roberta_multilabel_forward.14} parent=64 // pred_check_branch
              %254 = sbr.rel (0) target = $region73
            $region72: #{roberta_multilabel_forward.14} parent=64 // pred_region
              loop: start=0, step=1, limit=1
              $region74: #{roberta_multilabel_forward.14} parent=72 // loop_pre_header
                _
              $region75: #{roberta_multilabel_forward.14} parent=72 // loop_header
                %s257 = sphi 0, %s261
                %p258 = scmp.ge.s32.totalorder %s257, 1
                %s262 = sphi %s248, %s248
                %s263 = sphi %s243, %s243
              $region76: #{roberta_multilabel_forward.14} parent=72 // loop_header_branch
                %260 = sbr.rel (%p258) target = $region80
              $region77: #{roberta_multilabel_forward.14} parent=72 // loop_body
                %v264 = vld [vmem:[%s262] sm:$0xf]
                %265 = vst [vmem:[%s263] sm:$0xf] %v264
                %v266 = vld [vmem:[%s262 + $0x18] sm:$0xf]
                %267 = vst [vmem:[%s263 + $0x4] sm:$0xf] %v266
              $region78: #{roberta_multilabel_forward.14} parent=72 // loop_footer
                %s261 = sadd.s32 1, %s257
              $region79: #{roberta_multilabel_forward.14} parent=72 // loop_footer_branch
                %256 = sbr.rel target = $region75
              $region80: #{roberta_multilabel_forward.14} parent=72 // loop_exit
                _
            $region73: #{roberta_multilabel_forward.14} parent=64 // pred_fallthru
              _
          $region65: #{roberta_multilabel_forward.14} parent=60 // pred_fallthru
            _
          %291 = vnop
        $region61: #{roberta_multilabel_forward.14} parent=15 // pred_fallthru
          _
        // Predicated region
        $region99: #{roberta_multilabel_forward.14} parent=15 // pred_check
          %p292 = pneg %p104
        $region100: #{roberta_multilabel_forward.14} parent=15 // pred_check_branch
          %294 = sbr.rel (%p292) target = $region102
        $region101: #{roberta_multilabel_forward.14} parent=15 // pred_region
          %s295 = sand.u32 %s94, 1
          %s296 = sand.u32 %s94, 1
          %s297 = smul.addr %s296, 8
          %s298 = scalar_lea.vmem [#allocation4], %s297
          %s299 = sadd.s32 %s18, 4
          %s300 = smul.addr %s17, 12
          %s301 = sadd.s32 %s299, %s300
          %s302 = smul.addr %s301, 4
          %s303 = scalar_lea.vmem %s2, %s302
          // Predicated region
          $region103: #{roberta_multilabel_forward.14} parent=101 // pred_check
            _
          $region104: #{roberta_multilabel_forward.14} parent=101 // pred_check_branch
            %305 = sbr.rel (0) target = $region106
          $region105: #{roberta_multilabel_forward.14} parent=101 // pred_region
            // Predicated region
            $region107: #{roberta_multilabel_forward.14} parent=105 // pred_check
              _
            $region108: #{roberta_multilabel_forward.14} parent=105 // pred_check_branch
              %307 = sbr.rel target = $region110
            $region109: #{roberta_multilabel_forward.14} parent=105 // pred_region
              // Predicated region
              $region122: #{roberta_multilabel_forward.14} parent=109 // pred_check
                _
              $region123: #{roberta_multilabel_forward.14} parent=109 // pred_check_branch
                %324 = sbr.rel (0) target = $region125
              $region124: #{roberta_multilabel_forward.14} parent=109 // pred_region
                loop: start=0, step=1, limit=1
                $region126: #{roberta_multilabel_forward.14} parent=124 // loop_pre_header
                  _
                $region127: #{roberta_multilabel_forward.14} parent=124 // loop_header
                  %s326 = sphi 0, %s330
                  %p327 = scmp.ge.s32.totalorder %s326, 1
                  %s331 = sphi %s303, %s303
                  %s332 = sphi %s298, %s298
                $region128: #{roberta_multilabel_forward.14} parent=124 // loop_header_branch
                  %329 = sbr.rel (%p327) target = $region132
                $region129: #{roberta_multilabel_forward.14} parent=124 // loop_body
                  _
                $region130: #{roberta_multilabel_forward.14} parent=124 // loop_footer
                  %s330 = sadd.s32 1, %s326
                $region131: #{roberta_multilabel_forward.14} parent=124 // loop_footer_branch
                  %325 = sbr.rel target = $region127
                $region132: #{roberta_multilabel_forward.14} parent=124 // loop_exit
                  _
                loop: start=0, step=1, limit=1
                $region133: #{roberta_multilabel_forward.14} parent=124 // loop_pre_header
                  _
                $region134: #{roberta_multilabel_forward.14} parent=124 // loop_header
                  %s335 = sphi 0, %s339
                  %p336 = scmp.ge.s32.totalorder %s335, 1
                  %s340 = sphi %s303, %s303
                  %s341 = sphi %s298, %s298
                $region135: #{roberta_multilabel_forward.14} parent=124 // loop_header_branch
                  %338 = sbr.rel (%p336) target = $region139
                $region136: #{roberta_multilabel_forward.14} parent=124 // loop_body
                  %v342 = vld [vmem:[%s340] sm:$0xf]
                  %343 = vst [vmem:[%s341] sm:$0xf] %v342
                  %v344 = vld [vmem:[%s340 + $0x18] sm:$0xf]
                  %345 = vst [vmem:[%s341 + $0x4] sm:$0xf] %v344
                $region137: #{roberta_multilabel_forward.14} parent=124 // loop_footer
                  %s339 = sadd.s32 1, %s335
                $region138: #{roberta_multilabel_forward.14} parent=124 // loop_footer_branch
                  %334 = sbr.rel target = $region134
                $region139: #{roberta_multilabel_forward.14} parent=124 // loop_exit
                  _
              $region125: #{roberta_multilabel_forward.14} parent=109 // pred_fallthru
                _
            $region110: #{roberta_multilabel_forward.14} parent=105 // pred_fallthru
              _
            // Predicated region
            $region111: #{roberta_multilabel_forward.14} parent=105 // pred_check
              _
            $region112: #{roberta_multilabel_forward.14} parent=105 // pred_check_branch
              %309 = sbr.rel (0) target = $region114
            $region113: #{roberta_multilabel_forward.14} parent=105 // pred_region
              loop: start=0, step=1, limit=1
              $region115: #{roberta_multilabel_forward.14} parent=113 // loop_pre_header
                _
              $region116: #{roberta_multilabel_forward.14} parent=113 // loop_header
                %s312 = sphi 0, %s316
                %p313 = scmp.ge.s32.totalorder %s312, 1
                %s317 = sphi %s303, %s303
                %s318 = sphi %s298, %s298
              $region117: #{roberta_multilabel_forward.14} parent=113 // loop_header_branch
                %315 = sbr.rel (%p313) target = $region121
              $region118: #{roberta_multilabel_forward.14} parent=113 // loop_body
                %v319 = vld [vmem:[%s317] sm:$0xf]
                %320 = vst [vmem:[%s318] sm:$0xf] %v319
                %v321 = vld [vmem:[%s317 + $0x18] sm:$0xf]
                %322 = vst [vmem:[%s318 + $0x4] sm:$0xf] %v321
              $region119: #{roberta_multilabel_forward.14} parent=113 // loop_footer
                %s316 = sadd.s32 1, %s312
              $region120: #{roberta_multilabel_forward.14} parent=113 // loop_footer_branch
                %311 = sbr.rel target = $region116
              $region121: #{roberta_multilabel_forward.14} parent=113 // loop_exit
                _
            $region114: #{roberta_multilabel_forward.14} parent=105 // pred_fallthru
              _
          $region106: #{roberta_multilabel_forward.14} parent=101 // pred_fallthru
            _
          %346 = vnop
        $region102: #{roberta_multilabel_forward.14} parent=15 // pred_fallthru
          _
        // Predicated region
        $region140: #{roberta_multilabel_forward.14} parent=15 // pred_check
          %p347 = pneg %p130
        $region141: #{roberta_multilabel_forward.14} parent=15 // pred_check_branch
          %349 = sbr.rel (%p347) target = $region143
        $region142: #{roberta_multilabel_forward.14} parent=15 // pred_region
          %p350 = scmp.lt.s32.totalorder %s17, 1
          %s351 = scalar_select %p350, %s17, 1
          %s352 = scalar_lea.vmem %s3, %s351
        $region143: #{roberta_multilabel_forward.14} parent=15 // pred_fallthru
          _
      $region16: #{roberta_multilabel_forward.14} parent=5 // pred_fallthru
        _
      %p353 = scmp.le.s32.totalorder 1, %s10
      %p354 = scmp.lt.s32.totalorder %s10, 5
      %p355 = pnand %p353, %p354
      %p356 = pneg %p355
      // Predicated region
      $region144: #{roberta_multilabel_forward.14} parent=5 // pred_check
        _
      $region145: #{roberta_multilabel_forward.14} parent=5 // pred_check_branch
        %358 = sbr.rel (%p355) target = $region147
      $region146: #{roberta_multilabel_forward.14} parent=5 // pred_region
        %s359 = ssub.s32 %s10, 1
        %s360 = sand.u32 %s37, 1
        %s361 = sand.u32 %s37, 1
        %s362 = smul.addr %s361, 8
        %s363 = scalar_lea.vmem [#allocation2], %s362
        // Predicated region
        $region148: #{roberta_multilabel_forward.14} parent=146 // pred_check
          %p364 = pneg %p50
        $region149: #{roberta_multilabel_forward.14} parent=146 // pred_check_branch
          %366 = sbr.rel (%p364) target = $region151
        $region150: #{roberta_multilabel_forward.14} parent=146 // pred_region
          _
        $region151: #{roberta_multilabel_forward.14} parent=146 // pred_fallthru
          _
        %s367 = sand.u32 %s67, 1
        %s368 = sand.u32 %s67, 1
        %s369 = smul.addr %s368, 8
        %s370 = scalar_lea.vmem [#allocation3], %s369
        // Predicated region
        $region152: #{roberta_multilabel_forward.14} parent=146 // pred_check
          %p371 = pneg %p80
        $region153: #{roberta_multilabel_forward.14} parent=146 // pred_check_branch
          %373 = sbr.rel (%p371) target = $region155
        $region154: #{roberta_multilabel_forward.14} parent=146 // pred_region
          _
        $region155: #{roberta_multilabel_forward.14} parent=146 // pred_fallthru
          _
        %s374 = sand.u32 %s97, 1
        %s375 = sand.u32 %s97, 1
        %s376 = smul.addr %s375, 8
        %s377 = scalar_lea.vmem [#allocation4], %s376
        // Predicated region
        $region156: #{roberta_multilabel_forward.14} parent=146 // pred_check
          %p378 = pneg %p110
        $region157: #{roberta_multilabel_forward.14} parent=146 // pred_check_branch
          %380 = sbr.rel (%p378) target = $region159
        $region158: #{roberta_multilabel_forward.14} parent=146 // pred_region
          _
        $region159: #{roberta_multilabel_forward.14} parent=146 // pred_fallthru
          _
        %s381 = sand.u32 %s37, 1
        %s382 = sand.u32 %s37, 1
        %s383 = smul.addr %s382, 8
        %s384 = scalar_lea.vmem [#allocation2], %s383
        %p385 = pneg %p50
        %p386 = pneg %p47
        %s387 = sand.u32 %s67, 1
        %s388 = sand.u32 %s67, 1
        %s389 = smul.addr %s388, 8
        %s390 = scalar_lea.vmem [#allocation3], %s389
        %p391 = pneg %p80
        %p392 = pneg %p77
        %s393 = sand.u32 %s97, 1
        %s394 = sand.u32 %s97, 1
        %s395 = smul.addr %s394, 8
        %s396 = scalar_lea.vmem [#allocation4], %s395
        %p397 = pneg %p110
        %p398 = pneg %p107
        %p399 = scmp.lt.s32.totalorder %s19, 1
        %s400 = scalar_select %p399, %s19, 1
        %s401 = scalar_lea.vmem %s3, %s400
        %p402 = pneg %p136
        %p403 = pneg %p133
        %p404 = pneg %p164
        %p405 = pneg %p161
        %s406 = sand.u32 %s151, 1
        %s407 = sand.u32 %s151, 1
        %s408 = smul.addr %s407, 8
        %s409 = scalar_lea.vmem [#allocation5], %s408
        %s410 = sadd.s32 %s20, 2
        %s411 = sadd.s32 %s20, 4
        %p412 = scmp.lt.s32.totalorder %s19, 1
        %s413 = scalar_select %p412, %s19, 1
        %s414 = scalar_lea.vmem %s3, %s413
        %v416 = vld [vmem:[%s363] sm:$0xf]
        %v417 = vld [vmem:[%s363 + $0x4] sm:$0xf]
        %v418 = vld [vmem:[%s370] sm:$0xf]
        %v419 = vld [vmem:[%s370 + $0x4] sm:$0xf]
        %v420 = vld [vmem:[%s377] sm:$0xf]
        %v421 = vld [vmem:[%s377 + $0x4] sm:$0xf]
        %v422 = vld [vmem:[%s414] sm:$0x1]
        %v425 = vunpack.c.l.b16 %v416
        %v426 = vunpack.c.l.b16 %v417
        %v427 = vpack.c.b16 %v426, %v425
        %v430 = vunpack.c.l.b16 %v418
        %v431 = vunpack.c.l.b16 %v419
        %v432 = vpack.c.b16 %v431, %v430
        %vm433 = vcmask 523264
        %v435 = vsel %vm433, %v427, 0
        %v438 = vsel %vm433, %v432, 0
        %440 = vmatprep.subr.bf16.mxu0 0
        %441 = vmatpush1.bf16.xpose.msra.mxu0 %v438
        %442 = vmatprep.subr.bf16.mxu0 0
        %443 = vmatpush1.bf16.xpose.msra.mxu0 0
        %444 = vmatprep.subr.bf16.mxu0 0
        %445 = vmatpush1.bf16.xpose.msra.mxu0 0
        %446 = vmatprep.subr.bf16.mxu0 0
        %447 = vmatpush1.bf16.xpose.msra.mxu0 0
        %448 = vmatprep.subr.bf16.mxu0 0
        %449 = vmatpush1.bf16.xpose.msra.mxu0 0
        %450 = vmatprep.subr.bf16.mxu0 0
        %451 = vmatpush1.bf16.xpose.msra.mxu0 0
        %452 = vmatprep.subr.bf16.mxu0 0
        %453 = vmatpush1.bf16.xpose.msra.mxu0 0
        %454 = vmatprep.subr.bf16.mxu0 0
        %455 = vmatpush1.bf16.xpose.msra.mxu0 0
        %456 = vmatprep.subr.bf16.mxu0 0
        %457 = vmatpush1.bf16.xpose.msra.mxu0 0
        %458 = vmatprep.subr.bf16.mxu0 0
        %459 = vmatpush1.bf16.xpose.msra.mxu0 0
        %460 = vmatprep.subr.bf16.mxu0 0
        %461 = vmatpush1.bf16.xpose.msra.mxu0 0
        %462 = vmatprep.subr.bf16.mxu0 0
        %463 = vmatpush1.bf16.xpose.msra.mxu0 0
        %464 = vmatprep.subr.bf16.mxu0 0
        %465 = vmatpush1.bf16.xpose.msra.mxu0 0
        %466 = vmatprep.subr.bf16.mxu0 0
        %467 = vmatpush1.bf16.xpose.msra.mxu0 0
        %468 = vmatprep.subr.bf16.mxu0 0
        %469 = vmatpush1.bf16.xpose.msra.mxu0 0
        %470 = vmatprep.subr.bf16.mxu0 0
        %471 = vmatpush1.bf16.xpose.msra.mxu0 0
        %472 = vmatprep.mubr.bf16.mxu0 0
        %473 = vmatmul.mubr.bf16.gmra.mrb[0].mxu0 %v435
        %v474 = vpop.f32.mrb[0].mxu0
        %v475 = vadd.f32 0.0, %v474
        %v476 = vpop.f32.mrb[0].mxu0
        %v477 = vpop.f32.mrb[0].mxu0
        %v478 = vadd.f32 0.0, %v477
        %v479 = vpop.f32.mrb[0].mxu0
        %480 = vdwg.mxu0
        %v481 = vmul.f32 %v475, 0.125
        %v482 = vmul.f32 %v478, 0.125
        %v484 = vlaneseq
        %v485 = vshrl.u32 %v484, 7
        %v486 = vsub.s32 0, %v485
        %v487 = vrot.slane %v422, %v486
        %v489 = vadd.f32 %v481, %v487
        %v490 = vadd.f32 %v482, %v487
        %vm491 = vcmask 130048
        %v492 = vsel %vm491, %v489, -inf
        %493 = vmax.xlane.f32.xlu0 %v492
        %v494 = vpop.xlane.xlu0 %493
        %v495 = vsel %vm491, %v490, -inf
        %496 = vmax.xlane.f32.xlu0 %v495
        %v497 = vpop.xlane.xlu0 %496
        %v498 = vsub.f32 %v489, %v494
        %v499 = vsub.f32 %v490, %v497
        %v500 = vmul.f32 %v498, 1.442695
        %v501 = vpow.pop %v500
        %v502 = vmul.f32 %v499, 1.442695
        %v503 = vpow.pop %v502
        %v504 = vsel %vm491, %v501, 0.0
        %505 = vadd.xlane.f32.xlu0 %v504
        %v506 = vpop.xlane.xlu0 %505
        %v507 = vsel %vm491, %v503, 0.0
        %508 = vadd.xlane.f32.xlu0 %v507
        %v509 = vpop.xlane.xlu0 %508
        %v510 = vrcp.pop %v506
        %v511 = vrcp.pop %v509
        %v512 = vmul.f32 %v501, %v510
        %v513 = vmul.f32 %v503, %v511
        %v514 = vpack.c.bf16 %v513, %v512
        %v517 = vunpack.c.l.b16 %v420
        %v518 = vunpack.c.l.b16 %v421
        %v519 = vpack.c.b16 %v518, %v517
        %v522 = vsel %vm491, %v514, 0
        %524 = vmatprep.subr.bf16.mxu0 0
        %525 = vmatpush1.bf16.msra.mxu0 %v519
        %526 = vmatprep.subr.bf16.mxu0 0
        %527 = vmatpush1.bf16.msra.mxu0 0
        %528 = vmatprep.subr.bf16.mxu0 0
        %529 = vmatpush1.bf16.msra.mxu0 0
        %530 = vmatprep.subr.bf16.mxu0 0
        %531 = vmatpush1.bf16.msra.mxu0 0
        %532 = vmatprep.subr.bf16.mxu0 0
        %533 = vmatpush1.bf16.msra.mxu0 0
        %534 = vmatprep.subr.bf16.mxu0 0
        %535 = vmatpush1.bf16.msra.mxu0 0
        %536 = vmatprep.subr.bf16.mxu0 0
        %537 = vmatpush1.bf16.msra.mxu0 0
        %538 = vmatprep.subr.bf16.mxu0 0
        %539 = vmatpush1.bf16.msra.mxu0 0
        %540 = vmatprep.subr.bf16.mxu0 0
        %541 = vmatpush1.bf16.msra.mxu0 0
        %542 = vmatprep.subr.bf16.mxu0 0
        %543 = vmatpush1.bf16.msra.mxu0 0
        %544 = vmatprep.subr.bf16.mxu0 0
        %545 = vmatpush1.bf16.msra.mxu0 0
        %546 = vmatprep.subr.bf16.mxu0 0
        %547 = vmatpush1.bf16.msra.mxu0 0
        %548 = vmatprep.subr.bf16.mxu0 0
        %549 = vmatpush1.bf16.msra.mxu0 0
        %550 = vmatprep.subr.bf16.mxu0 0
        %551 = vmatpush1.bf16.msra.mxu0 0
        %552 = vmatprep.subr.bf16.mxu0 0
        %553 = vmatpush1.bf16.msra.mxu0 0
        %554 = vmatprep.subr.bf16.mxu0 0
        %555 = vmatpush1.bf16.msra.mxu0 0
        %556 = vmatprep.mubr.bf16.mxu0 0
        %557 = vmatmul.mubr.bf16.gmra.mrb[0].mxu0 %v522
        %v558 = vpop.f32.mrb[0].mxu0
        %v559 = vadd.f32 0.0, %v558
        %v560 = vpop.f32.mrb[0].mxu0
        %v561 = vpop.f32.mrb[0].mxu0
        %v562 = vadd.f32 0.0, %v561
        %v563 = vpop.f32.mrb[0].mxu0
        %564 = vdwg.mxu0
        %565 = vrot.lane.b32.xlu0 %v427, 64
        %v566 = vpop.permute.xlu0 %565
        %567 = vrot.lane.b32.xlu0 %v432, 64
        %v568 = vpop.permute.xlu0 %567
        %v570 = vsel %vm433, %v566, 0
        %v573 = vsel %vm433, %v568, 0
        %575 = vmatprep.subr.bf16.mxu0 0
        %576 = vmatpush1.bf16.xpose.msra.mxu0 %v573
        %577 = vmatprep.subr.bf16.mxu0 0
        %578 = vmatpush1.bf16.xpose.msra.mxu0 0
        %579 = vmatprep.subr.bf16.mxu0 0
        %580 = vmatpush1.bf16.xpose.msra.mxu0 0
        %581 = vmatprep.subr.bf16.mxu0 0
        %582 = vmatpush1.bf16.xpose.msra.mxu0 0
        %583 = vmatprep.subr.bf16.mxu0 0
        %584 = vmatpush1.bf16.xpose.msra.mxu0 0
        %585 = vmatprep.subr.bf16.mxu0 0
        %586 = vmatpush1.bf16.xpose.msra.mxu0 0
        %587 = vmatprep.subr.bf16.mxu0 0
        %588 = vmatpush1.bf16.xpose.msra.mxu0 0
        %589 = vmatprep.subr.bf16.mxu0 0
        %590 = vmatpush1.bf16.xpose.msra.mxu0 0
        %591 = vmatprep.subr.bf16.mxu0 0
        %592 = vmatpush1.bf16.xpose.msra.mxu0 0
        %593 = vmatprep.subr.bf16.mxu0 0
        %594 = vmatpush1.bf16.xpose.msra.mxu0 0
        %595 = vmatprep.subr.bf16.mxu0 0
        %596 = vmatpush1.bf16.xpose.msra.mxu0 0
        %597 = vmatprep.subr.bf16.mxu0 0
        %598 = vmatpush1.bf16.xpose.msra.mxu0 0
        %599 = vmatprep.subr.bf16.mxu0 0
        %600 = vmatpush1.bf16.xpose.msra.mxu0 0
        %601 = vmatprep.subr.bf16.mxu0 0
        %602 = vmatpush1.bf16.xpose.msra.mxu0 0
        %603 = vmatprep.subr.bf16.mxu0 0
        %604 = vmatpush1.bf16.xpose.msra.mxu0 0
        %605 = vmatprep.subr.bf16.mxu0 0
        %606 = vmatpush1.bf16.xpose.msra.mxu0 0
        %607 = vmatprep.mubr.bf16.mxu0 0
        %608 = vmatmul.mubr.bf16.gmra.mrb[0].mxu0 %v570
        %v609 = vpop.f32.mrb[0].mxu0
        %v610 = vadd.f32 0.0, %v609
        %v611 = vpop.f32.mrb[0].mxu0
        %v612 = vpop.f32.mrb[0].mxu0
        %v613 = vadd.f32 0.0, %v612
        %v614 = vpop.f32.mrb[0].mxu0
        %615 = vdwg.mxu0
        %v616 = vmul.f32 %v610, 0.125
        %v617 = vmul.f32 %v613, 0.125
        %v618 = vadd.f32 %v616, %v487
        %v619 = vadd.f32 %v617, %v487
        %v620 = vsel %vm491, %v618, -inf
        %621 = vmax.xlane.f32.xlu0 %v620
        %v622 = vpop.xlane.xlu0 %621
        %v623 = vsel %vm491, %v619, -inf
        %624 = vmax.xlane.f32.xlu0 %v623
        %v625 = vpop.xlane.xlu0 %624
        %v626 = vsub.f32 %v618, %v622
        %v627 = vsub.f32 %v619, %v625
        %v628 = vmul.f32 %v626, 1.442695
        %v629 = vpow.pop %v628
        %v630 = vmul.f32 %v627, 1.442695
        %v631 = vpow.pop %v630
        %v632 = vsel %vm491, %v629, 0.0
        %633 = vadd.xlane.f32.xlu0 %v632
        %v634 = vpop.xlane.xlu0 %633
        %v635 = vsel %vm491, %v631, 0.0
        %636 = vadd.xlane.f32.xlu0 %v635
        %v637 = vpop.xlane.xlu0 %636
        %v638 = vrcp.pop %v634
        %v639 = vrcp.pop %v637
        %v640 = vmul.f32 %v629, %v638
        %v641 = vmul.f32 %v631, %v639
        %v642 = vpack.c.bf16 %v641, %v640
        %643 = vrot.lane.b32.xlu0 %v519, 64
        %v644 = vpop.permute.xlu0 %643
        %v647 = vsel %vm491, %v642, 0
        %649 = vmatprep.subr.bf16.mxu0 0
        %650 = vmatpush1.bf16.msra.mxu0 %v644
        %651 = vmatprep.subr.bf16.mxu0 0
        %652 = vmatpush1.bf16.msra.mxu0 0
        %653 = vmatprep.subr.bf16.mxu0 0
        %654 = vmatpush1.bf16.msra.mxu0 0
        %655 = vmatprep.subr.bf16.mxu0 0
        %656 = vmatpush1.bf16.msra.mxu0 0
        %657 = vmatprep.subr.bf16.mxu0 0
        %658 = vmatpush1.bf16.msra.mxu0 0
        %659 = vmatprep.subr.bf16.mxu0 0
        %660 = vmatpush1.bf16.msra.mxu0 0
        %661 = vmatprep.subr.bf16.mxu0 0
        %662 = vmatpush1.bf16.msra.mxu0 0
        %663 = vmatprep.subr.bf16.mxu0 0
        %664 = vmatpush1.bf16.msra.mxu0 0
        %665 = vmatprep.subr.bf16.mxu0 0
        %666 = vmatpush1.bf16.msra.mxu0 0
        %667 = vmatprep.subr.bf16.mxu0 0
        %668 = vmatpush1.bf16.msra.mxu0 0
        %669 = vmatprep.subr.bf16.mxu0 0
        %670 = vmatpush1.bf16.msra.mxu0 0
        %671 = vmatprep.subr.bf16.mxu0 0
        %672 = vmatpush1.bf16.msra.mxu0 0
        %673 = vmatprep.subr.bf16.mxu0 0
        %674 = vmatpush1.bf16.msra.mxu0 0
        %675 = vmatprep.subr.bf16.mxu0 0
        %676 = vmatpush1.bf16.msra.mxu0 0
        %677 = vmatprep.subr.bf16.mxu0 0
        %678 = vmatpush1.bf16.msra.mxu0 0
        %679 = vmatprep.subr.bf16.mxu0 0
        %680 = vmatpush1.bf16.msra.mxu0 0
        %681 = vmatprep.mubr.bf16.mxu0 0
        %682 = vmatmul.mubr.bf16.gmra.mrb[0].mxu0 %v647
        %v683 = vpop.f32.mrb[0].mxu0
        %v684 = vadd.f32 0.0, %v683
        %v685 = vpop.f32.mrb[0].mxu0
        %v686 = vpop.f32.mrb[0].mxu0
        %v687 = vadd.f32 0.0, %v686
        %v688 = vpop.f32.mrb[0].mxu0
        %689 = vdwg.mxu0
        %692 = vrot.lane.b32.xlu0 %v684, 64
        %v693 = vpop.permute.xlu0 %692
        %694 = vrot.lane.b32.xlu0 %v687, 64
        %v695 = vpop.permute.xlu0 %694
        %v698 = vsel %vm433, %v559, %v693
        %v699 = vsel %vm433, %v562, %v695
        %v700 = vpack.c.bf16 %v699, %v698
        %v702 = vunpack.c.l.b16 %v700
        %v703 = vunpack.c.h.b16 %v700
        %v704 = vpack.c.b16 %v702, %v702
        %v705 = vpack.c.b16 %v703, %v703
        %708 = vst [vmem:[%s409] sm:$0xf] %v704
        %709 = vst [vmem:[%s409 + $0x4] sm:$0xf] %v705
        %s710 = sand.u32 %s151, 1
        %s711 = sand.u32 %s151, 1
        %s712 = smul.addr %s711, 8
        %s713 = scalar_lea.vmem [#allocation5], %s712
        // Predicated region
        $region160: #{roberta_multilabel_forward.14} parent=146 // pred_check
          %p714 = pneg %p161
        $region161: #{roberta_multilabel_forward.14} parent=146 // pred_check_branch
          %716 = sbr.rel (%p714) target = $region163
        $region162: #{roberta_multilabel_forward.14} parent=146 // pred_region
          %s717 = smul.addr %s19, 4
          %s718 = sadd.s32 %s20, %s717
          %s719 = smul.addr %s718, 4
          %s720 = scalar_lea.vmem %s4, %s719
          // Predicated region
          $region164: #{roberta_multilabel_forward.14} parent=162 // pred_check
            _
          $region165: #{roberta_multilabel_forward.14} parent=162 // pred_check_branch
            %722 = sbr.rel (0) target = $region167
          $region166: #{roberta_multilabel_forward.14} parent=162 // pred_region
            // Predicated region
            $region168: #{roberta_multilabel_forward.14} parent=166 // pred_check
              _
            $region169: #{roberta_multilabel_forward.14} parent=166 // pred_check_branch
              %724 = sbr.rel target = $region171
            $region170: #{roberta_multilabel_forward.14} parent=166 // pred_region
              // Predicated region
              $region183: #{roberta_multilabel_forward.14} parent=170 // pred_check
                _
              $region184: #{roberta_multilabel_forward.14} parent=170 // pred_check_branch
                %741 = sbr.rel (0) target = $region186
              $region185: #{roberta_multilabel_forward.14} parent=170 // pred_region
                loop: start=0, step=1, limit=1
                $region187: #{roberta_multilabel_forward.14} parent=185 // loop_pre_header
                  _
                $region188: #{roberta_multilabel_forward.14} parent=185 // loop_header
                  %s743 = sphi 0, %s747
                  %p744 = scmp.ge.s32.totalorder %s743, 1
                  %s748 = sphi %s713, %s713
                  %s749 = sphi %s720, %s720
                $region189: #{roberta_multilabel_forward.14} parent=185 // loop_header_branch
                  %746 = sbr.rel (%p744) target = $region193
                $region190: #{roberta_multilabel_forward.14} parent=185 // loop_body
                  _
                $region191: #{roberta_multilabel_forward.14} parent=185 // loop_footer
                  %s747 = sadd.s32 1, %s743
                $region192: #{roberta_multilabel_forward.14} parent=185 // loop_footer_branch
                  %742 = sbr.rel target = $region188
                $region193: #{roberta_multilabel_forward.14} parent=185 // loop_exit
                  _
                loop: start=0, step=1, limit=1
                $region194: #{roberta_multilabel_forward.14} parent=185 // loop_pre_header
                  _
                $region195: #{roberta_multilabel_forward.14} parent=185 // loop_header
                  %s752 = sphi 0, %s756
                  %p753 = scmp.ge.s32.totalorder %s752, 1
                  %s757 = sphi %s713, %s713
                  %s758 = sphi %s720, %s720
                $region196: #{roberta_multilabel_forward.14} parent=185 // loop_header_branch
                  %755 = sbr.rel (%p753) target = $region200
                $region197: #{roberta_multilabel_forward.14} parent=185 // loop_body
                  %v759 = vld [vmem:[%s757] sm:$0xf]
                  %760 = vst [vmem:[%s758] sm:$0xf] %v759
                  %v761 = vld [vmem:[%s757 + $0x4] sm:$0xf]
                  %762 = vst [vmem:[%s758 + $0x8] sm:$0xf] %v761
                $region198: #{roberta_multilabel_forward.14} parent=185 // loop_footer
                  %s756 = sadd.s32 1, %s752
                $region199: #{roberta_multilabel_forward.14} parent=185 // loop_footer_branch
                  %751 = sbr.rel target = $region195
                $region200: #{roberta_multilabel_forward.14} parent=185 // loop_exit
                  _
              $region186: #{roberta_multilabel_forward.14} parent=170 // pred_fallthru
                _
            $region171: #{roberta_multilabel_forward.14} parent=166 // pred_fallthru
              _
            // Predicated region
            $region172: #{roberta_multilabel_forward.14} parent=166 // pred_check
              _
            $region173: #{roberta_multilabel_forward.14} parent=166 // pred_check_branch
              %726 = sbr.rel (0) target = $region175
            $region174: #{roberta_multilabel_forward.14} parent=166 // pred_region
              loop: start=0, step=1, limit=1
              $region176: #{roberta_multilabel_forward.14} parent=174 // loop_pre_header
                _
              $region177: #{roberta_multilabel_forward.14} parent=174 // loop_header
                %s729 = sphi 0, %s733
                %p730 = scmp.ge.s32.totalorder %s729, 1
                %s734 = sphi %s713, %s713
                %s735 = sphi %s720, %s720
              $region178: #{roberta_multilabel_forward.14} parent=174 // loop_header_branch
                %732 = sbr.rel (%p730) target = $region182
              $region179: #{roberta_multilabel_forward.14} parent=174 // loop_body
                %v736 = vld [vmem:[%s734] sm:$0xf]
                %737 = vst [vmem:[%s735] sm:$0xf] %v736
                %v738 = vld [vmem:[%s734 + $0x4] sm:$0xf]
                %739 = vst [vmem:[%s735 + $0x8] sm:$0xf] %v738
              $region180: #{roberta_multilabel_forward.14} parent=174 // loop_footer
                %s733 = sadd.s32 1, %s729
              $region181: #{roberta_multilabel_forward.14} parent=174 // loop_footer_branch
                %728 = sbr.rel target = $region177
              $region182: #{roberta_multilabel_forward.14} parent=174 // loop_exit
                _
            $region175: #{roberta_multilabel_forward.14} parent=166 // pred_fallthru
              _
          $region167: #{roberta_multilabel_forward.14} parent=162 // pred_fallthru
            _
          %763 = vnop
        $region163: #{roberta_multilabel_forward.14} parent=146 // pred_fallthru
          _
      $region147: #{roberta_multilabel_forward.14} parent=5 // pred_fallthru
        _
      %p764 = scmp.le.s32.totalorder 2, %s10
      // Predicated region
      $region201: #{roberta_multilabel_forward.14} parent=5 // pred_check
        %p765 = pneg %p764
      $region202: #{roberta_multilabel_forward.14} parent=5 // pred_check_branch
        %767 = sbr.rel (%p765) target = $region204
      $region203: #{roberta_multilabel_forward.14} parent=5 // pred_region
        %s768 = ssub.s32 %s10, 2
        // Predicated region
        $region205: #{roberta_multilabel_forward.14} parent=203 // pred_check
          %p769 = pneg %p167
        $region206: #{roberta_multilabel_forward.14} parent=203 // pred_check_branch
          %771 = sbr.rel (%p769) target = $region208
        $region207: #{roberta_multilabel_forward.14} parent=203 // pred_region
          %s772 = sand.u32 %s152, 1
          %s773 = sand.u32 %s152, 1
          %s774 = smul.addr %s773, 8
          %s775 = scalar_lea.vmem [#allocation5], %s774
        $region208: #{roberta_multilabel_forward.14} parent=203 // pred_fallthru
          _
      $region204: #{roberta_multilabel_forward.14} parent=5 // pred_fallthru
        _
    $region6: #{roberta_multilabel_forward.14} parent=1 // loop_footer
      %s14 = sadd.s32 1, %s10
    $region7: #{roberta_multilabel_forward.14} parent=1 // loop_footer_branch
      %9 = sbr.rel target = $region3
    $region8: #{roberta_multilabel_forward.14} parent=1 // loop_exit
      _

// kernel: roberta_multilabel_forward.15
$region0: #{roberta_multilabel_forward.15}
  #allocation0 [shape = 'u32[]', space=smem, size = 0x4, offset = 0x4, fixed_abs, tag = 'smem constant byte address 0x4 - core index']
  #allocation1 [shape = 'u32[144,128]{1,0:T(1,128)}', space=vmem, size = 0x12000, scoped, tag = 'internal scratch']
  %s0 = inlined_call_operand.vmem [shape: bf16[32,256], index: 0, kind: input, shape index: {}]
  %s1 = inlined_call_operand.vmem [shape: bf16[256,256], index: 1, kind: input, shape index: {}]
  %s2 = inlined_call_operand.vmem [shape: f32[1,256], index: 2, kind: input, shape index: {}]
  %s3 = inlined_call_operand.vmem [shape: bf16[32,256], index: 3, kind: input, shape index: {}]
  %s4 = inlined_call_operand.vmem [shape: f32[1,256], index: 4, kind: input, shape index: {}]
  %s5 = inlined_call_operand.vmem [shape: f32[1,256], index: 5, kind: input, shape index: {}]
  %s6 = inlined_call_operand.vmem [shape: bf16[32,256], index: 6, kind: output, shape index: {}]
  %s7 = sld [smem:[#allocation0]]
  $region34: #{roberta_multilabel_forward.15} parent=0
    _
  %s9 = ssub.s32 1, %s7
  %s10 = scalar_select 0, %s9, %s7
  // Predicated region
  $region2: #{roberta_multilabel_forward.15} parent=0 // pred_check
    _
  $region3: #{roberta_multilabel_forward.15} parent=0 // pred_check_branch
    %12 = sbr.rel (0) target = $region5
  $region4: #{roberta_multilabel_forward.15} parent=0 // pred_region
    _
  $region5: #{roberta_multilabel_forward.15} parent=0 // pred_fallthru
    _
  // Predicated region
  $region6: #{roberta_multilabel_forward.15} parent=0 // pred_check
    _
  $region7: #{roberta_multilabel_forward.15} parent=0 // pred_check_branch
    %14 = sbr.rel (0) target = $region9
  $region8: #{roberta_multilabel_forward.15} parent=0 // pred_region
    _
  $region9: #{roberta_multilabel_forward.15} parent=0 // pred_fallthru
    _
  // Predicated region
  $region10: #{roberta_multilabel_forward.15} parent=0 // pred_check
    _
  $region11: #{roberta_multilabel_forward.15} parent=0 // pred_check_branch
    %16 = sbr.rel (0) target = $region13
  $region12: #{roberta_multilabel_forward.15} parent=0 // pred_region
    _
  $region13: #{roberta_multilabel_forward.15} parent=0 // pred_fallthru
    _
  // Predicated region
  $region14: #{roberta_multilabel_forward.15} parent=0 // pred_check
    _
  $region15: #{roberta_multilabel_forward.15} parent=0 // pred_check_branch
    %18 = sbr.rel (0) target = $region17
  $region16: #{roberta_multilabel_forward.15} parent=0 // pred_region
    _
  $region17: #{roberta_multilabel_forward.15} parent=0 // pred_fallthru
    _
  // Predicated region
  $region18: #{roberta_multilabel_forward.15} parent=0 // pred_check
    _
  $region19: #{roberta_multilabel_forward.15} parent=0 // pred_check_branch
    %20 = sbr.rel (0) target = $region21
  $region20: #{roberta_multilabel_forward.15} parent=0 // pred_region
    _
  $region21: #{roberta_multilabel_forward.15} parent=0 // pred_fallthru
    _
  // Predicated region
  $region22: #{roberta_multilabel_forward.15} parent=0 // pred_check
    _
  $region23: #{roberta_multilabel_forward.15} parent=0 // pred_check_branch
    %22 = sbr.rel (0) target = $region25
  $region24: #{roberta_multilabel_forward.15} parent=0 // pred_region
    _
  $region25: #{roberta_multilabel_forward.15} parent=0 // pred_fallthru
    _
  %v23 = vld [vmem:[%s0] sm:$0xff]
  %v24 = vld [vmem:[%s0 + $0x8] sm:$0xff]
  %v25 = vld [vmem:[%s0 + $0x10] sm:$0xff]
  %v26 = vld [vmem:[%s0 + $0x18] sm:$0xff]
  %v27 = vld [vmem:[%s1] sm:$0xff]
  %v28 = vld [vmem:[%s1 + $0x8] sm:$0xff]
  %v29 = vld [vmem:[%s1 + $0x10] sm:$0xff]
  %v30 = vld [vmem:[%s1 + $0x18] sm:$0xff]
  %v31 = vld [vmem:[%s1 + $0x20] sm:$0xff]
  %v32 = vld [vmem:[%s1 + $0x28] sm:$0xff]
  %v33 = vld [vmem:[%s1 + $0x30] sm:$0xff]
  %v34 = vld [vmem:[%s1 + $0x38] sm:$0xff]
  %v35 = vld [vmem:[%s1 + $0x40] sm:$0xff]
  %v36 = vld [vmem:[%s1 + $0x48] sm:$0xff]
  %v37 = vld [vmem:[%s1 + $0x50] sm:$0xff]
  %v38 = vld [vmem:[%s1 + $0x58] sm:$0xff]
  %v39 = vld [vmem:[%s1 + $0x60] sm:$0xff]
  %v40 = vld [vmem:[%s1 + $0x68] sm:$0xff]
  %v41 = vld [vmem:[%s1 + $0x70] sm:$0xff]
  %v42 = vld [vmem:[%s1 + $0x78] sm:$0xff]
  %v43 = vld [vmem:[%s1 + $0x80] sm:$0xff]
  %v44 = vld [vmem:[%s1 + $0x88] sm:$0xff]
  %v45 = vld [vmem:[%s1 + $0x90] sm:$0xff]
  %v46 = vld [vmem:[%s1 + $0x98] sm:$0xff]
  %v47 = vld [vmem:[%s1 + $0xa0] sm:$0xff]
  %v48 = vld [vmem:[%s1 + $0xa8] sm:$0xff]
  %v49 = vld [vmem:[%s1 + $0xb0] sm:$0xff]
  %v50 = vld [vmem:[%s1 + $0xb8] sm:$0xff]
  %v51 = vld [vmem:[%s1 + $0xc0] sm:$0xff]
  %v52 = vld [vmem:[%s1 + $0xc8] sm:$0xff]
  %v53 = vld [vmem:[%s1 + $0xd0] sm:$0xff]
  %v54 = vld [vmem:[%s1 + $0xd8] sm:$0xff]
  %v55 = vld [vmem:[%s1 + $0xe0] sm:$0xff]
  %v56 = vld [vmem:[%s1 + $0xe8] sm:$0xff]
  %v57 = vld [vmem:[%s1 + $0xf0] sm:$0xff]
  %v58 = vld [vmem:[%s1 + $0xf8] sm:$0xff]
  %v59 = vld [vmem:[%s2] sm:$0x3]
  %v61 = vlaneseq
  %v62 = vshrl.u32 %v61, 7
  %v63 = vsub.s32 0, %v62
  %v64 = vrot.slane %v59, %v63
  %v65 = vlaneseq
  %v66 = vshrl.u32 %v65, 7
  %v67 = vsub.s32 1, %v66
  %v68 = vrot.slane %v59, %v67
  %v75 = vunpack.c.l.b16 %v23
  %v76 = vunpack.c.h.b16 %v23
  %v77 = vunpack.c.l.b16 %v24
  %v78 = vunpack.c.h.b16 %v24
  %v79 = vunpack.c.l.b16 %v25
  %v80 = vunpack.c.h.b16 %v25
  %v81 = vunpack.c.l.b16 %v26
  %v82 = vunpack.c.h.b16 %v26
  %v83 = vpack.c.b16 %v77, %v75
  %v84 = vpack.c.b16 %v78, %v76
  %v85 = vpack.c.b16 %v81, %v79
  %v86 = vpack.c.b16 %v82, %v80
  %v123 = vunpack.c.l.b16 %v27
  %v124 = vunpack.c.h.b16 %v27
  %v125 = vunpack.c.l.b16 %v28
  %v126 = vunpack.c.h.b16 %v28
  %v127 = vunpack.c.l.b16 %v29
  %v128 = vunpack.c.h.b16 %v29
  %v129 = vunpack.c.l.b16 %v30
  %v130 = vunpack.c.h.b16 %v30
  %v131 = vunpack.c.l.b16 %v31
  %v132 = vunpack.c.h.b16 %v31
  %v133 = vunpack.c.l.b16 %v32
  %v134 = vunpack.c.h.b16 %v32
  %v135 = vunpack.c.l.b16 %v33
  %v136 = vunpack.c.h.b16 %v33
  %v137 = vunpack.c.l.b16 %v34
  %v138 = vunpack.c.h.b16 %v34
  %v139 = vunpack.c.l.b16 %v35
  %v140 = vunpack.c.h.b16 %v35
  %v141 = vunpack.c.l.b16 %v36
  %v142 = vunpack.c.h.b16 %v36
  %v143 = vunpack.c.l.b16 %v37
  %v144 = vunpack.c.h.b16 %v37
  %v145 = vunpack.c.l.b16 %v38
  %v146 = vunpack.c.h.b16 %v38
  %v147 = vunpack.c.l.b16 %v39
  %v148 = vunpack.c.h.b16 %v39
  %v149 = vunpack.c.l.b16 %v40
  %v150 = vunpack.c.h.b16 %v40
  %v151 = vunpack.c.l.b16 %v41
  %v152 = vunpack.c.h.b16 %v41
  %v153 = vunpack.c.l.b16 %v42
  %v154 = vunpack.c.h.b16 %v42
  %v155 = vunpack.c.l.b16 %v43
  %v156 = vunpack.c.h.b16 %v43
  %v157 = vunpack.c.l.b16 %v44
  %v158 = vunpack.c.h.b16 %v44
  %v159 = vunpack.c.l.b16 %v45
  %v160 = vunpack.c.h.b16 %v45
  %v161 = vunpack.c.l.b16 %v46
  %v162 = vunpack.c.h.b16 %v46
  %v163 = vunpack.c.l.b16 %v47
  %v164 = vunpack.c.h.b16 %v47
  %v165 = vunpack.c.l.b16 %v48
  %v166 = vunpack.c.h.b16 %v48
  %v167 = vunpack.c.l.b16 %v49
  %v168 = vunpack.c.h.b16 %v49
  %v169 = vunpack.c.l.b16 %v50
  %v170 = vunpack.c.h.b16 %v50
  %v171 = vunpack.c.l.b16 %v51
  %v172 = vunpack.c.h.b16 %v51
  %v173 = vunpack.c.l.b16 %v52
  %v174 = vunpack.c.h.b16 %v52
  %v175 = vunpack.c.l.b16 %v53
  %v176 = vunpack.c.h.b16 %v53
  %v177 = vunpack.c.l.b16 %v54
  %v178 = vunpack.c.h.b16 %v54
  %v179 = vunpack.c.l.b16 %v55
  %v180 = vunpack.c.h.b16 %v55
  %v181 = vunpack.c.l.b16 %v56
  %v182 = vunpack.c.h.b16 %v56
  %v183 = vunpack.c.l.b16 %v57
  %v184 = vunpack.c.h.b16 %v57
  %v185 = vunpack.c.l.b16 %v58
  %v186 = vunpack.c.h.b16 %v58
  %v187 = vpack.c.b16 %v125, %v123
  %v188 = vpack.c.b16 %v126, %v124
  %v189 = vpack.c.b16 %v129, %v127
  %v190 = vpack.c.b16 %v130, %v128
  %v191 = vpack.c.b16 %v133, %v131
  %v192 = vpack.c.b16 %v134, %v132
  %v193 = vpack.c.b16 %v137, %v135
  %v194 = vpack.c.b16 %v138, %v136
  %v195 = vpack.c.b16 %v141, %v139
  %v196 = vpack.c.b16 %v142, %v140
  %v197 = vpack.c.b16 %v145, %v143
  %v198 = vpack.c.b16 %v146, %v144
  %v199 = vpack.c.b16 %v149, %v147
  %v200 = vpack.c.b16 %v150, %v148
  %v201 = vpack.c.b16 %v153, %v151
  %v202 = vpack.c.b16 %v154, %v152
  %v203 = vpack.c.b16 %v157, %v155
  %v204 = vpack.c.b16 %v158, %v156
  %v205 = vpack.c.b16 %v161, %v159
  %v206 = vpack.c.b16 %v162, %v160
  %v207 = vpack.c.b16 %v165, %v163
  %v208 = vpack.c.b16 %v166, %v164
  %v209 = vpack.c.b16 %v169, %v167
  %v210 = vpack.c.b16 %v170, %v168
  %v211 = vpack.c.b16 %v173, %v171
  %v212 = vpack.c.b16 %v174, %v172
  %v213 = vpack.c.b16 %v177, %v175
  %v214 = vpack.c.b16 %v178, %v176
  %v215 = vpack.c.b16 %v181, %v179
  %v216 = vpack.c.b16 %v182, %v180
  %v217 = vpack.c.b16 %v185, %v183
  %v218 = vpack.c.b16 %v186, %v184
  %251 = vmatprep.subr.bf16.mxu0 %v188
  %252 = vmatpush1.bf16.msra.mxu0 %v187
  %253 = vmatprep.subr.bf16.mxu0 %v190
  %254 = vmatpush1.bf16.msra.mxu0 %v189
  %255 = vmatprep.subr.bf16.mxu0 %v192
  %256 = vmatpush1.bf16.msra.mxu0 %v191
  %257 = vmatprep.subr.bf16.mxu0 %v194
  %258 = vmatpush1.bf16.msra.mxu0 %v193
  %259 = vmatprep.subr.bf16.mxu0 %v196
  %260 = vmatpush1.bf16.msra.mxu0 %v195
  %261 = vmatprep.subr.bf16.mxu0 %v198
  %262 = vmatpush1.bf16.msra.mxu0 %v197
  %263 = vmatprep.subr.bf16.mxu0 %v200
  %264 = vmatpush1.bf16.msra.mxu0 %v199
  %265 = vmatprep.subr.bf16.mxu0 %v202
  %266 = vmatpush1.bf16.msra.mxu0 %v201
  %267 = vmatprep.subr.bf16.mxu0 %v204
  %268 = vmatpush1.bf16.msra.mxu0 %v203
  %269 = vmatprep.subr.bf16.mxu0 %v206
  %270 = vmatpush1.bf16.msra.mxu0 %v205
  %271 = vmatprep.subr.bf16.mxu0 %v208
  %272 = vmatpush1.bf16.msra.mxu0 %v207
  %273 = vmatprep.subr.bf16.mxu0 %v210
  %274 = vmatpush1.bf16.msra.mxu0 %v209
  %275 = vmatprep.subr.bf16.mxu0 %v212
  %276 = vmatpush1.bf16.msra.mxu0 %v211
  %277 = vmatprep.subr.bf16.mxu0 %v214
  %278 = vmatpush1.bf16.msra.mxu0 %v213
  %279 = vmatprep.subr.bf16.mxu0 %v216
  %280 = vmatpush1.bf16.msra.mxu0 %v215
  %281 = vmatprep.subr.bf16.mxu0 %v218
  %282 = vmatpush1.bf16.msra.mxu0 %v217
  %283 = vmatprep.mubr.bf16.mxu0 %v84
  %284 = vmatmul.mubr.bf16.gmra.mrb[0].mxu0 %v83
  %v285 = vpop.f32.mrb[0].mxu0
  %v286 = vadd.f32 %v64, %v285
  %v287 = vpop.f32.mrb[0].mxu0
  %v288 = vadd.f32 %v68, %v287
  %v289 = vpop.f32.mrb[0].mxu0
  %v290 = vadd.f32 %v64, %v289
  %v291 = vpop.f32.mrb[0].mxu0
  %v292 = vadd.f32 %v68, %v291
  %293 = vmatprep.mubr.bf16.mxu0 %v86
  %294 = vmatmul.mubr.bf16.gmra.mrb[0].mxu0 %v85
  %v295 = vpop.f32.mrb[0].mxu0
  %v296 = vadd.f32 %v64, %v295
  %v297 = vpop.f32.mrb[0].mxu0
  %v298 = vadd.f32 %v68, %v297
  %v299 = vpop.f32.mrb[0].mxu0
  %v300 = vadd.f32 %v64, %v299
  %v301 = vpop.f32.mrb[0].mxu0
  %v302 = vadd.f32 %v68, %v301
  %303 = vdwg.mxu0
  %v304 = vld [vmem:[%s3] sm:$0xff]
  %v305 = vld [vmem:[%s3 + $0x8] sm:$0xff]
  %v306 = vld [vmem:[%s3 + $0x10] sm:$0xff]
  %v307 = vld [vmem:[%s3 + $0x18] sm:$0xff]
  %v308 = vunpack.c.l.bf16 %v304
  %v309 = vunpack.c.h.bf16 %v304
  %v310 = vunpack.c.l.bf16 %v305
  %v311 = vunpack.c.h.bf16 %v305
  %v312 = vunpack.c.l.bf16 %v306
  %v313 = vunpack.c.h.bf16 %v306
  %v314 = vunpack.c.l.bf16 %v307
  %v315 = vunpack.c.h.bf16 %v307
  %v316 = vadd.f32 %v286, %v308
  %v317 = vadd.f32 %v288, %v309
  %v318 = vadd.f32 %v290, %v310
  %v319 = vadd.f32 %v292, %v311
  %v320 = vadd.f32 %v296, %v312
  %v321 = vadd.f32 %v298, %v313
  %v322 = vadd.f32 %v300, %v314
  %v323 = vadd.f32 %v302, %v315
  %v324 = vadd.f32 %v316, %v317
  %325 = vadd.xlane.f32.xlu0 %v324
  %v326 = vpop.xlane.xlu0 %325
  %v327 = vadd.f32 %v318, %v319
  %328 = vadd.xlane.f32.xlu0 %v327
  %v329 = vpop.xlane.xlu0 %328
  %v330 = vadd.f32 %v320, %v321
  %331 = vadd.xlane.f32.xlu0 %v330
  %v332 = vpop.xlane.xlu0 %331
  %v333 = vadd.f32 %v322, %v323
  %334 = vadd.xlane.f32.xlu0 %v333
  %v335 = vpop.xlane.xlu0 %334
  %v336 = vrcp.pop 256.0
  %v337 = vmul.f32 %v326, %v336
  %v338 = vmul.f32 %v329, %v336
  %v339 = vmul.f32 %v332, %v336
  %v340 = vmul.f32 %v335, %v336
  %v341 = vsub.f32 %v316, %v337
  %v342 = vsub.f32 %v317, %v337
  %v343 = vsub.f32 %v318, %v338
  %v344 = vsub.f32 %v319, %v338
  %v345 = vsub.f32 %v320, %v339
  %v346 = vsub.f32 %v321, %v339
  %v347 = vsub.f32 %v322, %v340
  %v348 = vsub.f32 %v323, %v340
  %v349 = vmul.f32 %v341, %v341
  %v350 = vmul.f32 %v342, %v342
  %v351 = vmul.f32 %v343, %v343
  %v352 = vmul.f32 %v344, %v344
  %v353 = vmul.f32 %v345, %v345
  %v354 = vmul.f32 %v346, %v346
  %v355 = vmul.f32 %v347, %v347
  %v356 = vmul.f32 %v348, %v348
  %v357 = vadd.f32 %v349, %v350
  %358 = vadd.xlane.f32.xlu0 %v357
  %v359 = vpop.xlane.xlu0 %358
  %v360 = vadd.f32 %v351, %v352
  %361 = vadd.xlane.f32.xlu0 %v360
  %v362 = vpop.xlane.xlu0 %361
  %v363 = vadd.f32 %v353, %v354
  %364 = vadd.xlane.f32.xlu0 %v363
  %v365 = vpop.xlane.xlu0 %364
  %v366 = vadd.f32 %v355, %v356
  %367 = vadd.xlane.f32.xlu0 %v366
  %v368 = vpop.xlane.xlu0 %367
  %v369 = vmul.f32 %v359, %v336
  %v370 = vmul.f32 %v362, %v336
  %v371 = vmul.f32 %v365, %v336
  %v372 = vmul.f32 %v368, %v336
  %v373 = vadd.f32 %v369, 1e-05
  %v374 = vadd.f32 %v370, 1e-05
  %v375 = vadd.f32 %v371, 1e-05
  %v376 = vadd.f32 %v372, 1e-05
  %v377 = vrsqrt.pop %v373
  %v378 = vrsqrt.pop %v374
  %v379 = vrsqrt.pop %v375
  %v380 = vrsqrt.pop %v376
  %v381 = vmul.f32 %v341, %v377
  %v382 = vmul.f32 %v342, %v377
  %v383 = vmul.f32 %v343, %v378
  %v384 = vmul.f32 %v344, %v378
  %v385 = vmul.f32 %v345, %v379
  %v386 = vmul.f32 %v346, %v379
  %v387 = vmul.f32 %v347, %v380
  %v388 = vmul.f32 %v348, %v380
  %v389 = vld [vmem:[%s4] sm:$0x3]
  %v391 = vlaneseq
  %v392 = vshrl.u32 %v391, 7
  %v393 = vsub.s32 0, %v392
  %v394 = vrot.slane %v389, %v393
  %v395 = vlaneseq
  %v396 = vshrl.u32 %v395, 7
  %v397 = vsub.s32 1, %v396
  %v398 = vrot.slane %v389, %v397
  %v401 = vmul.f32 %v381, %v394
  %v402 = vmul.f32 %v382, %v398
  %v403 = vmul.f32 %v383, %v394
  %v404 = vmul.f32 %v384, %v398
  %v405 = vmul.f32 %v385, %v394
  %v406 = vmul.f32 %v386, %v398
  %v407 = vmul.f32 %v387, %v394
  %v408 = vmul.f32 %v388, %v398
  %v409 = vld [vmem:[%s5] sm:$0x3]
  %v411 = vlaneseq
  %v412 = vshrl.u32 %v411, 7
  %v413 = vsub.s32 0, %v412
  %v414 = vrot.slane %v409, %v413
  %v415 = vlaneseq
  %v416 = vshrl.u32 %v415, 7
  %v417 = vsub.s32 1, %v416
  %v418 = vrot.slane %v409, %v417
  %v421 = vadd.f32 %v401, %v414
  %v422 = vadd.f32 %v402, %v418
  %v423 = vadd.f32 %v403, %v414
  %v424 = vadd.f32 %v404, %v418
  %v425 = vadd.f32 %v405, %v414
  %v426 = vadd.f32 %v406, %v418
  %v427 = vadd.f32 %v407, %v414
  %v428 = vadd.f32 %v408, %v418
  %v429 = vpack.c.bf16 %v423, %v421
  %v430 = vpack.c.bf16 %v424, %v422
  %v431 = vpack.c.bf16 %v427, %v425
  %v432 = vpack.c.bf16 %v428, %v426
  %v437 = vunpack.c.l.b16 %v429
  %v438 = vunpack.c.l.b16 %v430
  %v439 = vunpack.c.h.b16 %v429
  %v440 = vunpack.c.h.b16 %v430
  %v441 = vunpack.c.l.b16 %v431
  %v442 = vunpack.c.l.b16 %v432
  %v443 = vunpack.c.h.b16 %v431
  %v444 = vunpack.c.h.b16 %v432
  %v445 = vpack.c.b16 %v438, %v437
  %v446 = vpack.c.b16 %v440, %v439
  %v447 = vpack.c.b16 %v442, %v441
  %v448 = vpack.c.b16 %v444, %v443
  %453 = vst [vmem:[%s6] sm:$0xff] %v445
  %454 = vst [vmem:[%s6 + $0x8] sm:$0xff] %v446
  %455 = vst [vmem:[%s6 + $0x10] sm:$0xff] %v447
  %456 = vst [vmem:[%s6 + $0x18] sm:$0xff] %v448
  // Predicated region
  $region26: #{roberta_multilabel_forward.15} parent=0 // pred_check
    _
  $region27: #{roberta_multilabel_forward.15} parent=0 // pred_check_branch
    %458 = sbr.rel (0) target = $region29
  $region28: #{roberta_multilabel_forward.15} parent=0 // pred_region
    _
  $region29: #{roberta_multilabel_forward.15} parent=0 // pred_fallthru
    _
  // Predicated region
  $region30: #{roberta_multilabel_forward.15} parent=0 // pred_check
    _
  $region31: #{roberta_multilabel_forward.15} parent=0 // pred_check_branch
    %460 = sbr.rel (0) target = $region33
  $region32: #{roberta_multilabel_forward.15} parent=0 // pred_region
    _
  $region33: #{roberta_multilabel_forward.15} parent=0 // pred_fallthru
    _

// kernel: roberta_multilabel_forward.13
$region0: #{roberta_multilabel_forward.13}
  #allocation0 [shape = 'u32[]', space=smem, size = 0x4, offset = 0x4, fixed_abs, tag = 'smem constant byte address 0x4 - core index']
  #allocation1 [shape = 'u32[144,128]{1,0:T(1,128)}', space=vmem, size = 0x12000, scoped, tag = 'internal scratch']
  %s0 = inlined_call_operand.vmem [shape: bf16[32,256], index: 0, kind: input, shape index: {}]
  %s1 = inlined_call_operand.vmem [shape: bf16[256,768], index: 1, kind: input, shape index: {}]
  %s2 = inlined_call_operand.vmem [shape: f32[1,768], index: 2, kind: input, shape index: {}]
  %s3 = inlined_call_operand.vmem [shape: bf16[32,768], index: 3, kind: output, shape index: {}]
  %s4 = sld [smem:[#allocation0]]
  $region22: #{roberta_multilabel_forward.13} parent=0
    _
  %s6 = ssub.s32 1, %s4
  %s7 = scalar_select 0, %s6, %s4
  // Predicated region
  $region2: #{roberta_multilabel_forward.13} parent=0 // pred_check
    _
  $region3: #{roberta_multilabel_forward.13} parent=0 // pred_check_branch
    %9 = sbr.rel (0) target = $region5
  $region4: #{roberta_multilabel_forward.13} parent=0 // pred_region
    _
  $region5: #{roberta_multilabel_forward.13} parent=0 // pred_fallthru
    _
  // Predicated region
  $region6: #{roberta_multilabel_forward.13} parent=0 // pred_check
    _
  $region7: #{roberta_multilabel_forward.13} parent=0 // pred_check_branch
    %11 = sbr.rel (0) target = $region9
  $region8: #{roberta_multilabel_forward.13} parent=0 // pred_region
    _
  $region9: #{roberta_multilabel_forward.13} parent=0 // pred_fallthru
    _
  // Predicated region
  $region10: #{roberta_multilabel_forward.13} parent=0 // pred_check
    _
  $region11: #{roberta_multilabel_forward.13} parent=0 // pred_check_branch
    %13 = sbr.rel (0) target = $region13
  $region12: #{roberta_multilabel_forward.13} parent=0 // pred_region
    _
  $region13: #{roberta_multilabel_forward.13} parent=0 // pred_fallthru
    _
  %v14 = vld [vmem:[%s0] sm:$0xff]
  %v15 = vld [vmem:[%s0 + $0x8] sm:$0xff]
  %v16 = vld [vmem:[%s0 + $0x10] sm:$0xff]
  %v17 = vld [vmem:[%s0 + $0x18] sm:$0xff]
  %v18 = vld [vmem:[%s1] sm:$0xff]
  %v19 = vld [vmem:[%s1 + $0x8] sm:$0xff]
  %v20 = vld [vmem:[%s1 + $0x10] sm:$0xff]
  %v21 = vld [vmem:[%s1 + $0x18] sm:$0xff]
  %v22 = vld [vmem:[%s1 + $0x20] sm:$0xff]
  %v23 = vld [vmem:[%s1 + $0x28] sm:$0xff]
  %v24 = vld [vmem:[%s1 + $0x30] sm:$0xff]
  %v25 = vld [vmem:[%s1 + $0x38] sm:$0xff]
  %v26 = vld [vmem:[%s1 + $0x40] sm:$0xff]
  %v27 = vld [vmem:[%s1 + $0x48] sm:$0xff]
  %v28 = vld [vmem:[%s1 + $0x50] sm:$0xff]
  %v29 = vld [vmem:[%s1 + $0x58] sm:$0xff]
  %v30 = vld [vmem:[%s1 + $0x60] sm:$0xff]
  %v31 = vld [vmem:[%s1 + $0x68] sm:$0xff]
  %v32 = vld [vmem:[%s1 + $0x70] sm:$0xff]
  %v33 = vld [vmem:[%s1 + $0x78] sm:$0xff]
  %v34 = vld [vmem:[%s1 + $0x80] sm:$0xff]
  %v35 = vld [vmem:[%s1 + $0x88] sm:$0xff]
  %v36 = vld [vmem:[%s1 + $0x90] sm:$0xff]
  %v37 = vld [vmem:[%s1 + $0x98] sm:$0xff]
  %v38 = vld [vmem:[%s1 + $0xa0] sm:$0xff]
  %v39 = vld [vmem:[%s1 + $0xa8] sm:$0xff]
  %v40 = vld [vmem:[%s1 + $0xb0] sm:$0xff]
  %v41 = vld [vmem:[%s1 + $0xb8] sm:$0xff]
  %v42 = vld [vmem:[%s1 + $0xc0] sm:$0xff]
  %v43 = vld [vmem:[%s1 + $0xc8] sm:$0xff]
  %v44 = vld [vmem:[%s1 + $0xd0] sm:$0xff]
  %v45 = vld [vmem:[%s1 + $0xd8] sm:$0xff]
  %v46 = vld [vmem:[%s1 + $0xe0] sm:$0xff]
  %v47 = vld [vmem:[%s1 + $0xe8] sm:$0xff]
  %v48 = vld [vmem:[%s1 + $0xf0] sm:$0xff]
  %v49 = vld [vmem:[%s1 + $0xf8] sm:$0xff]
  %v50 = vld [vmem:[%s1 + $0x100] sm:$0xff]
  %v51 = vld [vmem:[%s1 + $0x108] sm:$0xff]
  %v52 = vld [vmem:[%s1 + $0x110] sm:$0xff]
  %v53 = vld [vmem:[%s1 + $0x118] sm:$0xff]
  %v54 = vld [vmem:[%s1 + $0x120] sm:$0xff]
  %v55 = vld [vmem:[%s1 + $0x128] sm:$0xff]
  %v56 = vld [vmem:[%s1 + $0x130] sm:$0xff]
  %v57 = vld [vmem:[%s1 + $0x138] sm:$0xff]
  %v58 = vld [vmem:[%s1 + $0x140] sm:$0xff]
  %v59 = vld [vmem:[%s1 + $0x148] sm:$0xff]
  %v60 = vld [vmem:[%s1 + $0x150] sm:$0xff]
  %v61 = vld [vmem:[%s1 + $0x158] sm:$0xff]
  %v62 = vld [vmem:[%s1 + $0x160] sm:$0xff]
  %v63 = vld [vmem:[%s1 + $0x168] sm:$0xff]
  %v64 = vld [vmem:[%s1 + $0x170] sm:$0xff]
  %v65 = vld [vmem:[%s1 + $0x178] sm:$0xff]
  %v66 = vld [vmem:[%s1 + $0x180] sm:$0xff]
  %v67 = vld [vmem:[%s1 + $0x188] sm:$0xff]
  %v68 = vld [vmem:[%s1 + $0x190] sm:$0xff]
  %v69 = vld [vmem:[%s1 + $0x198] sm:$0xff]
  %v70 = vld [vmem:[%s1 + $0x1a0] sm:$0xff]
  %v71 = vld [vmem:[%s1 + $0x1a8] sm:$0xff]
  %v72 = vld [vmem:[%s1 + $0x1b0] sm:$0xff]
  %v73 = vld [vmem:[%s1 + $0x1b8] sm:$0xff]
  %v74 = vld [vmem:[%s1 + $0x1c0] sm:$0xff]
  %v75 = vld [vmem:[%s1 + $0x1c8] sm:$0xff]
  %v76 = vld [vmem:[%s1 + $0x1d0] sm:$0xff]
  %v77 = vld [vmem:[%s1 + $0x1d8] sm:$0xff]
  %v78 = vld [vmem:[%s1 + $0x1e0] sm:$0xff]
  %v79 = vld [vmem:[%s1 + $0x1e8] sm:$0xff]
  %v80 = vld [vmem:[%s1 + $0x1f0] sm:$0xff]
  %v81 = vld [vmem:[%s1 + $0x1f8] sm:$0xff]
  %v82 = vld [vmem:[%s1 + $0x200] sm:$0xff]
  %v83 = vld [vmem:[%s1 + $0x208] sm:$0xff]
  %v84 = vld [vmem:[%s1 + $0x210] sm:$0xff]
  %v85 = vld [vmem:[%s1 + $0x218] sm:$0xff]
  %v86 = vld [vmem:[%s1 + $0x220] sm:$0xff]
  %v87 = vld [vmem:[%s1 + $0x228] sm:$0xff]
  %v88 = vld [vmem:[%s1 + $0x230] sm:$0xff]
  %v89 = vld [vmem:[%s1 + $0x238] sm:$0xff]
  %v90 = vld [vmem:[%s1 + $0x240] sm:$0xff]
  %v91 = vld [vmem:[%s1 + $0x248] sm:$0xff]
  %v92 = vld [vmem:[%s1 + $0x250] sm:$0xff]
  %v93 = vld [vmem:[%s1 + $0x258] sm:$0xff]
  %v94 = vld [vmem:[%s1 + $0x260] sm:$0xff]
  %v95 = vld [vmem:[%s1 + $0x268] sm:$0xff]
  %v96 = vld [vmem:[%s1 + $0x270] sm:$0xff]
  %v97 = vld [vmem:[%s1 + $0x278] sm:$0xff]
  %v98 = vld [vmem:[%s1 + $0x280] sm:$0xff]
  %v99 = vld [vmem:[%s1 + $0x288] sm:$0xff]
  %v100 = vld [vmem:[%s1 + $0x290] sm:$0xff]
  %v101 = vld [vmem:[%s1 + $0x298] sm:$0xff]
  %v102 = vld [vmem:[%s1 + $0x2a0] sm:$0xff]
  %v103 = vld [vmem:[%s1 + $0x2a8] sm:$0xff]
  %v104 = vld [vmem:[%s1 + $0x2b0] sm:$0xff]
  %v105 = vld [vmem:[%s1 + $0x2b8] sm:$0xff]
  %v106 = vld [vmem:[%s1 + $0x2c0] sm:$0xff]
  %v107 = vld [vmem:[%s1 + $0x2c8] sm:$0xff]
  %v108 = vld [vmem:[%s1 + $0x2d0] sm:$0xff]
  %v109 = vld [vmem:[%s1 + $0x2d8] sm:$0xff]
  %v110 = vld [vmem:[%s1 + $0x2e0] sm:$0xff]
  %v111 = vld [vmem:[%s1 + $0x2e8] sm:$0xff]
  %v112 = vld [vmem:[%s1 + $0x2f0] sm:$0xff]
  %v113 = vld [vmem:[%s1 + $0x2f8] sm:$0xff]
  %v114 = vld [vmem:[%s2] sm:$0x3f]
  %v116 = vlaneseq
  %v117 = vshrl.u32 %v116, 7
  %v118 = vsub.s32 0, %v117
  %v119 = vrot.slane %v114, %v118
  %v120 = vlaneseq
  %v121 = vshrl.u32 %v120, 7
  %v122 = vsub.s32 1, %v121
  %v123 = vrot.slane %v114, %v122
  %v124 = vlaneseq
  %v125 = vshrl.u32 %v124, 7
  %v126 = vsub.s32 2, %v125
  %v127 = vrot.slane %v114, %v126
  %v128 = vlaneseq
  %v129 = vshrl.u32 %v128, 7
  %v130 = vsub.s32 3, %v129
  %v131 = vrot.slane %v114, %v130
  %v132 = vlaneseq
  %v133 = vshrl.u32 %v132, 7
  %v134 = vsub.s32 4, %v133
  %v135 = vrot.slane %v114, %v134
  %v136 = vlaneseq
  %v137 = vshrl.u32 %v136, 7
  %v138 = vsub.s32 5, %v137
  %v139 = vrot.slane %v114, %v138
  %v150 = vunpack.c.l.b16 %v14
  %v151 = vunpack.c.h.b16 %v14
  %v152 = vunpack.c.l.b16 %v15
  %v153 = vunpack.c.h.b16 %v15
  %v154 = vunpack.c.l.b16 %v16
  %v155 = vunpack.c.h.b16 %v16
  %v156 = vunpack.c.l.b16 %v17
  %v157 = vunpack.c.h.b16 %v17
  %v158 = vpack.c.b16 %v152, %v150
  %v159 = vpack.c.b16 %v153, %v151
  %v160 = vpack.c.b16 %v156, %v154
  %v161 = vpack.c.b16 %v157, %v155
  %v262 = vunpack.c.l.b16 %v18
  %v263 = vunpack.c.h.b16 %v18
  %v264 = vunpack.c.l.b16 %v19
  %v265 = vunpack.c.h.b16 %v19
  %v266 = vunpack.c.l.b16 %v20
  %v267 = vunpack.c.h.b16 %v20
  %v268 = vunpack.c.l.b16 %v21
  %v269 = vunpack.c.h.b16 %v21
  %v270 = vunpack.c.l.b16 %v22
  %v271 = vunpack.c.h.b16 %v22
  %v272 = vunpack.c.l.b16 %v23
  %v273 = vunpack.c.h.b16 %v23
  %v274 = vunpack.c.l.b16 %v24
  %v275 = vunpack.c.h.b16 %v24
  %v276 = vunpack.c.l.b16 %v25
  %v277 = vunpack.c.h.b16 %v25
  %v278 = vunpack.c.l.b16 %v26
  %v279 = vunpack.c.h.b16 %v26
  %v280 = vunpack.c.l.b16 %v27
  %v281 = vunpack.c.h.b16 %v27
  %v282 = vunpack.c.l.b16 %v28
  %v283 = vunpack.c.h.b16 %v28
  %v284 = vunpack.c.l.b16 %v29
  %v285 = vunpack.c.h.b16 %v29
  %v286 = vunpack.c.l.b16 %v30
  %v287 = vunpack.c.h.b16 %v30
  %v288 = vunpack.c.l.b16 %v31
  %v289 = vunpack.c.h.b16 %v31
  %v290 = vunpack.c.l.b16 %v32
  %v291 = vunpack.c.h.b16 %v32
  %v292 = vunpack.c.l.b16 %v33
  %v293 = vunpack.c.h.b16 %v33
  %v294 = vunpack.c.l.b16 %v34
  %v295 = vunpack.c.h.b16 %v34
  %v296 = vunpack.c.l.b16 %v35
  %v297 = vunpack.c.h.b16 %v35
  %v298 = vunpack.c.l.b16 %v36
  %v299 = vunpack.c.h.b16 %v36
  %v300 = vunpack.c.l.b16 %v37
  %v301 = vunpack.c.h.b16 %v37
  %v302 = vunpack.c.l.b16 %v38
  %v303 = vunpack.c.h.b16 %v38
  %v304 = vunpack.c.l.b16 %v39
  %v305 = vunpack.c.h.b16 %v39
  %v306 = vunpack.c.l.b16 %v40
  %v307 = vunpack.c.h.b16 %v40
  %v308 = vunpack.c.l.b16 %v41
  %v309 = vunpack.c.h.b16 %v41
  %v310 = vunpack.c.l.b16 %v42
  %v311 = vunpack.c.h.b16 %v42
  %v312 = vunpack.c.l.b16 %v43
  %v313 = vunpack.c.h.b16 %v43
  %v314 = vunpack.c.l.b16 %v44
  %v315 = vunpack.c.h.b16 %v44
  %v316 = vunpack.c.l.b16 %v45
  %v317 = vunpack.c.h.b16 %v45
  %v318 = vunpack.c.l.b16 %v46
  %v319 = vunpack.c.h.b16 %v46
  %v320 = vunpack.c.l.b16 %v47
  %v321 = vunpack.c.h.b16 %v47
  %v322 = vunpack.c.l.b16 %v48
  %v323 = vunpack.c.h.b16 %v48
  %v324 = vunpack.c.l.b16 %v49
  %v325 = vunpack.c.h.b16 %v49
  %v326 = vunpack.c.l.b16 %v50
  %v327 = vunpack.c.h.b16 %v50
  %v328 = vunpack.c.l.b16 %v51
  %v329 = vunpack.c.h.b16 %v51
  %v330 = vunpack.c.l.b16 %v52
  %v331 = vunpack.c.h.b16 %v52
  %v332 = vunpack.c.l.b16 %v53
  %v333 = vunpack.c.h.b16 %v53
  %v334 = vunpack.c.l.b16 %v54
  %v335 = vunpack.c.h.b16 %v54
  %v336 = vunpack.c.l.b16 %v55
  %v337 = vunpack.c.h.b16 %v55
  %v338 = vunpack.c.l.b16 %v56
  %v339 = vunpack.c.h.b16 %v56
  %v340 = vunpack.c.l.b16 %v57
  %v341 = vunpack.c.h.b16 %v57
  %v342 = vunpack.c.l.b16 %v58
  %v343 = vunpack.c.h.b16 %v58
  %v344 = vunpack.c.l.b16 %v59
  %v345 = vunpack.c.h.b16 %v59
  %v346 = vunpack.c.l.b16 %v60
  %v347 = vunpack.c.h.b16 %v60
  %v348 = vunpack.c.l.b16 %v61
  %v349 = vunpack.c.h.b16 %v61
  %v350 = vunpack.c.l.b16 %v62
  %v351 = vunpack.c.h.b16 %v62
  %v352 = vunpack.c.l.b16 %v63
  %v353 = vunpack.c.h.b16 %v63
  %v354 = vunpack.c.l.b16 %v64
  %v355 = vunpack.c.h.b16 %v64
  %v356 = vunpack.c.l.b16 %v65
  %v357 = vunpack.c.h.b16 %v65
  %v358 = vunpack.c.l.b16 %v66
  %v359 = vunpack.c.h.b16 %v66
  %v360 = vunpack.c.l.b16 %v67
  %v361 = vunpack.c.h.b16 %v67
  %v362 = vunpack.c.l.b16 %v68
  %v363 = vunpack.c.h.b16 %v68
  %v364 = vunpack.c.l.b16 %v69
  %v365 = vunpack.c.h.b16 %v69
  %v366 = vunpack.c.l.b16 %v70
  %v367 = vunpack.c.h.b16 %v70
  %v368 = vunpack.c.l.b16 %v71
  %v369 = vunpack.c.h.b16 %v71
  %v370 = vunpack.c.l.b16 %v72
  %v371 = vunpack.c.h.b16 %v72
  %v372 = vunpack.c.l.b16 %v73
  %v373 = vunpack.c.h.b16 %v73
  %v374 = vunpack.c.l.b16 %v74
  %v375 = vunpack.c.h.b16 %v74
  %v376 = vunpack.c.l.b16 %v75
  %v377 = vunpack.c.h.b16 %v75
  %v378 = vunpack.c.l.b16 %v76
  %v379 = vunpack.c.h.b16 %v76
  %v380 = vunpack.c.l.b16 %v77
  %v381 = vunpack.c.h.b16 %v77
  %v382 = vunpack.c.l.b16 %v78
  %v383 = vunpack.c.h.b16 %v78
  %v384 = vunpack.c.l.b16 %v79
  %v385 = vunpack.c.h.b16 %v79
  %v386 = vunpack.c.l.b16 %v80
  %v387 = vunpack.c.h.b16 %v80
  %v388 = vunpack.c.l.b16 %v81
  %v389 = vunpack.c.h.b16 %v81
  %v390 = vunpack.c.l.b16 %v82
  %v391 = vunpack.c.h.b16 %v82
  %v392 = vunpack.c.l.b16 %v83
  %v393 = vunpack.c.h.b16 %v83
  %v394 = vunpack.c.l.b16 %v84
  %v395 = vunpack.c.h.b16 %v84
  %v396 = vunpack.c.l.b16 %v85
  %v397 = vunpack.c.h.b16 %v85
  %v398 = vunpack.c.l.b16 %v86
  %v399 = vunpack.c.h.b16 %v86
  %v400 = vunpack.c.l.b16 %v87
  %v401 = vunpack.c.h.b16 %v87
  %v402 = vunpack.c.l.b16 %v88
  %v403 = vunpack.c.h.b16 %v88
  %v404 = vunpack.c.l.b16 %v89
  %v405 = vunpack.c.h.b16 %v89
  %v406 = vunpack.c.l.b16 %v90
  %v407 = vunpack.c.h.b16 %v90
  %v408 = vunpack.c.l.b16 %v91
  %v409 = vunpack.c.h.b16 %v91
  %v410 = vunpack.c.l.b16 %v92
  %v411 = vunpack.c.h.b16 %v92
  %v412 = vunpack.c.l.b16 %v93
  %v413 = vunpack.c.h.b16 %v93
  %v414 = vunpack.c.l.b16 %v94
  %v415 = vunpack.c.h.b16 %v94
  %v416 = vunpack.c.l.b16 %v95
  %v417 = vunpack.c.h.b16 %v95
  %v418 = vunpack.c.l.b16 %v96
  %v419 = vunpack.c.h.b16 %v96
  %v420 = vunpack.c.l.b16 %v97
  %v421 = vunpack.c.h.b16 %v97
  %v422 = vunpack.c.l.b16 %v98
  %v423 = vunpack.c.h.b16 %v98
  %v424 = vunpack.c.l.b16 %v99
  %v425 = vunpack.c.h.b16 %v99
  %v426 = vunpack.c.l.b16 %v100
  %v427 = vunpack.c.h.b16 %v100
  %v428 = vunpack.c.l.b16 %v101
  %v429 = vunpack.c.h.b16 %v101
  %v430 = vunpack.c.l.b16 %v102
  %v431 = vunpack.c.h.b16 %v102
  %v432 = vunpack.c.l.b16 %v103
  %v433 = vunpack.c.h.b16 %v103
  %v434 = vunpack.c.l.b16 %v104
  %v435 = vunpack.c.h.b16 %v104
  %v436 = vunpack.c.l.b16 %v105
  %v437 = vunpack.c.h.b16 %v105
  %v438 = vunpack.c.l.b16 %v106
  %v439 = vunpack.c.h.b16 %v106
  %v440 = vunpack.c.l.b16 %v107
  %v441 = vunpack.c.h.b16 %v107
  %v442 = vunpack.c.l.b16 %v108
  %v443 = vunpack.c.h.b16 %v108
  %v444 = vunpack.c.l.b16 %v109
  %v445 = vunpack.c.h.b16 %v109
  %v446 = vunpack.c.l.b16 %v110
  %v447 = vunpack.c.h.b16 %v110
  %v448 = vunpack.c.l.b16 %v111
  %v449 = vunpack.c.h.b16 %v111
  %v450 = vunpack.c.l.b16 %v112
  %v451 = vunpack.c.h.b16 %v112
  %v452 = vunpack.c.l.b16 %v113
  %v453 = vunpack.c.h.b16 %v113
  %v454 = vpack.c.b16 %v268, %v262
  %v455 = vpack.c.b16 %v269, %v263
  %v456 = vpack.c.b16 %v270, %v264
  %v457 = vpack.c.b16 %v271, %v265
  %v458 = vpack.c.b16 %v272, %v266
  %v459 = vpack.c.b16 %v273, %v267
  %v460 = vpack.c.b16 %v280, %v274
  %v461 = vpack.c.b16 %v281, %v275
  %v462 = vpack.c.b16 %v282, %v276
  %v463 = vpack.c.b16 %v283, %v277
  %v464 = vpack.c.b16 %v284, %v278
  %v465 = vpack.c.b16 %v285, %v279
  %v466 = vpack.c.b16 %v292, %v286
  %v467 = vpack.c.b16 %v293, %v287
  %v468 = vpack.c.b16 %v294, %v288
  %v469 = vpack.c.b16 %v295, %v289
  %v470 = vpack.c.b16 %v296, %v290
  %v471 = vpack.c.b16 %v297, %v291
  %v472 = vpack.c.b16 %v304, %v298
  %v473 = vpack.c.b16 %v305, %v299
  %v474 = vpack.c.b16 %v306, %v300
  %v475 = vpack.c.b16 %v307, %v301
  %v476 = vpack.c.b16 %v308, %v302
  %v477 = vpack.c.b16 %v309, %v303
  %v478 = vpack.c.b16 %v316, %v310
  %v479 = vpack.c.b16 %v317, %v311
  %v480 = vpack.c.b16 %v318, %v312
  %v481 = vpack.c.b16 %v319, %v313
  %v482 = vpack.c.b16 %v320, %v314
  %v483 = vpack.c.b16 %v321, %v315
  %v484 = vpack.c.b16 %v328, %v322
  %v485 = vpack.c.b16 %v329, %v323
  %v486 = vpack.c.b16 %v330, %v324
  %v487 = vpack.c.b16 %v331, %v325
  %v488 = vpack.c.b16 %v332, %v326
  %v489 = vpack.c.b16 %v333, %v327
  %v490 = vpack.c.b16 %v340, %v334
  %v491 = vpack.c.b16 %v341, %v335
  %v492 = vpack.c.b16 %v342, %v336
  %v493 = vpack.c.b16 %v343, %v337
  %v494 = vpack.c.b16 %v344, %v338
  %v495 = vpack.c.b16 %v345, %v339
  %v496 = vpack.c.b16 %v352, %v346
  %v497 = vpack.c.b16 %v353, %v347
  %v498 = vpack.c.b16 %v354, %v348
  %v499 = vpack.c.b16 %v355, %v349
  %v500 = vpack.c.b16 %v356, %v350
  %v501 = vpack.c.b16 %v357, %v351
  %v502 = vpack.c.b16 %v364, %v358
  %v503 = vpack.c.b16 %v365, %v359
  %v504 = vpack.c.b16 %v366, %v360
  %v505 = vpack.c.b16 %v367, %v361
  %v506 = vpack.c.b16 %v368, %v362
  %v507 = vpack.c.b16 %v369, %v363
  %v508 = vpack.c.b16 %v376, %v370
  %v509 = vpack.c.b16 %v377, %v371
  %v510 = vpack.c.b16 %v378, %v372
  %v511 = vpack.c.b16 %v379, %v373
  %v512 = vpack.c.b16 %v380, %v374
  %v513 = vpack.c.b16 %v381, %v375
  %v514 = vpack.c.b16 %v388, %v382
  %v515 = vpack.c.b16 %v389, %v383
  %v516 = vpack.c.b16 %v390, %v384
  %v517 = vpack.c.b16 %v391, %v385
  %v518 = vpack.c.b16 %v392, %v386
  %v519 = vpack.c.b16 %v393, %v387
  %v520 = vpack.c.b16 %v400, %v394
  %v521 = vpack.c.b16 %v401, %v395
  %v522 = vpack.c.b16 %v402, %v396
  %v523 = vpack.c.b16 %v403, %v397
  %v524 = vpack.c.b16 %v404, %v398
  %v525 = vpack.c.b16 %v405, %v399
  %v526 = vpack.c.b16 %v412, %v406
  %v527 = vpack.c.b16 %v413, %v407
  %v528 = vpack.c.b16 %v414, %v408
  %v529 = vpack.c.b16 %v415, %v409
  %v530 = vpack.c.b16 %v416, %v410
  %v531 = vpack.c.b16 %v417, %v411
  %v532 = vpack.c.b16 %v424, %v418
  %v533 = vpack.c.b16 %v425, %v419
  %v534 = vpack.c.b16 %v426, %v420
  %v535 = vpack.c.b16 %v427, %v421
  %v536 = vpack.c.b16 %v428, %v422
  %v537 = vpack.c.b16 %v429, %v423
  %v538 = vpack.c.b16 %v436, %v430
  %v539 = vpack.c.b16 %v437, %v431
  %v540 = vpack.c.b16 %v438, %v432
  %v541 = vpack.c.b16 %v439, %v433
  %v542 = vpack.c.b16 %v440, %v434
  %v543 = vpack.c.b16 %v441, %v435
  %v544 = vpack.c.b16 %v448, %v442
  %v545 = vpack.c.b16 %v449, %v443
  %v546 = vpack.c.b16 %v450, %v444
  %v547 = vpack.c.b16 %v451, %v445
  %v548 = vpack.c.b16 %v452, %v446
  %v549 = vpack.c.b16 %v453, %v447
  %646 = vmatprep.subr.bf16.mxu0 %v455
  %647 = vmatpush1.bf16.msra.mxu0 %v454
  %648 = vmatprep.subr.bf16.mxu0 %v461
  %649 = vmatpush1.bf16.msra.mxu0 %v460
  %650 = vmatprep.subr.bf16.mxu0 %v467
  %651 = vmatpush1.bf16.msra.mxu0 %v466
  %652 = vmatprep.subr.bf16.mxu0 %v473
  %653 = vmatpush1.bf16.msra.mxu0 %v472
  %654 = vmatprep.subr.bf16.mxu0 %v479
  %655 = vmatpush1.bf16.msra.mxu0 %v478
  %656 = vmatprep.subr.bf16.mxu0 %v485
  %657 = vmatpush1.bf16.msra.mxu0 %v484
  %658 = vmatprep.subr.bf16.mxu0 %v491
  %659 = vmatpush1.bf16.msra.mxu0 %v490
  %660 = vmatprep.subr.bf16.mxu0 %v497
  %661 = vmatpush1.bf16.msra.mxu0 %v496
  %662 = vmatprep.subr.bf16.mxu0 %v503
  %663 = vmatpush1.bf16.msra.mxu0 %v502
  %664 = vmatprep.subr.bf16.mxu0 %v509
  %665 = vmatpush1.bf16.msra.mxu0 %v508
  %666 = vmatprep.subr.bf16.mxu0 %v515
  %667 = vmatpush1.bf16.msra.mxu0 %v514
  %668 = vmatprep.subr.bf16.mxu0 %v521
  %669 = vmatpush1.bf16.msra.mxu0 %v520
  %670 = vmatprep.subr.bf16.mxu0 %v527
  %671 = vmatpush1.bf16.msra.mxu0 %v526
  %672 = vmatprep.subr.bf16.mxu0 %v533
  %673 = vmatpush1.bf16.msra.mxu0 %v532
  %674 = vmatprep.subr.bf16.mxu0 %v539
  %675 = vmatpush1.bf16.msra.mxu0 %v538
  %676 = vmatprep.subr.bf16.mxu0 %v545
  %677 = vmatpush1.bf16.msra.mxu0 %v544
  %678 = vmatprep.mubr.bf16.mxu0 %v159
  %679 = vmatmul.mubr.bf16.gmra.mrb[0].mxu0 %v158
  %v680 = vpop.f32.mrb[0].mxu0
  %v681 = vadd.f32 %v119, %v680
  %v682 = vpop.f32.mrb[0].mxu0
  %v683 = vadd.f32 %v123, %v682
  %v684 = vpop.f32.mrb[0].mxu0
  %v685 = vadd.f32 %v119, %v684
  %v686 = vpop.f32.mrb[0].mxu0
  %v687 = vadd.f32 %v123, %v686
  %688 = vmatprep.mubr.bf16.mxu0 %v161
  %689 = vmatmul.mubr.bf16.gmra.mrb[0].mxu0 %v160
  %v690 = vpop.f32.mrb[0].mxu0
  %v691 = vadd.f32 %v119, %v690
  %v692 = vpop.f32.mrb[0].mxu0
  %v693 = vadd.f32 %v123, %v692
  %v694 = vpop.f32.mrb[0].mxu0
  %v695 = vadd.f32 %v119, %v694
  %v696 = vpop.f32.mrb[0].mxu0
  %v697 = vadd.f32 %v123, %v696
  %698 = vdwg.mxu0
  %699 = vmatprep.subr.bf16.mxu0 %v457
  %700 = vmatpush1.bf16.msra.mxu0 %v456
  %701 = vmatprep.subr.bf16.mxu0 %v463
  %702 = vmatpush1.bf16.msra.mxu0 %v462
  %703 = vmatprep.subr.bf16.mxu0 %v469
  %704 = vmatpush1.bf16.msra.mxu0 %v468
  %705 = vmatprep.subr.bf16.mxu0 %v475
  %706 = vmatpush1.bf16.msra.mxu0 %v474
  %707 = vmatprep.subr.bf16.mxu0 %v481
  %708 = vmatpush1.bf16.msra.mxu0 %v480
  %709 = vmatprep.subr.bf16.mxu0 %v487
  %710 = vmatpush1.bf16.msra.mxu0 %v486
  %711 = vmatprep.subr.bf16.mxu0 %v493
  %712 = vmatpush1.bf16.msra.mxu0 %v492
  %713 = vmatprep.subr.bf16.mxu0 %v499
  %714 = vmatpush1.bf16.msra.mxu0 %v498
  %715 = vmatprep.subr.bf16.mxu0 %v505
  %716 = vmatpush1.bf16.msra.mxu0 %v504
  %717 = vmatprep.subr.bf16.mxu0 %v511
  %718 = vmatpush1.bf16.msra.mxu0 %v510
  %719 = vmatprep.subr.bf16.mxu0 %v517
  %720 = vmatpush1.bf16.msra.mxu0 %v516
  %721 = vmatprep.subr.bf16.mxu0 %v523
  %722 = vmatpush1.bf16.msra.mxu0 %v522
  %723 = vmatprep.subr.bf16.mxu0 %v529
  %724 = vmatpush1.bf16.msra.mxu0 %v528
  %725 = vmatprep.subr.bf16.mxu0 %v535
  %726 = vmatpush1.bf16.msra.mxu0 %v534
  %727 = vmatprep.subr.bf16.mxu0 %v541
  %728 = vmatpush1.bf16.msra.mxu0 %v540
  %729 = vmatprep.subr.bf16.mxu0 %v547
  %730 = vmatpush1.bf16.msra.mxu0 %v546
  %731 = vmatprep.mubr.bf16.mxu0 %v159
  %732 = vmatmul.mubr.bf16.gmra.mrb[0].mxu0 %v158
  %v733 = vpop.f32.mrb[0].mxu0
  %v734 = vadd.f32 %v127, %v733
  %v735 = vpop.f32.mrb[0].mxu0
  %v736 = vadd.f32 %v131, %v735
  %v737 = vpop.f32.mrb[0].mxu0
  %v738 = vadd.f32 %v127, %v737
  %v739 = vpop.f32.mrb[0].mxu0
  %v740 = vadd.f32 %v131, %v739
  %741 = vmatprep.mubr.bf16.mxu0 %v161
  %742 = vmatmul.mubr.bf16.gmra.mrb[0].mxu0 %v160
  %v743 = vpop.f32.mrb[0].mxu0
  %v744 = vadd.f32 %v127, %v743
  %v745 = vpop.f32.mrb[0].mxu0
  %v746 = vadd.f32 %v131, %v745
  %v747 = vpop.f32.mrb[0].mxu0
  %v748 = vadd.f32 %v127, %v747
  %v749 = vpop.f32.mrb[0].mxu0
  %v750 = vadd.f32 %v131, %v749
  %751 = vdwg.mxu0
  %752 = vmatprep.subr.bf16.mxu0 %v459
  %753 = vmatpush1.bf16.msra.mxu0 %v458
  %754 = vmatprep.subr.bf16.mxu0 %v465
  %755 = vmatpush1.bf16.msra.mxu0 %v464
  %756 = vmatprep.subr.bf16.mxu0 %v471
  %757 = vmatpush1.bf16.msra.mxu0 %v470
  %758 = vmatprep.subr.bf16.mxu0 %v477
  %759 = vmatpush1.bf16.msra.mxu0 %v476
  %760 = vmatprep.subr.bf16.mxu0 %v483
  %761 = vmatpush1.bf16.msra.mxu0 %v482
  %762 = vmatprep.subr.bf16.mxu0 %v489
  %763 = vmatpush1.bf16.msra.mxu0 %v488
  %764 = vmatprep.subr.bf16.mxu0 %v495
  %765 = vmatpush1.bf16.msra.mxu0 %v494
  %766 = vmatprep.subr.bf16.mxu0 %v501
  %767 = vmatpush1.bf16.msra.mxu0 %v500
  %768 = vmatprep.subr.bf16.mxu0 %v507
  %769 = vmatpush1.bf16.msra.mxu0 %v506
  %770 = vmatprep.subr.bf16.mxu0 %v513
  %771 = vmatpush1.bf16.msra.mxu0 %v512
  %772 = vmatprep.subr.bf16.mxu0 %v519
  %773 = vmatpush1.bf16.msra.mxu0 %v518
  %774 = vmatprep.subr.bf16.mxu0 %v525
  %775 = vmatpush1.bf16.msra.mxu0 %v524
  %776 = vmatprep.subr.bf16.mxu0 %v531
  %777 = vmatpush1.bf16.msra.mxu0 %v530
  %778 = vmatprep.subr.bf16.mxu0 %v537
  %779 = vmatpush1.bf16.msra.mxu0 %v536
  %780 = vmatprep.subr.bf16.mxu0 %v543
  %781 = vmatpush1.bf16.msra.mxu0 %v542
  %782 = vmatprep.subr.bf16.mxu0 %v549
  %783 = vmatpush1.bf16.msra.mxu0 %v548
  %784 = vmatprep.mubr.bf16.mxu0 %v159
  %785 = vmatmul.mubr.bf16.gmra.mrb[0].mxu0 %v158
  %v786 = vpop.f32.mrb[0].mxu0
  %v787 = vadd.f32 %v135, %v786
  %v788 = vpop.f32.mrb[0].mxu0
  %v789 = vadd.f32 %v139, %v788
  %v790 = vpop.f32.mrb[0].mxu0
  %v791 = vadd.f32 %v135, %v790
  %v792 = vpop.f32.mrb[0].mxu0
  %v793 = vadd.f32 %v139, %v792
  %794 = vmatprep.mubr.bf16.mxu0 %v161
  %795 = vmatmul.mubr.bf16.gmra.mrb[0].mxu0 %v160
  %v796 = vpop.f32.mrb[0].mxu0
  %v797 = vadd.f32 %v135, %v796
  %v798 = vpop.f32.mrb[0].mxu0
  %v799 = vadd.f32 %v139, %v798
  %v800 = vpop.f32.mrb[0].mxu0
  %v801 = vadd.f32 %v135, %v800
  %v802 = vpop.f32.mrb[0].mxu0
  %v803 = vadd.f32 %v139, %v802
  %804 = vdwg.mxu0
  %v805 = vpack.c.bf16 %v685, %v681
  %v806 = vpack.c.bf16 %v687, %v683
  %v807 = vpack.c.bf16 %v738, %v734
  %v808 = vpack.c.bf16 %v740, %v736
  %v809 = vpack.c.bf16 %v791, %v787
  %v810 = vpack.c.bf16 %v793, %v789
  %v811 = vpack.c.bf16 %v695, %v691
  %v812 = vpack.c.bf16 %v697, %v693
  %v813 = vpack.c.bf16 %v748, %v744
  %v814 = vpack.c.bf16 %v750, %v746
  %v815 = vpack.c.bf16 %v801, %v797
  %v816 = vpack.c.bf16 %v803, %v799
  %v829 = vunpack.c.l.b16 %v805
  %v830 = vunpack.c.l.b16 %v806
  %v831 = vunpack.c.l.b16 %v807
  %v832 = vunpack.c.l.b16 %v808
  %v833 = vunpack.c.l.b16 %v809
  %v834 = vunpack.c.l.b16 %v810
  %v835 = vunpack.c.h.b16 %v805
  %v836 = vunpack.c.h.b16 %v806
  %v837 = vunpack.c.h.b16 %v807
  %v838 = vunpack.c.h.b16 %v808
  %v839 = vunpack.c.h.b16 %v809
  %v840 = vunpack.c.h.b16 %v810
  %v841 = vunpack.c.l.b16 %v811
  %v842 = vunpack.c.l.b16 %v812
  %v843 = vunpack.c.l.b16 %v813
  %v844 = vunpack.c.l.b16 %v814
  %v845 = vunpack.c.l.b16 %v815
  %v846 = vunpack.c.l.b16 %v816
  %v847 = vunpack.c.h.b16 %v811
  %v848 = vunpack.c.h.b16 %v812
  %v849 = vunpack.c.h.b16 %v813
  %v850 = vunpack.c.h.b16 %v814
  %v851 = vunpack.c.h.b16 %v815
  %v852 = vunpack.c.h.b16 %v816
  %v853 = vpack.c.b16 %v830, %v829
  %v854 = vpack.c.b16 %v832, %v831
  %v855 = vpack.c.b16 %v834, %v833
  %v856 = vpack.c.b16 %v836, %v835
  %v857 = vpack.c.b16 %v838, %v837
  %v858 = vpack.c.b16 %v840, %v839
  %v859 = vpack.c.b16 %v842, %v841
  %v860 = vpack.c.b16 %v844, %v843
  %v861 = vpack.c.b16 %v846, %v845
  %v862 = vpack.c.b16 %v848, %v847
  %v863 = vpack.c.b16 %v850, %v849
  %v864 = vpack.c.b16 %v852, %v851
  %877 = vst [vmem:[%s3] sm:$0xff] %v853
  %878 = vst [vmem:[%s3 + $0x8] sm:$0xff] %v854
  %879 = vst [vmem:[%s3 + $0x10] sm:$0xff] %v855
  %880 = vst [vmem:[%s3 + $0x18] sm:$0xff] %v856
  %881 = vst [vmem:[%s3 + $0x20] sm:$0xff] %v857
  %882 = vst [vmem:[%s3 + $0x28] sm:$0xff] %v858
  %883 = vst [vmem:[%s3 + $0x30] sm:$0xff] %v859
  %884 = vst [vmem:[%s3 + $0x38] sm:$0xff] %v860
  %885 = vst [vmem:[%s3 + $0x40] sm:$0xff] %v861
  %886 = vst [vmem:[%s3 + $0x48] sm:$0xff] %v862
  %887 = vst [vmem:[%s3 + $0x50] sm:$0xff] %v863
  %888 = vst [vmem:[%s3 + $0x58] sm:$0xff] %v864
  // Predicated region
  $region14: #{roberta_multilabel_forward.13} parent=0 // pred_check
    _
  $region15: #{roberta_multilabel_forward.13} parent=0 // pred_check_branch
    %890 = sbr.rel (0) target = $region17
  $region16: #{roberta_multilabel_forward.13} parent=0 // pred_region
    _
  $region17: #{roberta_multilabel_forward.13} parent=0 // pred_fallthru
    _
  // Predicated region
  $region18: #{roberta_multilabel_forward.13} parent=0 // pred_check
    _
  $region19: #{roberta_multilabel_forward.13} parent=0 // pred_check_branch
    %892 = sbr.rel (0) target = $region21
  $region20: #{roberta_multilabel_forward.13} parent=0 // pred_region
    _
  $region21: #{roberta_multilabel_forward.13} parent=0 // pred_fallthru
    _

// kernel: roberta_multilabel_forward.16
$region0: #{roberta_multilabel_forward.16}
  #allocation0 [shape = 'u32[]', space=smem, size = 0x4, offset = 0x4, fixed_abs, tag = 'smem constant byte address 0x4 - core index']
  #allocation1 [shape = 'u32[144,128]{1,0:T(1,128)}', space=vmem, size = 0x12000, scoped, tag = 'internal scratch']
  %s0 = inlined_call_operand.vmem [shape: bf16[32,256], index: 0, kind: input, shape index: {}]
  %s1 = inlined_call_operand.vmem [shape: bf16[256,512], index: 1, kind: input, shape index: {}]
  %s2 = inlined_call_operand.vmem [shape: f32[1,512], index: 2, kind: input, shape index: {}]
  %s3 = inlined_call_operand.vmem [shape: bf16[32,512], index: 3, kind: output, shape index: {}]
  %s4 = sld [smem:[#allocation0]]
  $region22: #{roberta_multilabel_forward.16} parent=0
    _
  %s6 = ssub.s32 1, %s4
  %s7 = scalar_select 0, %s6, %s4
  // Predicated region
  $region2: #{roberta_multilabel_forward.16} parent=0 // pred_check
    _
  $region3: #{roberta_multilabel_forward.16} parent=0 // pred_check_branch
    %9 = sbr.rel (0) target = $region5
  $region4: #{roberta_multilabel_forward.16} parent=0 // pred_region
    _
  $region5: #{roberta_multilabel_forward.16} parent=0 // pred_fallthru
    _
  // Predicated region
  $region6: #{roberta_multilabel_forward.16} parent=0 // pred_check
    _
  $region7: #{roberta_multilabel_forward.16} parent=0 // pred_check_branch
    %11 = sbr.rel (0) target = $region9
  $region8: #{roberta_multilabel_forward.16} parent=0 // pred_region
    _
  $region9: #{roberta_multilabel_forward.16} parent=0 // pred_fallthru
    _
  // Predicated region
  $region10: #{roberta_multilabel_forward.16} parent=0 // pred_check
    _
  $region11: #{roberta_multilabel_forward.16} parent=0 // pred_check_branch
    %13 = sbr.rel (0) target = $region13
  $region12: #{roberta_multilabel_forward.16} parent=0 // pred_region
    _
  $region13: #{roberta_multilabel_forward.16} parent=0 // pred_fallthru
    _
  %v14 = vld [vmem:[%s0] sm:$0xff]
  %v15 = vld [vmem:[%s0 + $0x8] sm:$0xff]
  %v16 = vld [vmem:[%s0 + $0x10] sm:$0xff]
  %v17 = vld [vmem:[%s0 + $0x18] sm:$0xff]
  %v18 = vld [vmem:[%s1] sm:$0xff]
  %v19 = vld [vmem:[%s1 + $0x8] sm:$0xff]
  %v20 = vld [vmem:[%s1 + $0x10] sm:$0xff]
  %v21 = vld [vmem:[%s1 + $0x18] sm:$0xff]
  %v22 = vld [vmem:[%s1 + $0x20] sm:$0xff]
  %v23 = vld [vmem:[%s1 + $0x28] sm:$0xff]
  %v24 = vld [vmem:[%s1 + $0x30] sm:$0xff]
  %v25 = vld [vmem:[%s1 + $0x38] sm:$0xff]
  %v26 = vld [vmem:[%s1 + $0x40] sm:$0xff]
  %v27 = vld [vmem:[%s1 + $0x48] sm:$0xff]
  %v28 = vld [vmem:[%s1 + $0x50] sm:$0xff]
  %v29 = vld [vmem:[%s1 + $0x58] sm:$0xff]
  %v30 = vld [vmem:[%s1 + $0x60] sm:$0xff]
  %v31 = vld [vmem:[%s1 + $0x68] sm:$0xff]
  %v32 = vld [vmem:[%s1 + $0x70] sm:$0xff]
  %v33 = vld [vmem:[%s1 + $0x78] sm:$0xff]
  %v34 = vld [vmem:[%s1 + $0x80] sm:$0xff]
  %v35 = vld [vmem:[%s1 + $0x88] sm:$0xff]
  %v36 = vld [vmem:[%s1 + $0x90] sm:$0xff]
  %v37 = vld [vmem:[%s1 + $0x98] sm:$0xff]
  %v38 = vld [vmem:[%s1 + $0xa0] sm:$0xff]
  %v39 = vld [vmem:[%s1 + $0xa8] sm:$0xff]
  %v40 = vld [vmem:[%s1 + $0xb0] sm:$0xff]
  %v41 = vld [vmem:[%s1 + $0xb8] sm:$0xff]
  %v42 = vld [vmem:[%s1 + $0xc0] sm:$0xff]
  %v43 = vld [vmem:[%s1 + $0xc8] sm:$0xff]
  %v44 = vld [vmem:[%s1 + $0xd0] sm:$0xff]
  %v45 = vld [vmem:[%s1 + $0xd8] sm:$0xff]
  %v46 = vld [vmem:[%s1 + $0xe0] sm:$0xff]
  %v47 = vld [vmem:[%s1 + $0xe8] sm:$0xff]
  %v48 = vld [vmem:[%s1 + $0xf0] sm:$0xff]
  %v49 = vld [vmem:[%s1 + $0xf8] sm:$0xff]
  %v50 = vld [vmem:[%s1 + $0x100] sm:$0xff]
  %v51 = vld [vmem:[%s1 + $0x108] sm:$0xff]
  %v52 = vld [vmem:[%s1 + $0x110] sm:$0xff]
  %v53 = vld [vmem:[%s1 + $0x118] sm:$0xff]
  %v54 = vld [vmem:[%s1 + $0x120] sm:$0xff]
  %v55 = vld [vmem:[%s1 + $0x128] sm:$0xff]
  %v56 = vld [vmem:[%s1 + $0x130] sm:$0xff]
  %v57 = vld [vmem:[%s1 + $0x138] sm:$0xff]
  %v58 = vld [vmem:[%s1 + $0x140] sm:$0xff]
  %v59 = vld [vmem:[%s1 + $0x148] sm:$0xff]
  %v60 = vld [vmem:[%s1 + $0x150] sm:$0xff]
  %v61 = vld [vmem:[%s1 + $0x158] sm:$0xff]
  %v62 = vld [vmem:[%s1 + $0x160] sm:$0xff]
  %v63 = vld [vmem:[%s1 + $0x168] sm:$0xff]
  %v64 = vld [vmem:[%s1 + $0x170] sm:$0xff]
  %v65 = vld [vmem:[%s1 + $0x178] sm:$0xff]
  %v66 = vld [vmem:[%s1 + $0x180] sm:$0xff]
  %v67 = vld [vmem:[%s1 + $0x188] sm:$0xff]
  %v68 = vld [vmem:[%s1 + $0x190] sm:$0xff]
  %v69 = vld [vmem:[%s1 + $0x198] sm:$0xff]
  %v70 = vld [vmem:[%s1 + $0x1a0] sm:$0xff]
  %v71 = vld [vmem:[%s1 + $0x1a8] sm:$0xff]
  %v72 = vld [vmem:[%s1 + $0x1b0] sm:$0xff]
  %v73 = vld [vmem:[%s1 + $0x1b8] sm:$0xff]
  %v74 = vld [vmem:[%s1 + $0x1c0] sm:$0xff]
  %v75 = vld [vmem:[%s1 + $0x1c8] sm:$0xff]
  %v76 = vld [vmem:[%s1 + $0x1d0] sm:$0xff]
  %v77 = vld [vmem:[%s1 + $0x1d8] sm:$0xff]
  %v78 = vld [vmem:[%s1 + $0x1e0] sm:$0xff]
  %v79 = vld [vmem:[%s1 + $0x1e8] sm:$0xff]
  %v80 = vld [vmem:[%s1 + $0x1f0] sm:$0xff]
  %v81 = vld [vmem:[%s1 + $0x1f8] sm:$0xff]
  %v82 = vld [vmem:[%s2] sm:$0xf]
  %v84 = vlaneseq
  %v85 = vshrl.u32 %v84, 7
  %v86 = vsub.s32 0, %v85
  %v87 = vrot.slane %v82, %v86
  %v88 = vlaneseq
  %v89 = vshrl.u32 %v88, 7
  %v90 = vsub.s32 1, %v89
  %v91 = vrot.slane %v82, %v90
  %v92 = vlaneseq
  %v93 = vshrl.u32 %v92, 7
  %v94 = vsub.s32 2, %v93
  %v95 = vrot.slane %v82, %v94
  %v96 = vlaneseq
  %v97 = vshrl.u32 %v96, 7
  %v98 = vsub.s32 3, %v97
  %v99 = vrot.slane %v82, %v98
  %v108 = vunpack.c.l.b16 %v14
  %v109 = vunpack.c.h.b16 %v14
  %v110 = vunpack.c.l.b16 %v15
  %v111 = vunpack.c.h.b16 %v15
  %v112 = vunpack.c.l.b16 %v16
  %v113 = vunpack.c.h.b16 %v16
  %v114 = vunpack.c.l.b16 %v17
  %v115 = vunpack.c.h.b16 %v17
  %v116 = vpack.c.b16 %v110, %v108
  %v117 = vpack.c.b16 %v111, %v109
  %v118 = vpack.c.b16 %v114, %v112
  %v119 = vpack.c.b16 %v115, %v113
  %v188 = vunpack.c.l.b16 %v18
  %v189 = vunpack.c.h.b16 %v18
  %v190 = vunpack.c.l.b16 %v19
  %v191 = vunpack.c.h.b16 %v19
  %v192 = vunpack.c.l.b16 %v20
  %v193 = vunpack.c.h.b16 %v20
  %v194 = vunpack.c.l.b16 %v21
  %v195 = vunpack.c.h.b16 %v21
  %v196 = vunpack.c.l.b16 %v22
  %v197 = vunpack.c.h.b16 %v22
  %v198 = vunpack.c.l.b16 %v23
  %v199 = vunpack.c.h.b16 %v23
  %v200 = vunpack.c.l.b16 %v24
  %v201 = vunpack.c.h.b16 %v24
  %v202 = vunpack.c.l.b16 %v25
  %v203 = vunpack.c.h.b16 %v25
  %v204 = vunpack.c.l.b16 %v26
  %v205 = vunpack.c.h.b16 %v26
  %v206 = vunpack.c.l.b16 %v27
  %v207 = vunpack.c.h.b16 %v27
  %v208 = vunpack.c.l.b16 %v28
  %v209 = vunpack.c.h.b16 %v28
  %v210 = vunpack.c.l.b16 %v29
  %v211 = vunpack.c.h.b16 %v29
  %v212 = vunpack.c.l.b16 %v30
  %v213 = vunpack.c.h.b16 %v30
  %v214 = vunpack.c.l.b16 %v31
  %v215 = vunpack.c.h.b16 %v31
  %v216 = vunpack.c.l.b16 %v32
  %v217 = vunpack.c.h.b16 %v32
  %v218 = vunpack.c.l.b16 %v33
  %v219 = vunpack.c.h.b16 %v33
  %v220 = vunpack.c.l.b16 %v34
  %v221 = vunpack.c.h.b16 %v34
  %v222 = vunpack.c.l.b16 %v35
  %v223 = vunpack.c.h.b16 %v35
  %v224 = vunpack.c.l.b16 %v36
  %v225 = vunpack.c.h.b16 %v36
  %v226 = vunpack.c.l.b16 %v37
  %v227 = vunpack.c.h.b16 %v37
  %v228 = vunpack.c.l.b16 %v38
  %v229 = vunpack.c.h.b16 %v38
  %v230 = vunpack.c.l.b16 %v39
  %v231 = vunpack.c.h.b16 %v39
  %v232 = vunpack.c.l.b16 %v40
  %v233 = vunpack.c.h.b16 %v40
  %v234 = vunpack.c.l.b16 %v41
  %v235 = vunpack.c.h.b16 %v41
  %v236 = vunpack.c.l.b16 %v42
  %v237 = vunpack.c.h.b16 %v42
  %v238 = vunpack.c.l.b16 %v43
  %v239 = vunpack.c.h.b16 %v43
  %v240 = vunpack.c.l.b16 %v44
  %v241 = vunpack.c.h.b16 %v44
  %v242 = vunpack.c.l.b16 %v45
  %v243 = vunpack.c.h.b16 %v45
  %v244 = vunpack.c.l.b16 %v46
  %v245 = vunpack.c.h.b16 %v46
  %v246 = vunpack.c.l.b16 %v47
  %v247 = vunpack.c.h.b16 %v47
  %v248 = vunpack.c.l.b16 %v48
  %v249 = vunpack.c.h.b16 %v48
  %v250 = vunpack.c.l.b16 %v49
  %v251 = vunpack.c.h.b16 %v49
  %v252 = vunpack.c.l.b16 %v50
  %v253 = vunpack.c.h.b16 %v50
  %v254 = vunpack.c.l.b16 %v51
  %v255 = vunpack.c.h.b16 %v51
  %v256 = vunpack.c.l.b16 %v52
  %v257 = vunpack.c.h.b16 %v52
  %v258 = vunpack.c.l.b16 %v53
  %v259 = vunpack.c.h.b16 %v53
  %v260 = vunpack.c.l.b16 %v54
  %v261 = vunpack.c.h.b16 %v54
  %v262 = vunpack.c.l.b16 %v55
  %v263 = vunpack.c.h.b16 %v55
  %v264 = vunpack.c.l.b16 %v56
  %v265 = vunpack.c.h.b16 %v56
  %v266 = vunpack.c.l.b16 %v57
  %v267 = vunpack.c.h.b16 %v57
  %v268 = vunpack.c.l.b16 %v58
  %v269 = vunpack.c.h.b16 %v58
  %v270 = vunpack.c.l.b16 %v59
  %v271 = vunpack.c.h.b16 %v59
  %v272 = vunpack.c.l.b16 %v60
  %v273 = vunpack.c.h.b16 %v60
  %v274 = vunpack.c.l.b16 %v61
  %v275 = vunpack.c.h.b16 %v61
  %v276 = vunpack.c.l.b16 %v62
  %v277 = vunpack.c.h.b16 %v62
  %v278 = vunpack.c.l.b16 %v63
  %v279 = vunpack.c.h.b16 %v63
  %v280 = vunpack.c.l.b16 %v64
  %v281 = vunpack.c.h.b16 %v64
  %v282 = vunpack.c.l.b16 %v65
  %v283 = vunpack.c.h.b16 %v65
  %v284 = vunpack.c.l.b16 %v66
  %v285 = vunpack.c.h.b16 %v66
  %v286 = vunpack.c.l.b16 %v67
  %v287 = vunpack.c.h.b16 %v67
  %v288 = vunpack.c.l.b16 %v68
  %v289 = vunpack.c.h.b16 %v68
  %v290 = vunpack.c.l.b16 %v69
  %v291 = vunpack.c.h.b16 %v69
  %v292 = vunpack.c.l.b16 %v70
  %v293 = vunpack.c.h.b16 %v70
  %v294 = vunpack.c.l.b16 %v71
  %v295 = vunpack.c.h.b16 %v71
  %v296 = vunpack.c.l.b16 %v72
  %v297 = vunpack.c.h.b16 %v72
  %v298 = vunpack.c.l.b16 %v73
  %v299 = vunpack.c.h.b16 %v73
  %v300 = vunpack.c.l.b16 %v74
  %v301 = vunpack.c.h.b16 %v74
  %v302 = vunpack.c.l.b16 %v75
  %v303 = vunpack.c.h.b16 %v75
  %v304 = vunpack.c.l.b16 %v76
  %v305 = vunpack.c.h.b16 %v76
  %v306 = vunpack.c.l.b16 %v77
  %v307 = vunpack.c.h.b16 %v77
  %v308 = vunpack.c.l.b16 %v78
  %v309 = vunpack.c.h.b16 %v78
  %v310 = vunpack.c.l.b16 %v79
  %v311 = vunpack.c.h.b16 %v79
  %v312 = vunpack.c.l.b16 %v80
  %v313 = vunpack.c.h.b16 %v80
  %v314 = vunpack.c.l.b16 %v81
  %v315 = vunpack.c.h.b16 %v81
  %v316 = vpack.c.b16 %v192, %v188
  %v317 = vpack.c.b16 %v193, %v189
  %v318 = vpack.c.b16 %v194, %v190
  %v319 = vpack.c.b16 %v195, %v191
  %v320 = vpack.c.b16 %v200, %v196
  %v321 = vpack.c.b16 %v201, %v197
  %v322 = vpack.c.b16 %v202, %v198
  %v323 = vpack.c.b16 %v203, %v199
  %v324 = vpack.c.b16 %v208, %v204
  %v325 = vpack.c.b16 %v209, %v205
  %v326 = vpack.c.b16 %v210, %v206
  %v327 = vpack.c.b16 %v211, %v207
  %v328 = vpack.c.b16 %v216, %v212
  %v329 = vpack.c.b16 %v217, %v213
  %v330 = vpack.c.b16 %v218, %v214
  %v331 = vpack.c.b16 %v219, %v215
  %v332 = vpack.c.b16 %v224, %v220
  %v333 = vpack.c.b16 %v225, %v221
  %v334 = vpack.c.b16 %v226, %v222
  %v335 = vpack.c.b16 %v227, %v223
  %v336 = vpack.c.b16 %v232, %v228
  %v337 = vpack.c.b16 %v233, %v229
  %v338 = vpack.c.b16 %v234, %v230
  %v339 = vpack.c.b16 %v235, %v231
  %v340 = vpack.c.b16 %v240, %v236
  %v341 = vpack.c.b16 %v241, %v237
  %v342 = vpack.c.b16 %v242, %v238
  %v343 = vpack.c.b16 %v243, %v239
  %v344 = vpack.c.b16 %v248, %v244
  %v345 = vpack.c.b16 %v249, %v245
  %v346 = vpack.c.b16 %v250, %v246
  %v347 = vpack.c.b16 %v251, %v247
  %v348 = vpack.c.b16 %v256, %v252
  %v349 = vpack.c.b16 %v257, %v253
  %v350 = vpack.c.b16 %v258, %v254
  %v351 = vpack.c.b16 %v259, %v255
  %v352 = vpack.c.b16 %v264, %v260
  %v353 = vpack.c.b16 %v265, %v261
  %v354 = vpack.c.b16 %v266, %v262
  %v355 = vpack.c.b16 %v267, %v263
  %v356 = vpack.c.b16 %v272, %v268
  %v357 = vpack.c.b16 %v273, %v269
  %v358 = vpack.c.b16 %v274, %v270
  %v359 = vpack.c.b16 %v275, %v271
  %v360 = vpack.c.b16 %v280, %v276
  %v361 = vpack.c.b16 %v281, %v277
  %v362 = vpack.c.b16 %v282, %v278
  %v363 = vpack.c.b16 %v283, %v279
  %v364 = vpack.c.b16 %v288, %v284
  %v365 = vpack.c.b16 %v289, %v285
  %v366 = vpack.c.b16 %v290, %v286
  %v367 = vpack.c.b16 %v291, %v287
  %v368 = vpack.c.b16 %v296, %v292
  %v369 = vpack.c.b16 %v297, %v293
  %v370 = vpack.c.b16 %v298, %v294
  %v371 = vpack.c.b16 %v299, %v295
  %v372 = vpack.c.b16 %v304, %v300
  %v373 = vpack.c.b16 %v305, %v301
  %v374 = vpack.c.b16 %v306, %v302
  %v375 = vpack.c.b16 %v307, %v303
  %v376 = vpack.c.b16 %v312, %v308
  %v377 = vpack.c.b16 %v313, %v309
  %v378 = vpack.c.b16 %v314, %v310
  %v379 = vpack.c.b16 %v315, %v311
  %444 = vmatprep.subr.bf16.mxu0 %v317
  %445 = vmatpush1.bf16.msra.mxu0 %v316
  %446 = vmatprep.subr.bf16.mxu0 %v321
  %447 = vmatpush1.bf16.msra.mxu0 %v320
  %448 = vmatprep.subr.bf16.mxu0 %v325
  %449 = vmatpush1.bf16.msra.mxu0 %v324
  %450 = vmatprep.subr.bf16.mxu0 %v329
  %451 = vmatpush1.bf16.msra.mxu0 %v328
  %452 = vmatprep.subr.bf16.mxu0 %v333
  %453 = vmatpush1.bf16.msra.mxu0 %v332
  %454 = vmatprep.subr.bf16.mxu0 %v337
  %455 = vmatpush1.bf16.msra.mxu0 %v336
  %456 = vmatprep.subr.bf16.mxu0 %v341
  %457 = vmatpush1.bf16.msra.mxu0 %v340
  %458 = vmatprep.subr.bf16.mxu0 %v345
  %459 = vmatpush1.bf16.msra.mxu0 %v344
  %460 = vmatprep.subr.bf16.mxu0 %v349
  %461 = vmatpush1.bf16.msra.mxu0 %v348
  %462 = vmatprep.subr.bf16.mxu0 %v353
  %463 = vmatpush1.bf16.msra.mxu0 %v352
  %464 = vmatprep.subr.bf16.mxu0 %v357
  %465 = vmatpush1.bf16.msra.mxu0 %v356
  %466 = vmatprep.subr.bf16.mxu0 %v361
  %467 = vmatpush1.bf16.msra.mxu0 %v360
  %468 = vmatprep.subr.bf16.mxu0 %v365
  %469 = vmatpush1.bf16.msra.mxu0 %v364
  %470 = vmatprep.subr.bf16.mxu0 %v369
  %471 = vmatpush1.bf16.msra.mxu0 %v368
  %472 = vmatprep.subr.bf16.mxu0 %v373
  %473 = vmatpush1.bf16.msra.mxu0 %v372
  %474 = vmatprep.subr.bf16.mxu0 %v377
  %475 = vmatpush1.bf16.msra.mxu0 %v376
  %476 = vmatprep.mubr.bf16.mxu0 %v117
  %477 = vmatmul.mubr.bf16.gmra.mrb[0].mxu0 %v116
  %v478 = vpop.f32.mrb[0].mxu0
  %v479 = vadd.f32 %v87, %v478
  %v480 = vpop.f32.mrb[0].mxu0
  %v481 = vadd.f32 %v91, %v480
  %v482 = vpop.f32.mrb[0].mxu0
  %v483 = vadd.f32 %v87, %v482
  %v484 = vpop.f32.mrb[0].mxu0
  %v485 = vadd.f32 %v91, %v484
  %486 = vmatprep.mubr.bf16.mxu0 %v119
  %487 = vmatmul.mubr.bf16.gmra.mrb[0].mxu0 %v118
  %v488 = vpop.f32.mrb[0].mxu0
  %v489 = vadd.f32 %v87, %v488
  %v490 = vpop.f32.mrb[0].mxu0
  %v491 = vadd.f32 %v91, %v490
  %v492 = vpop.f32.mrb[0].mxu0
  %v493 = vadd.f32 %v87, %v492
  %v494 = vpop.f32.mrb[0].mxu0
  %v495 = vadd.f32 %v91, %v494
  %496 = vdwg.mxu0
  %497 = vmatprep.subr.bf16.mxu0 %v319
  %498 = vmatpush1.bf16.msra.mxu0 %v318
  %499 = vmatprep.subr.bf16.mxu0 %v323
  %500 = vmatpush1.bf16.msra.mxu0 %v322
  %501 = vmatprep.subr.bf16.mxu0 %v327
  %502 = vmatpush1.bf16.msra.mxu0 %v326
  %503 = vmatprep.subr.bf16.mxu0 %v331
  %504 = vmatpush1.bf16.msra.mxu0 %v330
  %505 = vmatprep.subr.bf16.mxu0 %v335
  %506 = vmatpush1.bf16.msra.mxu0 %v334
  %507 = vmatprep.subr.bf16.mxu0 %v339
  %508 = vmatpush1.bf16.msra.mxu0 %v338
  %509 = vmatprep.subr.bf16.mxu0 %v343
  %510 = vmatpush1.bf16.msra.mxu0 %v342
  %511 = vmatprep.subr.bf16.mxu0 %v347
  %512 = vmatpush1.bf16.msra.mxu0 %v346
  %513 = vmatprep.subr.bf16.mxu0 %v351
  %514 = vmatpush1.bf16.msra.mxu0 %v350
  %515 = vmatprep.subr.bf16.mxu0 %v355
  %516 = vmatpush1.bf16.msra.mxu0 %v354
  %517 = vmatprep.subr.bf16.mxu0 %v359
  %518 = vmatpush1.bf16.msra.mxu0 %v358
  %519 = vmatprep.subr.bf16.mxu0 %v363
  %520 = vmatpush1.bf16.msra.mxu0 %v362
  %521 = vmatprep.subr.bf16.mxu0 %v367
  %522 = vmatpush1.bf16.msra.mxu0 %v366
  %523 = vmatprep.subr.bf16.mxu0 %v371
  %524 = vmatpush1.bf16.msra.mxu0 %v370
  %525 = vmatprep.subr.bf16.mxu0 %v375
  %526 = vmatpush1.bf16.msra.mxu0 %v374
  %527 = vmatprep.subr.bf16.mxu0 %v379
  %528 = vmatpush1.bf16.msra.mxu0 %v378
  %529 = vmatprep.mubr.bf16.mxu0 %v117
  %530 = vmatmul.mubr.bf16.gmra.mrb[0].mxu0 %v116
  %v531 = vpop.f32.mrb[0].mxu0
  %v532 = vadd.f32 %v95, %v531
  %v533 = vpop.f32.mrb[0].mxu0
  %v534 = vadd.f32 %v99, %v533
  %v535 = vpop.f32.mrb[0].mxu0
  %v536 = vadd.f32 %v95, %v535
  %v537 = vpop.f32.mrb[0].mxu0
  %v538 = vadd.f32 %v99, %v537
  %539 = vmatprep.mubr.bf16.mxu0 %v119
  %540 = vmatmul.mubr.bf16.gmra.mrb[0].mxu0 %v118
  %v541 = vpop.f32.mrb[0].mxu0
  %v542 = vadd.f32 %v95, %v541
  %v543 = vpop.f32.mrb[0].mxu0
  %v544 = vadd.f32 %v99, %v543
  %v545 = vpop.f32.mrb[0].mxu0
  %v546 = vadd.f32 %v95, %v545
  %v547 = vpop.f32.mrb[0].mxu0
  %v548 = vadd.f32 %v99, %v547
  %549 = vdwg.mxu0
  %v550 = vmul.f32 %v479, 0.5
  %v551 = vmul.f32 %v481, 0.5
  %v552 = vmul.f32 %v532, 0.5
  %v553 = vmul.f32 %v534, 0.5
  %v554 = vmul.f32 %v483, 0.5
  %v555 = vmul.f32 %v485, 0.5
  %v556 = vmul.f32 %v536, 0.5
  %v557 = vmul.f32 %v538, 0.5
  %v558 = vmul.f32 %v489, 0.5
  %v559 = vmul.f32 %v491, 0.5
  %v560 = vmul.f32 %v542, 0.5
  %v561 = vmul.f32 %v544, 0.5
  %v562 = vmul.f32 %v493, 0.5
  %v563 = vmul.f32 %v495, 0.5
  %v564 = vmul.f32 %v546, 0.5
  %v565 = vmul.f32 %v548, 0.5
  %v566 = vmul.f32 %v479, 0.70710677
  %v567 = vmul.f32 %v481, 0.70710677
  %v568 = vmul.f32 %v532, 0.70710677
  %v569 = vmul.f32 %v534, 0.70710677
  %v570 = vmul.f32 %v483, 0.70710677
  %v571 = vmul.f32 %v485, 0.70710677
  %v572 = vmul.f32 %v536, 0.70710677
  %v573 = vmul.f32 %v538, 0.70710677
  %v574 = vmul.f32 %v489, 0.70710677
  %v575 = vmul.f32 %v491, 0.70710677
  %v576 = vmul.f32 %v542, 0.70710677
  %v577 = vmul.f32 %v544, 0.70710677
  %v578 = vmul.f32 %v493, 0.70710677
  %v579 = vmul.f32 %v495, 0.70710677
  %v580 = vmul.f32 %v546, 0.70710677
  %v581 = vmul.f32 %v548, 0.70710677
  %v582 = verf.f32.pop %v566
  %v583 = verf.f32.pop %v567
  %v584 = verf.f32.pop %v568
  %v585 = verf.f32.pop %v569
  %v586 = verf.f32.pop %v570
  %v587 = verf.f32.pop %v571
  %v588 = verf.f32.pop %v572
  %v589 = verf.f32.pop %v573
  %v590 = verf.f32.pop %v574
  %v591 = verf.f32.pop %v575
  %v592 = verf.f32.pop %v576
  %v593 = verf.f32.pop %v577
  %v594 = verf.f32.pop %v578
  %v595 = verf.f32.pop %v579
  %v596 = verf.f32.pop %v580
  %v597 = verf.f32.pop %v581
  %v598 = vadd.f32 %v582, 1.0
  %v599 = vadd.f32 %v583, 1.0
  %v600 = vadd.f32 %v584, 1.0
  %v601 = vadd.f32 %v585, 1.0
  %v602 = vadd.f32 %v586, 1.0
  %v603 = vadd.f32 %v587, 1.0
  %v604 = vadd.f32 %v588, 1.0
  %v605 = vadd.f32 %v589, 1.0
  %v606 = vadd.f32 %v590, 1.0
  %v607 = vadd.f32 %v591, 1.0
  %v608 = vadd.f32 %v592, 1.0
  %v609 = vadd.f32 %v593, 1.0
  %v610 = vadd.f32 %v594, 1.0
  %v611 = vadd.f32 %v595, 1.0
  %v612 = vadd.f32 %v596, 1.0
  %v613 = vadd.f32 %v597, 1.0
  %v614 = vmul.f32 %v550, %v598
  %v615 = vmul.f32 %v551, %v599
  %v616 = vmul.f32 %v552, %v600
  %v617 = vmul.f32 %v553, %v601
  %v618 = vmul.f32 %v554, %v602
  %v619 = vmul.f32 %v555, %v603
  %v620 = vmul.f32 %v556, %v604
  %v621 = vmul.f32 %v557, %v605
  %v622 = vmul.f32 %v558, %v606
  %v623 = vmul.f32 %v559, %v607
  %v624 = vmul.f32 %v560, %v608
  %v625 = vmul.f32 %v561, %v609
  %v626 = vmul.f32 %v562, %v610
  %v627 = vmul.f32 %v563, %v611
  %v628 = vmul.f32 %v564, %v612
  %v629 = vmul.f32 %v565, %v613
  %v630 = vpack.c.bf16 %v618, %v614
  %v631 = vpack.c.bf16 %v619, %v615
  %v632 = vpack.c.bf16 %v620, %v616
  %v633 = vpack.c.bf16 %v621, %v617
  %v634 = vpack.c.bf16 %v626, %v622
  %v635 = vpack.c.bf16 %v627, %v623
  %v636 = vpack.c.bf16 %v628, %v624
  %v637 = vpack.c.bf16 %v629, %v625
  %v646 = vunpack.c.l.b16 %v630
  %v647 = vunpack.c.l.b16 %v631
  %v648 = vunpack.c.l.b16 %v632
  %v649 = vunpack.c.l.b16 %v633
  %v650 = vunpack.c.h.b16 %v630
  %v651 = vunpack.c.h.b16 %v631
  %v652 = vunpack.c.h.b16 %v632
  %v653 = vunpack.c.h.b16 %v633
  %v654 = vunpack.c.l.b16 %v634
  %v655 = vunpack.c.l.b16 %v635
  %v656 = vunpack.c.l.b16 %v636
  %v657 = vunpack.c.l.b16 %v637
  %v658 = vunpack.c.h.b16 %v634
  %v659 = vunpack.c.h.b16 %v635
  %v660 = vunpack.c.h.b16 %v636
  %v661 = vunpack.c.h.b16 %v637
  %v662 = vpack.c.b16 %v647, %v646
  %v663 = vpack.c.b16 %v649, %v648
  %v664 = vpack.c.b16 %v651, %v650
  %v665 = vpack.c.b16 %v653, %v652
  %v666 = vpack.c.b16 %v655, %v654
  %v667 = vpack.c.b16 %v657, %v656
  %v668 = vpack.c.b16 %v659, %v658
  %v669 = vpack.c.b16 %v661, %v660
  %678 = vst [vmem:[%s3] sm:$0xff] %v662
  %679 = vst [vmem:[%s3 + $0x8] sm:$0xff] %v663
  %680 = vst [vmem:[%s3 + $0x10] sm:$0xff] %v664
  %681 = vst [vmem:[%s3 + $0x18] sm:$0xff] %v665
  %682 = vst [vmem:[%s3 + $0x20] sm:$0xff] %v666
  %683 = vst [vmem:[%s3 + $0x28] sm:$0xff] %v667
  %684 = vst [vmem:[%s3 + $0x30] sm:$0xff] %v668
  %685 = vst [vmem:[%s3 + $0x38] sm:$0xff] %v669
  // Predicated region
  $region14: #{roberta_multilabel_forward.16} parent=0 // pred_check
    _
  $region15: #{roberta_multilabel_forward.16} parent=0 // pred_check_branch
    %687 = sbr.rel (0) target = $region17
  $region16: #{roberta_multilabel_forward.16} parent=0 // pred_region
    _
  $region17: #{roberta_multilabel_forward.16} parent=0 // pred_fallthru
    _
  // Predicated region
  $region18: #{roberta_multilabel_forward.16} parent=0 // pred_check
    _
  $region19: #{roberta_multilabel_forward.16} parent=0 // pred_check_branch
    %689 = sbr.rel (0) target = $region21
  $region20: #{roberta_multilabel_forward.16} parent=0 // pred_region
    _
  $region21: #{roberta_multilabel_forward.16} parent=0 // pred_fallthru
    _

// kernel: roberta_multilabel_forward.23
$region0: #{roberta_multilabel_forward.23}
  #allocation0 [shape = 'u32[]', space=smem, size = 0x4, offset = 0x4, fixed_abs, tag = 'smem constant byte address 0x4 - core index']
  #allocation1 [shape = 'u32[144,128]{1,0:T(1,128)}', space=vmem, size = 0x12000, scoped, tag = 'internal scratch']
  %s0 = inlined_call_operand.vmem [shape: bf16[2,256], index: 0, kind: input, shape index: {}]
  %s1 = inlined_call_operand.vmem [shape: bf16[256,256], index: 1, kind: input, shape index: {}]
  %s2 = inlined_call_operand.vmem [shape: f32[1,256], index: 2, kind: input, shape index: {}]
  %s3 = inlined_call_operand.vmem [shape: bf16[256,5], index: 3, kind: input, shape index: {}]
  %s4 = inlined_call_operand.vmem [shape: f32[1,5], index: 4, kind: input, shape index: {}]
  %s5 = inlined_call_operand.hbm [shape: f32[2,5], index: 5, kind: output, shape index: {}]
  %s6 = sld [smem:[#allocation0]]
  $region30: #{roberta_multilabel_forward.23} parent=0
    _
  %s8 = ssub.s32 1, %s6
  %s9 = scalar_select 0, %s8, %s6
  $region1: #{roberta_multilabel_forward.23} parent=0
    #allocation2 [shape = 'u8[1024]{0}', space=vmem, size = 0x400, scoped, tag = 'output window, operand 0, single buffered']
    #allocation3 [shape = 's32[1]{0}', space=sflag, size = 0x4, scoped, tag = 'scoped memory for roberta_multilabel_forward.23']
    %10 = vsyncpa [#allocation3], 0
    // Predicated region
    $region2: #{roberta_multilabel_forward.23} parent=1 // pred_check
      _
    $region3: #{roberta_multilabel_forward.23} parent=1 // pred_check_branch
      %12 = sbr.rel (0) target = $region5
    $region4: #{roberta_multilabel_forward.23} parent=1 // pred_region
      _
    $region5: #{roberta_multilabel_forward.23} parent=1 // pred_fallthru
      _
    // Predicated region
    $region6: #{roberta_multilabel_forward.23} parent=1 // pred_check
      _
    $region7: #{roberta_multilabel_forward.23} parent=1 // pred_check_branch
      %14 = sbr.rel (0) target = $region9
    $region8: #{roberta_multilabel_forward.23} parent=1 // pred_region
      _
    $region9: #{roberta_multilabel_forward.23} parent=1 // pred_fallthru
      _
    // Predicated region
    $region10: #{roberta_multilabel_forward.23} parent=1 // pred_check
      _
    $region11: #{roberta_multilabel_forward.23} parent=1 // pred_check_branch
      %16 = sbr.rel (0) target = $region13
    $region12: #{roberta_multilabel_forward.23} parent=1 // pred_region
      _
    $region13: #{roberta_multilabel_forward.23} parent=1 // pred_fallthru
      _
    // Predicated region
    $region14: #{roberta_multilabel_forward.23} parent=1 // pred_check
      _
    $region15: #{roberta_multilabel_forward.23} parent=1 // pred_check_branch
      %18 = sbr.rel (0) target = $region17
    $region16: #{roberta_multilabel_forward.23} parent=1 // pred_region
      _
    $region17: #{roberta_multilabel_forward.23} parent=1 // pred_fallthru
      _
    // Predicated region
    $region18: #{roberta_multilabel_forward.23} parent=1 // pred_check
      _
    $region19: #{roberta_multilabel_forward.23} parent=1 // pred_check_branch
      %20 = sbr.rel (0) target = $region21
    $region20: #{roberta_multilabel_forward.23} parent=1 // pred_region
      _
    $region21: #{roberta_multilabel_forward.23} parent=1 // pred_fallthru
      _
    %v22 = vld [vmem:[%s0] sm:$0x3]
    %v23 = vld [vmem:[%s1] sm:$0xff]
    %v24 = vld [vmem:[%s1 + $0x8] sm:$0xff]
    %v25 = vld [vmem:[%s1 + $0x10] sm:$0xff]
    %v26 = vld [vmem:[%s1 + $0x18] sm:$0xff]
    %v27 = vld [vmem:[%s1 + $0x20] sm:$0xff]
    %v28 = vld [vmem:[%s1 + $0x28] sm:$0xff]
    %v29 = vld [vmem:[%s1 + $0x30] sm:$0xff]
    %v30 = vld [vmem:[%s1 + $0x38] sm:$0xff]
    %v31 = vld [vmem:[%s1 + $0x40] sm:$0xff]
    %v32 = vld [vmem:[%s1 + $0x48] sm:$0xff]
    %v33 = vld [vmem:[%s1 + $0x50] sm:$0xff]
    %v34 = vld [vmem:[%s1 + $0x58] sm:$0xff]
    %v35 = vld [vmem:[%s1 + $0x60] sm:$0xff]
    %v36 = vld [vmem:[%s1 + $0x68] sm:$0xff]
    %v37 = vld [vmem:[%s1 + $0x70] sm:$0xff]
    %v38 = vld [vmem:[%s1 + $0x78] sm:$0xff]
    %v39 = vld [vmem:[%s1 + $0x80] sm:$0xff]
    %v40 = vld [vmem:[%s1 + $0x88] sm:$0xff]
    %v41 = vld [vmem:[%s1 + $0x90] sm:$0xff]
    %v42 = vld [vmem:[%s1 + $0x98] sm:$0xff]
    %v43 = vld [vmem:[%s1 + $0xa0] sm:$0xff]
    %v44 = vld [vmem:[%s1 + $0xa8] sm:$0xff]
    %v45 = vld [vmem:[%s1 + $0xb0] sm:$0xff]
    %v46 = vld [vmem:[%s1 + $0xb8] sm:$0xff]
    %v47 = vld [vmem:[%s1 + $0xc0] sm:$0xff]
    %v48 = vld [vmem:[%s1 + $0xc8] sm:$0xff]
    %v49 = vld [vmem:[%s1 + $0xd0] sm:$0xff]
    %v50 = vld [vmem:[%s1 + $0xd8] sm:$0xff]
    %v51 = vld [vmem:[%s1 + $0xe0] sm:$0xff]
    %v52 = vld [vmem:[%s1 + $0xe8] sm:$0xff]
    %v53 = vld [vmem:[%s1 + $0xf0] sm:$0xff]
    %v54 = vld [vmem:[%s1 + $0xf8] sm:$0xff]
    %v55 = vld [vmem:[%s2] sm:$0x3]
    %v57 = vlaneseq
    %v58 = vshrl.u32 %v57, 7
    %v59 = vsub.s32 0, %v58
    %v60 = vrot.slane %v55, %v59
    %v61 = vlaneseq
    %v62 = vshrl.u32 %v61, 7
    %v63 = vsub.s32 1, %v62
    %v64 = vrot.slane %v55, %v63
    %v69 = vunpack.c.l.s4 1966171168
    %v70 = vunpack.c.0.s8 %v69
    %v71 = vlaneseq
    %v72 = vshrl.u32 %v71, 7
    %v73 = vsub.s32 %v70, %v72
    %v74 = vrot.slane %v22, %v73
    %v75 = vcombine.high %v74, %v74
    %v77 = vunpack.c.l.s4 1966171168
    %v78 = vunpack.c.0.s8 %v77
    %v79 = vlaneseq
    %v80 = vshrl.u32 %v79, 7
    %v81 = vsub.s32 %v78, %v80
    %v82 = vrot.slane %v74, %v81
    %v84 = vunpack.c.l.s4 1966171168
    %v85 = vunpack.c.0.s8 %v84
    %v86 = vlaneseq
    %v87 = vshrl.u32 %v86, 7
    %v88 = vsub.s32 %v85, %v87
    %v89 = vrot.slane %v75, %v88
    %v124 = vunpack.c.l.b16 %v23
    %v125 = vunpack.c.h.b16 %v23
    %v126 = vunpack.c.l.b16 %v24
    %v127 = vunpack.c.h.b16 %v24
    %v128 = vunpack.c.l.b16 %v25
    %v129 = vunpack.c.h.b16 %v25
    %v130 = vunpack.c.l.b16 %v26
    %v131 = vunpack.c.h.b16 %v26
    %v132 = vunpack.c.l.b16 %v27
    %v133 = vunpack.c.h.b16 %v27
    %v134 = vunpack.c.l.b16 %v28
    %v135 = vunpack.c.h.b16 %v28
    %v136 = vunpack.c.l.b16 %v29
    %v137 = vunpack.c.h.b16 %v29
    %v138 = vunpack.c.l.b16 %v30
    %v139 = vunpack.c.h.b16 %v30
    %v140 = vunpack.c.l.b16 %v31
    %v141 = vunpack.c.h.b16 %v31
    %v142 = vunpack.c.l.b16 %v32
    %v143 = vunpack.c.h.b16 %v32
    %v144 = vunpack.c.l.b16 %v33
    %v145 = vunpack.c.h.b16 %v33
    %v146 = vunpack.c.l.b16 %v34
    %v147 = vunpack.c.h.b16 %v34
    %v148 = vunpack.c.l.b16 %v35
    %v149 = vunpack.c.h.b16 %v35
    %v150 = vunpack.c.l.b16 %v36
    %v151 = vunpack.c.h.b16 %v36
    %v152 = vunpack.c.l.b16 %v37
    %v153 = vunpack.c.h.b16 %v37
    %v154 = vunpack.c.l.b16 %v38
    %v155 = vunpack.c.h.b16 %v38
    %v156 = vunpack.c.l.b16 %v39
    %v157 = vunpack.c.h.b16 %v39
    %v158 = vunpack.c.l.b16 %v40
    %v159 = vunpack.c.h.b16 %v40
    %v160 = vunpack.c.l.b16 %v41
    %v161 = vunpack.c.h.b16 %v41
    %v162 = vunpack.c.l.b16 %v42
    %v163 = vunpack.c.h.b16 %v42
    %v164 = vunpack.c.l.b16 %v43
    %v165 = vunpack.c.h.b16 %v43
    %v166 = vunpack.c.l.b16 %v44
    %v167 = vunpack.c.h.b16 %v44
    %v168 = vunpack.c.l.b16 %v45
    %v169 = vunpack.c.h.b16 %v45
    %v170 = vunpack.c.l.b16 %v46
    %v171 = vunpack.c.h.b16 %v46
    %v172 = vunpack.c.l.b16 %v47
    %v173 = vunpack.c.h.b16 %v47
    %v174 = vunpack.c.l.b16 %v48
    %v175 = vunpack.c.h.b16 %v48
    %v176 = vunpack.c.l.b16 %v49
    %v177 = vunpack.c.h.b16 %v49
    %v178 = vunpack.c.l.b16 %v50
    %v179 = vunpack.c.h.b16 %v50
    %v180 = vunpack.c.l.b16 %v51
    %v181 = vunpack.c.h.b16 %v51
    %v182 = vunpack.c.l.b16 %v52
    %v183 = vunpack.c.h.b16 %v52
    %v184 = vunpack.c.l.b16 %v53
    %v185 = vunpack.c.h.b16 %v53
    %v186 = vunpack.c.l.b16 %v54
    %v187 = vunpack.c.h.b16 %v54
    %v188 = vpack.c.b16 %v126, %v124
    %v189 = vpack.c.b16 %v127, %v125
    %v190 = vpack.c.b16 %v130, %v128
    %v191 = vpack.c.b16 %v131, %v129
    %v192 = vpack.c.b16 %v134, %v132
    %v193 = vpack.c.b16 %v135, %v133
    %v194 = vpack.c.b16 %v138, %v136
    %v195 = vpack.c.b16 %v139, %v137
    %v196 = vpack.c.b16 %v142, %v140
    %v197 = vpack.c.b16 %v143, %v141
    %v198 = vpack.c.b16 %v146, %v144
    %v199 = vpack.c.b16 %v147, %v145
    %v200 = vpack.c.b16 %v150, %v148
    %v201 = vpack.c.b16 %v151, %v149
    %v202 = vpack.c.b16 %v154, %v152
    %v203 = vpack.c.b16 %v155, %v153
    %v204 = vpack.c.b16 %v158, %v156
    %v205 = vpack.c.b16 %v159, %v157
    %v206 = vpack.c.b16 %v162, %v160
    %v207 = vpack.c.b16 %v163, %v161
    %v208 = vpack.c.b16 %v166, %v164
    %v209 = vpack.c.b16 %v167, %v165
    %v210 = vpack.c.b16 %v170, %v168
    %v211 = vpack.c.b16 %v171, %v169
    %v212 = vpack.c.b16 %v174, %v172
    %v213 = vpack.c.b16 %v175, %v173
    %v214 = vpack.c.b16 %v178, %v176
    %v215 = vpack.c.b16 %v179, %v177
    %v216 = vpack.c.b16 %v182, %v180
    %v217 = vpack.c.b16 %v183, %v181
    %v218 = vpack.c.b16 %v186, %v184
    %v219 = vpack.c.b16 %v187, %v185
    %252 = vmatprep.subr.bf16.mxu0 %v189
    %253 = vmatpush1.bf16.msra.mxu0 %v188
    %254 = vmatprep.subr.bf16.mxu0 %v191
    %255 = vmatpush1.bf16.msra.mxu0 %v190
    %256 = vmatprep.subr.bf16.mxu0 %v193
    %257 = vmatpush1.bf16.msra.mxu0 %v192
    %258 = vmatprep.subr.bf16.mxu0 %v195
    %259 = vmatpush1.bf16.msra.mxu0 %v194
    %260 = vmatprep.subr.bf16.mxu0 %v197
    %261 = vmatpush1.bf16.msra.mxu0 %v196
    %262 = vmatprep.subr.bf16.mxu0 %v199
    %263 = vmatpush1.bf16.msra.mxu0 %v198
    %264 = vmatprep.subr.bf16.mxu0 %v201
    %265 = vmatpush1.bf16.msra.mxu0 %v200
    %266 = vmatprep.subr.bf16.mxu0 %v203
    %267 = vmatpush1.bf16.msra.mxu0 %v202
    %268 = vmatprep.subr.bf16.mxu0 %v205
    %269 = vmatpush1.bf16.msra.mxu0 %v204
    %270 = vmatprep.subr.bf16.mxu0 %v207
    %271 = vmatpush1.bf16.msra.mxu0 %v206
    %272 = vmatprep.subr.bf16.mxu0 %v209
    %273 = vmatpush1.bf16.msra.mxu0 %v208
    %274 = vmatprep.subr.bf16.mxu0 %v211
    %275 = vmatpush1.bf16.msra.mxu0 %v210
    %276 = vmatprep.subr.bf16.mxu0 %v213
    %277 = vmatpush1.bf16.msra.mxu0 %v212
    %278 = vmatprep.subr.bf16.mxu0 %v215
    %279 = vmatpush1.bf16.msra.mxu0 %v214
    %280 = vmatprep.subr.bf16.mxu0 %v217
    %281 = vmatpush1.bf16.msra.mxu0 %v216
    %282 = vmatprep.subr.bf16.mxu0 %v219
    %283 = vmatpush1.bf16.msra.mxu0 %v218
    %284 = vmatprep.mubr.bf16.mxu0 %v89
    %285 = vmatmul.mubr.bf16.gmra.mrb[0].mxu0 %v82
    %v286 = vpop.f32.mrb[0].mxu0
    %v287 = vadd.f32 %v60, %v286
    %v288 = vpop.f32.mrb[0].mxu0
    %v289 = vadd.f32 %v64, %v288
    %v290 = vpop.f32.mrb[0].mxu0
    %v291 = vpop.f32.mrb[0].mxu0
    %292 = vdwg.mxu0
    %v293 = vtanh.pop %v287
    %v294 = vtanh.pop %v289
    %v295 = vpack.c.bf16 %v293, %v293
    %v296 = vpack.c.bf16 %v294, %v294
    %v297 = vld [vmem:[%s3] sm:$0xf]
    %v298 = vld [vmem:[%s3 + $0x4] sm:$0xf]
    %v299 = vld [vmem:[%s3 + $0x8] sm:$0xf]
    %v300 = vld [vmem:[%s3 + $0xc] sm:$0xf]
    %v301 = vld [vmem:[%s3 + $0x10] sm:$0xf]
    %v302 = vld [vmem:[%s3 + $0x14] sm:$0xf]
    %v303 = vld [vmem:[%s3 + $0x18] sm:$0xf]
    %v304 = vld [vmem:[%s3 + $0x1c] sm:$0xf]
    %v305 = vld [vmem:[%s3 + $0x20] sm:$0xf]
    %v306 = vld [vmem:[%s3 + $0x24] sm:$0xf]
    %v307 = vld [vmem:[%s3 + $0x28] sm:$0xf]
    %v308 = vld [vmem:[%s3 + $0x2c] sm:$0xf]
    %v309 = vld [vmem:[%s3 + $0x30] sm:$0xf]
    %v310 = vld [vmem:[%s3 + $0x34] sm:$0xf]
    %v311 = vld [vmem:[%s3 + $0x38] sm:$0xf]
    %v312 = vld [vmem:[%s3 + $0x3c] sm:$0xf]
    %v313 = vld [vmem:[%s3 + $0x40] sm:$0xf]
    %v314 = vld [vmem:[%s3 + $0x44] sm:$0xf]
    %v315 = vld [vmem:[%s3 + $0x48] sm:$0xf]
    %v316 = vld [vmem:[%s3 + $0x4c] sm:$0xf]
    %v317 = vld [vmem:[%s3 + $0x50] sm:$0xf]
    %v318 = vld [vmem:[%s3 + $0x54] sm:$0xf]
    %v319 = vld [vmem:[%s3 + $0x58] sm:$0xf]
    %v320 = vld [vmem:[%s3 + $0x5c] sm:$0xf]
    %v321 = vld [vmem:[%s3 + $0x60] sm:$0xf]
    %v322 = vld [vmem:[%s3 + $0x64] sm:$0xf]
    %v323 = vld [vmem:[%s3 + $0x68] sm:$0xf]
    %v324 = vld [vmem:[%s3 + $0x6c] sm:$0xf]
    %v325 = vld [vmem:[%s3 + $0x70] sm:$0xf]
    %v326 = vld [vmem:[%s3 + $0x74] sm:$0xf]
    %v327 = vld [vmem:[%s3 + $0x78] sm:$0xf]
    %v328 = vld [vmem:[%s3 + $0x7c] sm:$0xf]
    %v329 = vld [vmem:[%s4] sm:$0x1]
    %v331 = vlaneseq
    %v332 = vshrl.u32 %v331, 7
    %v333 = vsub.s32 0, %v332
    %v334 = vrot.slane %v329, %v333
    %v368 = vunpack.c.l.b16 %v297
    %v369 = vunpack.c.l.b16 %v298
    %v370 = vunpack.c.l.b16 %v299
    %v371 = vunpack.c.l.b16 %v300
    %v372 = vunpack.c.l.b16 %v301
    %v373 = vunpack.c.l.b16 %v302
    %v374 = vunpack.c.l.b16 %v303
    %v375 = vunpack.c.l.b16 %v304
    %v376 = vunpack.c.l.b16 %v305
    %v377 = vunpack.c.l.b16 %v306
    %v378 = vunpack.c.l.b16 %v307
    %v379 = vunpack.c.l.b16 %v308
    %v380 = vunpack.c.l.b16 %v309
    %v381 = vunpack.c.l.b16 %v310
    %v382 = vunpack.c.l.b16 %v311
    %v383 = vunpack.c.l.b16 %v312
    %v384 = vunpack.c.l.b16 %v313
    %v385 = vunpack.c.l.b16 %v314
    %v386 = vunpack.c.l.b16 %v315
    %v387 = vunpack.c.l.b16 %v316
    %v388 = vunpack.c.l.b16 %v317
    %v389 = vunpack.c.l.b16 %v318
    %v390 = vunpack.c.l.b16 %v319
    %v391 = vunpack.c.l.b16 %v320
    %v392 = vunpack.c.l.b16 %v321
    %v393 = vunpack.c.l.b16 %v322
    %v394 = vunpack.c.l.b16 %v323
    %v395 = vunpack.c.l.b16 %v324
    %v396 = vunpack.c.l.b16 %v325
    %v397 = vunpack.c.l.b16 %v326
    %v398 = vunpack.c.l.b16 %v327
    %v399 = vunpack.c.l.b16 %v328
    %v400 = vpack.c.b16 %v369, %v368
    %v401 = vpack.c.b16 %v371, %v370
    %v402 = vpack.c.b16 %v373, %v372
    %v403 = vpack.c.b16 %v375, %v374
    %v404 = vpack.c.b16 %v377, %v376
    %v405 = vpack.c.b16 %v379, %v378
    %v406 = vpack.c.b16 %v381, %v380
    %v407 = vpack.c.b16 %v383, %v382
    %v408 = vpack.c.b16 %v385, %v384
    %v409 = vpack.c.b16 %v387, %v386
    %v410 = vpack.c.b16 %v389, %v388
    %v411 = vpack.c.b16 %v391, %v390
    %v412 = vpack.c.b16 %v393, %v392
    %v413 = vpack.c.b16 %v395, %v394
    %v414 = vpack.c.b16 %v397, %v396
    %v415 = vpack.c.b16 %v399, %v398
    %432 = vmatprep.subr.bf16.mxu0 0
    %433 = vmatpush1.bf16.msra.mxu0 %v400
    %434 = vmatprep.subr.bf16.mxu0 0
    %435 = vmatpush1.bf16.msra.mxu0 %v401
    %436 = vmatprep.subr.bf16.mxu0 0
    %437 = vmatpush1.bf16.msra.mxu0 %v402
    %438 = vmatprep.subr.bf16.mxu0 0
    %439 = vmatpush1.bf16.msra.mxu0 %v403
    %440 = vmatprep.subr.bf16.mxu0 0
    %441 = vmatpush1.bf16.msra.mxu0 %v404
    %442 = vmatprep.subr.bf16.mxu0 0
    %443 = vmatpush1.bf16.msra.mxu0 %v405
    %444 = vmatprep.subr.bf16.mxu0 0
    %445 = vmatpush1.bf16.msra.mxu0 %v406
    %446 = vmatprep.subr.bf16.mxu0 0
    %447 = vmatpush1.bf16.msra.mxu0 %v407
    %448 = vmatprep.subr.bf16.mxu0 0
    %449 = vmatpush1.bf16.msra.mxu0 %v408
    %450 = vmatprep.subr.bf16.mxu0 0
    %451 = vmatpush1.bf16.msra.mxu0 %v409
    %452 = vmatprep.subr.bf16.mxu0 0
    %453 = vmatpush1.bf16.msra.mxu0 %v410
    %454 = vmatprep.subr.bf16.mxu0 0
    %455 = vmatpush1.bf16.msra.mxu0 %v411
    %456 = vmatprep.subr.bf16.mxu0 0
    %457 = vmatpush1.bf16.msra.mxu0 %v412
    %458 = vmatprep.subr.bf16.mxu0 0
    %459 = vmatpush1.bf16.msra.mxu0 %v413
    %460 = vmatprep.subr.bf16.mxu0 0
    %461 = vmatpush1.bf16.msra.mxu0 %v414
    %462 = vmatprep.subr.bf16.mxu0 0
    %463 = vmatpush1.bf16.msra.mxu0 %v415
    %464 = vmatprep.mubr.bf16.mxu0 %v296
    %465 = vmatmul.mubr.bf16.gmra.mrb[0].mxu0 %v295
    %v466 = vpop.f32.mrb[0].mxu0
    %v467 = vadd.f32 %v334, %v466
    %v468 = vpop.f32.mrb[0].mxu0
    %v469 = vpop.f32.mrb[0].mxu0
    %v470 = vpop.f32.mrb[0].mxu0
    %471 = vdwg.mxu0
    %vm472 = vcmask 33792
    %473 = vst.msk [vmem:[#allocation2] sm:$0x3] %vm472, %v467
    // Predicated region
    $region22: #{roberta_multilabel_forward.23} parent=1 // pred_check
      _
    $region23: #{roberta_multilabel_forward.23} parent=1 // pred_check_branch
      %475 = sbr.rel (0) target = $region25
    $region24: #{roberta_multilabel_forward.23} parent=1 // pred_region
      %s477 = ssub.s32 32, 32
      %478 = vsyncadd [#allocation3], %s477
      %s480 = sshll.u32 [#allocation2], 4
      %s481 = int_to_ptr.vmem [resolvable:$true] %s480
      %483 = dma.vmem_to_hbm [thread:$0]  %s481, 32, %s5, [#allocation3]
    $region25: #{roberta_multilabel_forward.23} parent=1 // pred_fallthru
      _
    // Predicated region
    $region26: #{roberta_multilabel_forward.23} parent=1 // pred_check
      _
    $region27: #{roberta_multilabel_forward.23} parent=1 // pred_check_branch
      %485 = sbr.rel (0) target = $region29
    $region28: #{roberta_multilabel_forward.23} parent=1 // pred_region
      %486 = dma.done [#allocation3], 32
    $region29: #{roberta_multilabel_forward.23} parent=1 // pred_fallthru
      _
    %487 = vsyncpa [#allocation3], 1

// kernel: roberta_multilabel_forward.17
$region0: #{roberta_multilabel_forward.17}
  #allocation0 [shape = 'u32[]', space=smem, size = 0x4, offset = 0x4, fixed_abs, tag = 'smem constant byte address 0x4 - core index']
  #allocation1 [shape = 'u32[144,128]{1,0:T(1,128)}', space=vmem, size = 0x12000, scoped, tag = 'internal scratch']
  %s0 = inlined_call_operand.vmem [shape: bf16[32,512], index: 0, kind: input, shape index: {}]
  %s1 = inlined_call_operand.vmem [shape: bf16[512,256], index: 1, kind: input, shape index: {}]
  %s2 = inlined_call_operand.vmem [shape: f32[1,256], index: 2, kind: input, shape index: {}]
  %s3 = inlined_call_operand.vmem [shape: bf16[32,256], index: 3, kind: input, shape index: {}]
  %s4 = inlined_call_operand.vmem [shape: f32[1,256], index: 4, kind: input, shape index: {}]
  %s5 = inlined_call_operand.vmem [shape: f32[1,256], index: 5, kind: input, shape index: {}]
  %s6 = inlined_call_operand.vmem [shape: bf16[32,256], index: 6, kind: output, shape index: {}]
  %s7 = sld [smem:[#allocation0]]
  $region34: #{roberta_multilabel_forward.17} parent=0
    _
  %s9 = ssub.s32 1, %s7
  %s10 = scalar_select 0, %s9, %s7
  // Predicated region
  $region2: #{roberta_multilabel_forward.17} parent=0 // pred_check
    _
  $region3: #{roberta_multilabel_forward.17} parent=0 // pred_check_branch
    %12 = sbr.rel (0) target = $region5
  $region4: #{roberta_multilabel_forward.17} parent=0 // pred_region
    _
  $region5: #{roberta_multilabel_forward.17} parent=0 // pred_fallthru
    _
  // Predicated region
  $region6: #{roberta_multilabel_forward.17} parent=0 // pred_check
    _
  $region7: #{roberta_multilabel_forward.17} parent=0 // pred_check_branch
    %14 = sbr.rel (0) target = $region9
  $region8: #{roberta_multilabel_forward.17} parent=0 // pred_region
    _
  $region9: #{roberta_multilabel_forward.17} parent=0 // pred_fallthru
    _
  // Predicated region
  $region10: #{roberta_multilabel_forward.17} parent=0 // pred_check
    _
  $region11: #{roberta_multilabel_forward.17} parent=0 // pred_check_branch
    %16 = sbr.rel (0) target = $region13
  $region12: #{roberta_multilabel_forward.17} parent=0 // pred_region
    _
  $region13: #{roberta_multilabel_forward.17} parent=0 // pred_fallthru
    _
  // Predicated region
  $region14: #{roberta_multilabel_forward.17} parent=0 // pred_check
    _
  $region15: #{roberta_multilabel_forward.17} parent=0 // pred_check_branch
    %18 = sbr.rel (0) target = $region17
  $region16: #{roberta_multilabel_forward.17} parent=0 // pred_region
    _
  $region17: #{roberta_multilabel_forward.17} parent=0 // pred_fallthru
    _
  // Predicated region
  $region18: #{roberta_multilabel_forward.17} parent=0 // pred_check
    _
  $region19: #{roberta_multilabel_forward.17} parent=0 // pred_check_branch
    %20 = sbr.rel (0) target = $region21
  $region20: #{roberta_multilabel_forward.17} parent=0 // pred_region
    _
  $region21: #{roberta_multilabel_forward.17} parent=0 // pred_fallthru
    _
  // Predicated region
  $region22: #{roberta_multilabel_forward.17} parent=0 // pred_check
    _
  $region23: #{roberta_multilabel_forward.17} parent=0 // pred_check_branch
    %22 = sbr.rel (0) target = $region25
  $region24: #{roberta_multilabel_forward.17} parent=0 // pred_region
    _
  $region25: #{roberta_multilabel_forward.17} parent=0 // pred_fallthru
    _
  %v23 = vld [vmem:[%s0] sm:$0xff]
  %v24 = vld [vmem:[%s0 + $0x8] sm:$0xff]
  %v25 = vld [vmem:[%s0 + $0x10] sm:$0xff]
  %v26 = vld [vmem:[%s0 + $0x18] sm:$0xff]
  %v27 = vld [vmem:[%s0 + $0x20] sm:$0xff]
  %v28 = vld [vmem:[%s0 + $0x28] sm:$0xff]
  %v29 = vld [vmem:[%s0 + $0x30] sm:$0xff]
  %v30 = vld [vmem:[%s0 + $0x38] sm:$0xff]
  %v31 = vld [vmem:[%s1] sm:$0xff]
  %v32 = vld [vmem:[%s1 + $0x8] sm:$0xff]
  %v33 = vld [vmem:[%s1 + $0x10] sm:$0xff]
  %v34 = vld [vmem:[%s1 + $0x18] sm:$0xff]
  %v35 = vld [vmem:[%s1 + $0x20] sm:$0xff]
  %v36 = vld [vmem:[%s1 + $0x28] sm:$0xff]
  %v37 = vld [vmem:[%s1 + $0x30] sm:$0xff]
  %v38 = vld [vmem:[%s1 + $0x38] sm:$0xff]
  %v39 = vld [vmem:[%s1 + $0x40] sm:$0xff]
  %v40 = vld [vmem:[%s1 + $0x48] sm:$0xff]
  %v41 = vld [vmem:[%s1 + $0x50] sm:$0xff]
  %v42 = vld [vmem:[%s1 + $0x58] sm:$0xff]
  %v43 = vld [vmem:[%s1 + $0x60] sm:$0xff]
  %v44 = vld [vmem:[%s1 + $0x68] sm:$0xff]
  %v45 = vld [vmem:[%s1 + $0x70] sm:$0xff]
  %v46 = vld [vmem:[%s1 + $0x78] sm:$0xff]
  %v47 = vld [vmem:[%s1 + $0x80] sm:$0xff]
  %v48 = vld [vmem:[%s1 + $0x88] sm:$0xff]
  %v49 = vld [vmem:[%s1 + $0x90] sm:$0xff]
  %v50 = vld [vmem:[%s1 + $0x98] sm:$0xff]
  %v51 = vld [vmem:[%s1 + $0xa0] sm:$0xff]
  %v52 = vld [vmem:[%s1 + $0xa8] sm:$0xff]
  %v53 = vld [vmem:[%s1 + $0xb0] sm:$0xff]
  %v54 = vld [vmem:[%s1 + $0xb8] sm:$0xff]
  %v55 = vld [vmem:[%s1 + $0xc0] sm:$0xff]
  %v56 = vld [vmem:[%s1 + $0xc8] sm:$0xff]
  %v57 = vld [vmem:[%s1 + $0xd0] sm:$0xff]
  %v58 = vld [vmem:[%s1 + $0xd8] sm:$0xff]
  %v59 = vld [vmem:[%s1 + $0xe0] sm:$0xff]
  %v60 = vld [vmem:[%s1 + $0xe8] sm:$0xff]
  %v61 = vld [vmem:[%s1 + $0xf0] sm:$0xff]
  %v62 = vld [vmem:[%s1 + $0xf8] sm:$0xff]
  %v63 = vld [vmem:[%s1 + $0x100] sm:$0xff]
  %v64 = vld [vmem:[%s1 + $0x108] sm:$0xff]
  %v65 = vld [vmem:[%s1 + $0x110] sm:$0xff]
  %v66 = vld [vmem:[%s1 + $0x118] sm:$0xff]
  %v67 = vld [vmem:[%s1 + $0x120] sm:$0xff]
  %v68 = vld [vmem:[%s1 + $0x128] sm:$0xff]
  %v69 = vld [vmem:[%s1 + $0x130] sm:$0xff]
  %v70 = vld [vmem:[%s1 + $0x138] sm:$0xff]
  %v71 = vld [vmem:[%s1 + $0x140] sm:$0xff]
  %v72 = vld [vmem:[%s1 + $0x148] sm:$0xff]
  %v73 = vld [vmem:[%s1 + $0x150] sm:$0xff]
  %v74 = vld [vmem:[%s1 + $0x158] sm:$0xff]
  %v75 = vld [vmem:[%s1 + $0x160] sm:$0xff]
  %v76 = vld [vmem:[%s1 + $0x168] sm:$0xff]
  %v77 = vld [vmem:[%s1 + $0x170] sm:$0xff]
  %v78 = vld [vmem:[%s1 + $0x178] sm:$0xff]
  %v79 = vld [vmem:[%s1 + $0x180] sm:$0xff]
  %v80 = vld [vmem:[%s1 + $0x188] sm:$0xff]
  %v81 = vld [vmem:[%s1 + $0x190] sm:$0xff]
  %v82 = vld [vmem:[%s1 + $0x198] sm:$0xff]
  %v83 = vld [vmem:[%s1 + $0x1a0] sm:$0xff]
  %v84 = vld [vmem:[%s1 + $0x1a8] sm:$0xff]
  %v85 = vld [vmem:[%s1 + $0x1b0] sm:$0xff]
  %v86 = vld [vmem:[%s1 + $0x1b8] sm:$0xff]
  %v87 = vld [vmem:[%s1 + $0x1c0] sm:$0xff]
  %v88 = vld [vmem:[%s1 + $0x1c8] sm:$0xff]
  %v89 = vld [vmem:[%s1 + $0x1d0] sm:$0xff]
  %v90 = vld [vmem:[%s1 + $0x1d8] sm:$0xff]
  %v91 = vld [vmem:[%s1 + $0x1e0] sm:$0xff]
  %v92 = vld [vmem:[%s1 + $0x1e8] sm:$0xff]
  %v93 = vld [vmem:[%s1 + $0x1f0] sm:$0xff]
  %v94 = vld [vmem:[%s1 + $0x1f8] sm:$0xff]
  %v95 = vld [vmem:[%s2] sm:$0x3]
  %v97 = vlaneseq
  %v98 = vshrl.u32 %v97, 7
  %v99 = vsub.s32 0, %v98
  %v100 = vrot.slane %v95, %v99
  %v101 = vlaneseq
  %v102 = vshrl.u32 %v101, 7
  %v103 = vsub.s32 1, %v102
  %v104 = vrot.slane %v95, %v103
  %v115 = vunpack.c.l.b16 %v23
  %v116 = vunpack.c.h.b16 %v23
  %v117 = vunpack.c.l.b16 %v24
  %v118 = vunpack.c.h.b16 %v24
  %v119 = vunpack.c.l.b16 %v25
  %v120 = vunpack.c.h.b16 %v25
  %v121 = vunpack.c.l.b16 %v26
  %v122 = vunpack.c.h.b16 %v26
  %v123 = vunpack.c.l.b16 %v27
  %v124 = vunpack.c.h.b16 %v27
  %v125 = vunpack.c.l.b16 %v28
  %v126 = vunpack.c.h.b16 %v28
  %v127 = vunpack.c.l.b16 %v29
  %v128 = vunpack.c.h.b16 %v29
  %v129 = vunpack.c.l.b16 %v30
  %v130 = vunpack.c.h.b16 %v30
  %v131 = vpack.c.b16 %v119, %v115
  %v132 = vpack.c.b16 %v120, %v116
  %v133 = vpack.c.b16 %v121, %v117
  %v134 = vpack.c.b16 %v122, %v118
  %v135 = vpack.c.b16 %v127, %v123
  %v136 = vpack.c.b16 %v128, %v124
  %v137 = vpack.c.b16 %v129, %v125
  %v138 = vpack.c.b16 %v130, %v126
  %v211 = vunpack.c.l.b16 %v31
  %v212 = vunpack.c.h.b16 %v31
  %v213 = vunpack.c.l.b16 %v32
  %v214 = vunpack.c.h.b16 %v32
  %v215 = vunpack.c.l.b16 %v33
  %v216 = vunpack.c.h.b16 %v33
  %v217 = vunpack.c.l.b16 %v34
  %v218 = vunpack.c.h.b16 %v34
  %v219 = vunpack.c.l.b16 %v35
  %v220 = vunpack.c.h.b16 %v35
  %v221 = vunpack.c.l.b16 %v36
  %v222 = vunpack.c.h.b16 %v36
  %v223 = vunpack.c.l.b16 %v37
  %v224 = vunpack.c.h.b16 %v37
  %v225 = vunpack.c.l.b16 %v38
  %v226 = vunpack.c.h.b16 %v38
  %v227 = vunpack.c.l.b16 %v39
  %v228 = vunpack.c.h.b16 %v39
  %v229 = vunpack.c.l.b16 %v40
  %v230 = vunpack.c.h.b16 %v40
  %v231 = vunpack.c.l.b16 %v41
  %v232 = vunpack.c.h.b16 %v41
  %v233 = vunpack.c.l.b16 %v42
  %v234 = vunpack.c.h.b16 %v42
  %v235 = vunpack.c.l.b16 %v43
  %v236 = vunpack.c.h.b16 %v43
  %v237 = vunpack.c.l.b16 %v44
  %v238 = vunpack.c.h.b16 %v44
  %v239 = vunpack.c.l.b16 %v45
  %v240 = vunpack.c.h.b16 %v45
  %v241 = vunpack.c.l.b16 %v46
  %v242 = vunpack.c.h.b16 %v46
  %v243 = vunpack.c.l.b16 %v47
  %v244 = vunpack.c.h.b16 %v47
  %v245 = vunpack.c.l.b16 %v48
  %v246 = vunpack.c.h.b16 %v48
  %v247 = vunpack.c.l.b16 %v49
  %v248 = vunpack.c.h.b16 %v49
  %v249 = vunpack.c.l.b16 %v50
  %v250 = vunpack.c.h.b16 %v50
  %v251 = vunpack.c.l.b16 %v51
  %v252 = vunpack.c.h.b16 %v51
  %v253 = vunpack.c.l.b16 %v52
  %v254 = vunpack.c.h.b16 %v52
  %v255 = vunpack.c.l.b16 %v53
  %v256 = vunpack.c.h.b16 %v53
  %v257 = vunpack.c.l.b16 %v54
  %v258 = vunpack.c.h.b16 %v54
  %v259 = vunpack.c.l.b16 %v55
  %v260 = vunpack.c.h.b16 %v55
  %v261 = vunpack.c.l.b16 %v56
  %v262 = vunpack.c.h.b16 %v56
  %v263 = vunpack.c.l.b16 %v57
  %v264 = vunpack.c.h.b16 %v57
  %v265 = vunpack.c.l.b16 %v58
  %v266 = vunpack.c.h.b16 %v58
  %v267 = vunpack.c.l.b16 %v59
  %v268 = vunpack.c.h.b16 %v59
  %v269 = vunpack.c.l.b16 %v60
  %v270 = vunpack.c.h.b16 %v60
  %v271 = vunpack.c.l.b16 %v61
  %v272 = vunpack.c.h.b16 %v61
  %v273 = vunpack.c.l.b16 %v62
  %v274 = vunpack.c.h.b16 %v62
  %v275 = vunpack.c.l.b16 %v63
  %v276 = vunpack.c.h.b16 %v63
  %v277 = vunpack.c.l.b16 %v64
  %v278 = vunpack.c.h.b16 %v64
  %v279 = vunpack.c.l.b16 %v65
  %v280 = vunpack.c.h.b16 %v65
  %v281 = vunpack.c.l.b16 %v66
  %v282 = vunpack.c.h.b16 %v66
  %v283 = vunpack.c.l.b16 %v67
  %v284 = vunpack.c.h.b16 %v67
  %v285 = vunpack.c.l.b16 %v68
  %v286 = vunpack.c.h.b16 %v68
  %v287 = vunpack.c.l.b16 %v69
  %v288 = vunpack.c.h.b16 %v69
  %v289 = vunpack.c.l.b16 %v70
  %v290 = vunpack.c.h.b16 %v70
  %v291 = vunpack.c.l.b16 %v71
  %v292 = vunpack.c.h.b16 %v71
  %v293 = vunpack.c.l.b16 %v72
  %v294 = vunpack.c.h.b16 %v72
  %v295 = vunpack.c.l.b16 %v73
  %v296 = vunpack.c.h.b16 %v73
  %v297 = vunpack.c.l.b16 %v74
  %v298 = vunpack.c.h.b16 %v74
  %v299 = vunpack.c.l.b16 %v75
  %v300 = vunpack.c.h.b16 %v75
  %v301 = vunpack.c.l.b16 %v76
  %v302 = vunpack.c.h.b16 %v76
  %v303 = vunpack.c.l.b16 %v77
  %v304 = vunpack.c.h.b16 %v77
  %v305 = vunpack.c.l.b16 %v78
  %v306 = vunpack.c.h.b16 %v78
  %v307 = vunpack.c.l.b16 %v79
  %v308 = vunpack.c.h.b16 %v79
  %v309 = vunpack.c.l.b16 %v80
  %v310 = vunpack.c.h.b16 %v80
  %v311 = vunpack.c.l.b16 %v81
  %v312 = vunpack.c.h.b16 %v81
  %v313 = vunpack.c.l.b16 %v82
  %v314 = vunpack.c.h.b16 %v82
  %v315 = vunpack.c.l.b16 %v83
  %v316 = vunpack.c.h.b16 %v83
  %v317 = vunpack.c.l.b16 %v84
  %v318 = vunpack.c.h.b16 %v84
  %v319 = vunpack.c.l.b16 %v85
  %v320 = vunpack.c.h.b16 %v85
  %v321 = vunpack.c.l.b16 %v86
  %v322 = vunpack.c.h.b16 %v86
  %v323 = vunpack.c.l.b16 %v87
  %v324 = vunpack.c.h.b16 %v87
  %v325 = vunpack.c.l.b16 %v88
  %v326 = vunpack.c.h.b16 %v88
  %v327 = vunpack.c.l.b16 %v89
  %v328 = vunpack.c.h.b16 %v89
  %v329 = vunpack.c.l.b16 %v90
  %v330 = vunpack.c.h.b16 %v90
  %v331 = vunpack.c.l.b16 %v91
  %v332 = vunpack.c.h.b16 %v91
  %v333 = vunpack.c.l.b16 %v92
  %v334 = vunpack.c.h.b16 %v92
  %v335 = vunpack.c.l.b16 %v93
  %v336 = vunpack.c.h.b16 %v93
  %v337 = vunpack.c.l.b16 %v94
  %v338 = vunpack.c.h.b16 %v94
  %v339 = vpack.c.b16 %v213, %v211
  %v340 = vpack.c.b16 %v214, %v212
  %v341 = vpack.c.b16 %v217, %v215
  %v342 = vpack.c.b16 %v218, %v216
  %v343 = vpack.c.b16 %v221, %v219
  %v344 = vpack.c.b16 %v222, %v220
  %v345 = vpack.c.b16 %v225, %v223
  %v346 = vpack.c.b16 %v226, %v224
  %v347 = vpack.c.b16 %v229, %v227
  %v348 = vpack.c.b16 %v230, %v228
  %v349 = vpack.c.b16 %v233, %v231
  %v350 = vpack.c.b16 %v234, %v232
  %v351 = vpack.c.b16 %v237, %v235
  %v352 = vpack.c.b16 %v238, %v236
  %v353 = vpack.c.b16 %v241, %v239
  %v354 = vpack.c.b16 %v242, %v240
  %v355 = vpack.c.b16 %v245, %v243
  %v356 = vpack.c.b16 %v246, %v244
  %v357 = vpack.c.b16 %v249, %v247
  %v358 = vpack.c.b16 %v250, %v248
  %v359 = vpack.c.b16 %v253, %v251
  %v360 = vpack.c.b16 %v254, %v252
  %v361 = vpack.c.b16 %v257, %v255
  %v362 = vpack.c.b16 %v258, %v256
  %v363 = vpack.c.b16 %v261, %v259
  %v364 = vpack.c.b16 %v262, %v260
  %v365 = vpack.c.b16 %v265, %v263
  %v366 = vpack.c.b16 %v266, %v264
  %v367 = vpack.c.b16 %v269, %v267
  %v368 = vpack.c.b16 %v270, %v268
  %v369 = vpack.c.b16 %v273, %v271
  %v370 = vpack.c.b16 %v274, %v272
  %v371 = vpack.c.b16 %v277, %v275
  %v372 = vpack.c.b16 %v278, %v276
  %v373 = vpack.c.b16 %v281, %v279
  %v374 = vpack.c.b16 %v282, %v280
  %v375 = vpack.c.b16 %v285, %v283
  %v376 = vpack.c.b16 %v286, %v284
  %v377 = vpack.c.b16 %v289, %v287
  %v378 = vpack.c.b16 %v290, %v288
  %v379 = vpack.c.b16 %v293, %v291
  %v380 = vpack.c.b16 %v294, %v292
  %v381 = vpack.c.b16 %v297, %v295
  %v382 = vpack.c.b16 %v298, %v296
  %v383 = vpack.c.b16 %v301, %v299
  %v384 = vpack.c.b16 %v302, %v300
  %v385 = vpack.c.b16 %v305, %v303
  %v386 = vpack.c.b16 %v306, %v304
  %v387 = vpack.c.b16 %v309, %v307
  %v388 = vpack.c.b16 %v310, %v308
  %v389 = vpack.c.b16 %v313, %v311
  %v390 = vpack.c.b16 %v314, %v312
  %v391 = vpack.c.b16 %v317, %v315
  %v392 = vpack.c.b16 %v318, %v316
  %v393 = vpack.c.b16 %v321, %v319
  %v394 = vpack.c.b16 %v322, %v320
  %v395 = vpack.c.b16 %v325, %v323
  %v396 = vpack.c.b16 %v326, %v324
  %v397 = vpack.c.b16 %v329, %v327
  %v398 = vpack.c.b16 %v330, %v328
  %v399 = vpack.c.b16 %v333, %v331
  %v400 = vpack.c.b16 %v334, %v332
  %v401 = vpack.c.b16 %v337, %v335
  %v402 = vpack.c.b16 %v338, %v336
  %467 = vmatprep.subr.bf16.mxu0 %v340
  %468 = vmatpush1.bf16.msra.mxu0 %v339
  %469 = vmatprep.subr.bf16.mxu0 %v342
  %470 = vmatpush1.bf16.msra.mxu0 %v341
  %471 = vmatprep.subr.bf16.mxu0 %v344
  %472 = vmatpush1.bf16.msra.mxu0 %v343
  %473 = vmatprep.subr.bf16.mxu0 %v346
  %474 = vmatpush1.bf16.msra.mxu0 %v345
  %475 = vmatprep.subr.bf16.mxu0 %v348
  %476 = vmatpush1.bf16.msra.mxu0 %v347
  %477 = vmatprep.subr.bf16.mxu0 %v350
  %478 = vmatpush1.bf16.msra.mxu0 %v349
  %479 = vmatprep.subr.bf16.mxu0 %v352
  %480 = vmatpush1.bf16.msra.mxu0 %v351
  %481 = vmatprep.subr.bf16.mxu0 %v354
  %482 = vmatpush1.bf16.msra.mxu0 %v353
  %483 = vmatprep.subr.bf16.mxu0 %v356
  %484 = vmatpush1.bf16.msra.mxu0 %v355
  %485 = vmatprep.subr.bf16.mxu0 %v358
  %486 = vmatpush1.bf16.msra.mxu0 %v357
  %487 = vmatprep.subr.bf16.mxu0 %v360
  %488 = vmatpush1.bf16.msra.mxu0 %v359
  %489 = vmatprep.subr.bf16.mxu0 %v362
  %490 = vmatpush1.bf16.msra.mxu0 %v361
  %491 = vmatprep.subr.bf16.mxu0 %v364
  %492 = vmatpush1.bf16.msra.mxu0 %v363
  %493 = vmatprep.subr.bf16.mxu0 %v366
  %494 = vmatpush1.bf16.msra.mxu0 %v365
  %495 = vmatprep.subr.bf16.mxu0 %v368
  %496 = vmatpush1.bf16.msra.mxu0 %v367
  %497 = vmatprep.subr.bf16.mxu0 %v370
  %498 = vmatpush1.bf16.msra.mxu0 %v369
  %499 = vmatprep.mubr.bf16.mxu0 %v132
  %500 = vmatmul.mubr.bf16.gmra.mrb[0].mxu0 %v131
  %v501 = vpop.f32.mrb[0].mxu0
  %v502 = vadd.f32 %v100, %v501
  %v503 = vpop.f32.mrb[0].mxu0
  %v504 = vadd.f32 %v104, %v503
  %v505 = vpop.f32.mrb[0].mxu0
  %v506 = vadd.f32 %v100, %v505
  %v507 = vpop.f32.mrb[0].mxu0
  %v508 = vadd.f32 %v104, %v507
  %509 = vmatprep.mubr.bf16.mxu0 %v136
  %510 = vmatmul.mubr.bf16.gmra.mrb[0].mxu0 %v135
  %v511 = vpop.f32.mrb[0].mxu0
  %v512 = vadd.f32 %v100, %v511
  %v513 = vpop.f32.mrb[0].mxu0
  %v514 = vadd.f32 %v104, %v513
  %v515 = vpop.f32.mrb[0].mxu0
  %v516 = vadd.f32 %v100, %v515
  %v517 = vpop.f32.mrb[0].mxu0
  %v518 = vadd.f32 %v104, %v517
  %519 = vdwg.mxu0
  %520 = vmatprep.subr.bf16.mxu0 %v372
  %521 = vmatpush1.bf16.msra.mxu0 %v371
  %522 = vmatprep.subr.bf16.mxu0 %v374
  %523 = vmatpush1.bf16.msra.mxu0 %v373
  %524 = vmatprep.subr.bf16.mxu0 %v376
  %525 = vmatpush1.bf16.msra.mxu0 %v375
  %526 = vmatprep.subr.bf16.mxu0 %v378
  %527 = vmatpush1.bf16.msra.mxu0 %v377
  %528 = vmatprep.subr.bf16.mxu0 %v380
  %529 = vmatpush1.bf16.msra.mxu0 %v379
  %530 = vmatprep.subr.bf16.mxu0 %v382
  %531 = vmatpush1.bf16.msra.mxu0 %v381
  %532 = vmatprep.subr.bf16.mxu0 %v384
  %533 = vmatpush1.bf16.msra.mxu0 %v383
  %534 = vmatprep.subr.bf16.mxu0 %v386
  %535 = vmatpush1.bf16.msra.mxu0 %v385
  %536 = vmatprep.subr.bf16.mxu0 %v388
  %537 = vmatpush1.bf16.msra.mxu0 %v387
  %538 = vmatprep.subr.bf16.mxu0 %v390
  %539 = vmatpush1.bf16.msra.mxu0 %v389
  %540 = vmatprep.subr.bf16.mxu0 %v392
  %541 = vmatpush1.bf16.msra.mxu0 %v391
  %542 = vmatprep.subr.bf16.mxu0 %v394
  %543 = vmatpush1.bf16.msra.mxu0 %v393
  %544 = vmatprep.subr.bf16.mxu0 %v396
  %545 = vmatpush1.bf16.msra.mxu0 %v395
  %546 = vmatprep.subr.bf16.mxu0 %v398
  %547 = vmatpush1.bf16.msra.mxu0 %v397
  %548 = vmatprep.subr.bf16.mxu0 %v400
  %549 = vmatpush1.bf16.msra.mxu0 %v399
  %550 = vmatprep.subr.bf16.mxu0 %v402
  %551 = vmatpush1.bf16.msra.mxu0 %v401
  %552 = vmatprep.mubr.bf16.mxu0 %v134
  %553 = vmatmul.mubr.bf16.gmra.mrb[0].mxu0 %v133
  %v554 = vpop.f32.mrb[0].mxu0
  %v555 = vadd.f32 %v502, %v554
  %v556 = vpop.f32.mrb[0].mxu0
  %v557 = vadd.f32 %v504, %v556
  %v558 = vpop.f32.mrb[0].mxu0
  %v559 = vadd.f32 %v506, %v558
  %v560 = vpop.f32.mrb[0].mxu0
  %v561 = vadd.f32 %v508, %v560
  %562 = vmatprep.mubr.bf16.mxu0 %v138
  %563 = vmatmul.mubr.bf16.gmra.mrb[0].mxu0 %v137
  %v564 = vpop.f32.mrb[0].mxu0
  %v565 = vadd.f32 %v512, %v564
  %v566 = vpop.f32.mrb[0].mxu0
  %v567 = vadd.f32 %v514, %v566
  %v568 = vpop.f32.mrb[0].mxu0
  %v569 = vadd.f32 %v516, %v568
  %v570 = vpop.f32.mrb[0].mxu0
  %v571 = vadd.f32 %v518, %v570
  %572 = vdwg.mxu0
  %v573 = vld [vmem:[%s3] sm:$0xff]
  %v574 = vld [vmem:[%s3 + $0x8] sm:$0xff]
  %v575 = vld [vmem:[%s3 + $0x10] sm:$0xff]
  %v576 = vld [vmem:[%s3 + $0x18] sm:$0xff]
  %v577 = vunpack.c.l.bf16 %v573
  %v578 = vunpack.c.h.bf16 %v573
  %v579 = vunpack.c.l.bf16 %v574
  %v580 = vunpack.c.h.bf16 %v574
  %v581 = vunpack.c.l.bf16 %v575
  %v582 = vunpack.c.h.bf16 %v575
  %v583 = vunpack.c.l.bf16 %v576
  %v584 = vunpack.c.h.bf16 %v576
  %v585 = vadd.f32 %v555, %v577
  %v586 = vadd.f32 %v557, %v578
  %v587 = vadd.f32 %v559, %v579
  %v588 = vadd.f32 %v561, %v580
  %v589 = vadd.f32 %v565, %v581
  %v590 = vadd.f32 %v567, %v582
  %v591 = vadd.f32 %v569, %v583
  %v592 = vadd.f32 %v571, %v584
  %v593 = vadd.f32 %v585, %v586
  %594 = vadd.xlane.f32.xlu0 %v593
  %v595 = vpop.xlane.xlu0 %594
  %v596 = vadd.f32 %v587, %v588
  %597 = vadd.xlane.f32.xlu0 %v596
  %v598 = vpop.xlane.xlu0 %597
  %v599 = vadd.f32 %v589, %v590
  %600 = vadd.xlane.f32.xlu0 %v599
  %v601 = vpop.xlane.xlu0 %600
  %v602 = vadd.f32 %v591, %v592
  %603 = vadd.xlane.f32.xlu0 %v602
  %v604 = vpop.xlane.xlu0 %603
  %v605 = vrcp.pop 256.0
  %v606 = vmul.f32 %v595, %v605
  %v607 = vmul.f32 %v598, %v605
  %v608 = vmul.f32 %v601, %v605
  %v609 = vmul.f32 %v604, %v605
  %v610 = vsub.f32 %v585, %v606
  %v611 = vsub.f32 %v586, %v606
  %v612 = vsub.f32 %v587, %v607
  %v613 = vsub.f32 %v588, %v607
  %v614 = vsub.f32 %v589, %v608
  %v615 = vsub.f32 %v590, %v608
  %v616 = vsub.f32 %v591, %v609
  %v617 = vsub.f32 %v592, %v609
  %v618 = vmul.f32 %v610, %v610
  %v619 = vmul.f32 %v611, %v611
  %v620 = vmul.f32 %v612, %v612
  %v621 = vmul.f32 %v613, %v613
  %v622 = vmul.f32 %v614, %v614
  %v623 = vmul.f32 %v615, %v615
  %v624 = vmul.f32 %v616, %v616
  %v625 = vmul.f32 %v617, %v617
  %v626 = vadd.f32 %v618, %v619
  %627 = vadd.xlane.f32.xlu0 %v626
  %v628 = vpop.xlane.xlu0 %627
  %v629 = vadd.f32 %v620, %v621
  %630 = vadd.xlane.f32.xlu0 %v629
  %v631 = vpop.xlane.xlu0 %630
  %v632 = vadd.f32 %v622, %v623
  %633 = vadd.xlane.f32.xlu0 %v632
  %v634 = vpop.xlane.xlu0 %633
  %v635 = vadd.f32 %v624, %v625
  %636 = vadd.xlane.f32.xlu0 %v635
  %v637 = vpop.xlane.xlu0 %636
  %v638 = vmul.f32 %v628, %v605
  %v639 = vmul.f32 %v631, %v605
  %v640 = vmul.f32 %v634, %v605
  %v641 = vmul.f32 %v637, %v605
  %v642 = vadd.f32 %v638, 1e-05
  %v643 = vadd.f32 %v639, 1e-05
  %v644 = vadd.f32 %v640, 1e-05
  %v645 = vadd.f32 %v641, 1e-05
  %v646 = vrsqrt.pop %v642
  %v647 = vrsqrt.pop %v643
  %v648 = vrsqrt.pop %v644
  %v649 = vrsqrt.pop %v645
  %v650 = vmul.f32 %v610, %v646
  %v651 = vmul.f32 %v611, %v646
  %v652 = vmul.f32 %v612, %v647
  %v653 = vmul.f32 %v613, %v647
  %v654 = vmul.f32 %v614, %v648
  %v655 = vmul.f32 %v615, %v648
  %v656 = vmul.f32 %v616, %v649
  %v657 = vmul.f32 %v617, %v649
  %v658 = vld [vmem:[%s4] sm:$0x3]
  %v660 = vlaneseq
  %v661 = vshrl.u32 %v660, 7
  %v662 = vsub.s32 0, %v661
  %v663 = vrot.slane %v658, %v662
  %v664 = vlaneseq
  %v665 = vshrl.u32 %v664, 7
  %v666 = vsub.s32 1, %v665
  %v667 = vrot.slane %v658, %v666
  %v670 = vmul.f32 %v650, %v663
  %v671 = vmul.f32 %v651, %v667
  %v672 = vmul.f32 %v652, %v663
  %v673 = vmul.f32 %v653, %v667
  %v674 = vmul.f32 %v654, %v663
  %v675 = vmul.f32 %v655, %v667
  %v676 = vmul.f32 %v656, %v663
  %v677 = vmul.f32 %v657, %v667
  %v678 = vld [vmem:[%s5] sm:$0x3]
  %v680 = vlaneseq
  %v681 = vshrl.u32 %v680, 7
  %v682 = vsub.s32 0, %v681
  %v683 = vrot.slane %v678, %v682
  %v684 = vlaneseq
  %v685 = vshrl.u32 %v684, 7
  %v686 = vsub.s32 1, %v685
  %v687 = vrot.slane %v678, %v686
  %v690 = vadd.f32 %v670, %v683
  %v691 = vadd.f32 %v671, %v687
  %v692 = vadd.f32 %v672, %v683
  %v693 = vadd.f32 %v673, %v687
  %v694 = vadd.f32 %v674, %v683
  %v695 = vadd.f32 %v675, %v687
  %v696 = vadd.f32 %v676, %v683
  %v697 = vadd.f32 %v677, %v687
  %v698 = vpack.c.bf16 %v692, %v690
  %v699 = vpack.c.bf16 %v693, %v691
  %v700 = vpack.c.bf16 %v696, %v694
  %v701 = vpack.c.bf16 %v697, %v695
  %v706 = vunpack.c.l.b16 %v698
  %v707 = vunpack.c.l.b16 %v699
  %v708 = vunpack.c.h.b16 %v698
  %v709 = vunpack.c.h.b16 %v699
  %v710 = vunpack.c.l.b16 %v700
  %v711 = vunpack.c.l.b16 %v701
  %v712 = vunpack.c.h.b16 %v700
  %v713 = vunpack.c.h.b16 %v701
  %v714 = vpack.c.b16 %v707, %v706
  %v715 = vpack.c.b16 %v709, %v708
  %v716 = vpack.c.b16 %v711, %v710
  %v717 = vpack.c.b16 %v713, %v712
  %722 = vst [vmem:[%s6] sm:$0xff] %v714
  %723 = vst [vmem:[%s6 + $0x8] sm:$0xff] %v715
  %724 = vst [vmem:[%s6 + $0x10] sm:$0xff] %v716
  %725 = vst [vmem:[%s6 + $0x18] sm:$0xff] %v717
  // Predicated region
  $region26: #{roberta_multilabel_forward.17} parent=0 // pred_check
    _
  $region27: #{roberta_multilabel_forward.17} parent=0 // pred_check_branch
    %727 = sbr.rel (0) target = $region29
  $region28: #{roberta_multilabel_forward.17} parent=0 // pred_region
    _
  $region29: #{roberta_multilabel_forward.17} parent=0 // pred_fallthru
    _
  // Predicated region
  $region30: #{roberta_multilabel_forward.17} parent=0 // pred_check
    _
  $region31: #{roberta_multilabel_forward.17} parent=0 // pred_check_branch
    %729 = sbr.rel (0) target = $region33
  $region32: #{roberta_multilabel_forward.17} parent=0 // pred_region
    _
  $region33: #{roberta_multilabel_forward.17} parent=0 // pred_fallthru
    _

</llo_original>
